<compile_context>
chip_gen: v5e
topology: v5e:2x2
jax: 0.10.0
libtpu: 0.0.40
codegen_flags: <defaults>
</compile_context>

<pallas_src>
import jax
import jax.numpy as jnp
from jax import lax
from jax.experimental import pallas as pl
from jax.experimental.pallas import tpu as pltpu

IN_FEATURES = 196608     # 3 * 256 * 256 flattened, as in the tutorial layer
OUT_FEATURES = 10
K_TILE = 24576           # 196608 / 24576 = 8 K-blocks total
NUM_SPLITS = 2           # leading "parallel" axis: v7x TCs each stream K/2

# Per-split VMEM footprint (double-buffered, padded):
#   x tile  (2->8, 24576) f32 : 0.79 MB * 2 = 1.6 MB
#   W tile (10->16, 24576) f32: 1.57 MB * 2 = 3.1 MB
# => ~4.7 MB, well inside v5e's 16 MiB / v7x's 32 MiB default scoped VMEM.


def _linear_kernel(x_ref, w_ref, o_ref):
    """Partial y_c = sum_k x[:, k-chunk] @ W[:, k-chunk]^T for split c.

    x_ref: (B, K_TILE)   VMEM tile of the input (K on the lane axis)
    w_ref: (N, K_TILE)   VMEM tile of the weight (K on the lane axis, lane-dense)
    o_ref: (B, N)        f32 partial output, resident across the K axis
    """
    k = pl.program_id(1)

    @pl.when(k == 0)
    def _():
        o_ref[...] = jnp.zeros_like(o_ref)

    # Contract K (dim 1 of both operands): (B, Kt) . (N, Kt)^T -> (B, N) on MXU.
    o_ref[...] += lax.dot_general(
        x_ref[...],
        w_ref[...],
        dimension_numbers=(((1,), (1,)), ((), ())),
        preferred_element_type=jnp.float32,
    )


def linear_layer(x, w, b):
    """y = x @ w.T + b   with x:(B,K) f32, w:(N,K) f32, b:(N,) f32."""
    B, K = x.shape
    N, Kw = w.shape
    assert K == Kw
    assert K % (NUM_SPLITS * K_TILE) == 0, "K_TILE must divide K / NUM_SPLITS"
    k_blocks_per_split = K // (NUM_SPLITS * K_TILE)

    cost = pl.CostEstimate(
        flops=2 * B * K * N,
        transcendentals=0,
        bytes_accessed=4 * (B * K + N * K + NUM_SPLITS * B * N),
    )

    partials = pl.pallas_call(
        _linear_kernel,
        out_shape=jax.ShapeDtypeStruct((NUM_SPLITS, B, N), jnp.float32),
        grid_spec=pltpu.PrefetchScalarGridSpec(
            num_scalar_prefetch=0,
            grid=(NUM_SPLITS, k_blocks_per_split),
            in_specs=[
                # x tile: split c covers contiguous K-blocks [c*kps, (c+1)*kps)
                pl.BlockSpec(
                    (B, K_TILE),
                    lambda c, k: (0, c * k_blocks_per_split + k),
                ),
                # W tile in natural (N, K) layout -> lane-dense VMEM blocks
                pl.BlockSpec(
                    (N, K_TILE),
                    lambda c, k: (0, c * k_blocks_per_split + k),
                ),
            ],
            # One resident (B, N) partial per split; leading dim squeezed away.
            out_specs=pl.BlockSpec((None, B, N), lambda c, k: (c, 0, 0)),
        ),
        compiler_params=pltpu.CompilerParams(
            dimension_semantics=("parallel", "arbitrary"),
        ),
        cost_estimate=cost,
    )(x, w)

    # Sum the per-split partials and fold in the bias (tiny (B, N) op).
    return partials.sum(axis=0) + b


if __name__ == "__main__":
    key = jax.random.PRNGKey(0)
    kx, kw, kb = jax.random.split(key, 3)

    batch = 2
    # Deterministic input and PyTorch-style Linear init (uniform +/- 1/sqrt(fan_in)).
    x = jax.random.normal(kx, (batch, IN_FEATURES), dtype=jnp.float32)
    bound = 1.0 / (IN_FEATURES ** 0.5)
    w = jax.random.uniform(
        kw, (OUT_FEATURES, IN_FEATURES), dtype=jnp.float32, minval=-bound, maxval=bound
    )
    b = jax.random.uniform(
        kb, (OUT_FEATURES,), dtype=jnp.float32, minval=-bound, maxval=bound
    )

    y = linear_layer(x, w, b)
    y = jax.block_until_ready(y)

    # Sanity check against plain JAX.
    y_ref = x @ w.T + b
    assert y.shape == (batch, OUT_FEATURES)
    assert jnp.allclose(y, y_ref, rtol=1e-4, atol=1e-4)

    print("KERNEL_OK")
</pallas_src>

<mosaic_0001>
module attributes {stable_mosaic.version = 11 : i64} {
  func.func @_linear_kernel(%arg0: i32, %arg1: i32, %arg2: memref<2x24576xf32, #tpu.memory_space<vmem>>, %arg3: memref<10x24576xf32, #tpu.memory_space<vmem>>, %arg4: memref<1x2x10xf32, #tpu.memory_space<vmem>>) attributes {dimension_semantics = [#tpu.dimension_semantics<parallel>, #tpu.dimension_semantics<arbitrary>], iteration_bounds = array<i64: 2, 4>, scalar_prefetch = 0 : i64, scratch_operands = 0 : i64, tpu.core_type = #tpu.core_type<tc>, window_params = [{transform_indices = @transform_0, window_bounds = array<i64: 2, 24576>}, {transform_indices = @transform_1, window_bounds = array<i64: 10, 24576>}, {transform_indices = @transform_2, window_bounds = array<i64: 1, 2, 10>}]} {
    %c0_i32 = arith.constant 0 : i32
    %0 = arith.cmpi eq, %arg1, %c0_i32 : i32
    %1 = arith.extui %0 : i1 to i32
    %c0_i32_0 = arith.constant 0 : i32
    %2 = arith.cmpi ne, %1, %c0_i32_0 : i32
    scf.if %2 {
      %cst_10 = arith.constant 0.000000e+00 : f32
      %12 = vector.broadcast %cst_10 : f32 to vector<2x10xf32>
      %c0_11 = arith.constant 0 : index
      %c0_12 = arith.constant 0 : index
      %c0_13 = arith.constant 0 : index
      %13 = vector.load %arg4[%c0_11, %c0_12, %c0_13] : memref<1x2x10xf32, #tpu.memory_space<vmem>>, vector<1x2x10xf32>
      %14 = vector.shape_cast %13 : vector<1x2x10xf32> to vector<2x10xf32>
      %15 = vector.shape_cast %12 : vector<2x10xf32> to vector<1x2x10xf32>
      tpu.vector_store %arg4[%c0_11, %c0_12, %c0_13], %15 {strides = array<i32>} : memref<1x2x10xf32, #tpu.memory_space<vmem>>, vector<1x2x10xf32>,
    } else {
    }
    %c0 = arith.constant 0 : index
    %c0_1 = arith.constant 0 : index
    %c0_2 = arith.constant 0 : index
    %3 = vector.load %arg4[%c0, %c0_1, %c0_2] : memref<1x2x10xf32, #tpu.memory_space<vmem>>, vector<1x2x10xf32>
    %4 = vector.shape_cast %3 : vector<1x2x10xf32> to vector<2x10xf32>
    %c0_3 = arith.constant 0 : index
    %c0_4 = arith.constant 0 : index
    %5 = vector.load %arg2[%c0_3, %c0_4] : memref<2x24576xf32, #tpu.memory_space<vmem>>, vector<2x24576xf32>
    %c0_5 = arith.constant 0 : index
    %c0_6 = arith.constant 0 : index
    %6 = vector.load %arg3[%c0_5, %c0_6] : memref<10x24576xf32, #tpu.memory_space<vmem>>, vector<10x24576xf32>
    %cst = arith.constant dense<0.000000e+00> : vector<2x10xf32>
    %7 = tpu.matmul %5, %6, %cst {dimension_numbers = #tpu.dot_dimension_numbers<[1], [1], [0], [0], [0, 0, 1, 0], [], []>} : vector<2x24576xf32>, vector<10x24576xf32>, vector<2x10xf32> -> vector<2x10xf32>
    %8 = arith.addf %4, %7 : vector<2x10xf32>
    %c0_7 = arith.constant 0 : index
    %c0_8 = arith.constant 0 : index
    %c0_9 = arith.constant 0 : index
    %9 = vector.load %arg4[%c0_7, %c0_8, %c0_9] : memref<1x2x10xf32, #tpu.memory_space<vmem>>, vector<1x2x10xf32>
    %10 = vector.shape_cast %9 : vector<1x2x10xf32> to vector<2x10xf32>
    %11 = vector.shape_cast %8 : vector<2x10xf32> to vector<1x2x10xf32>
    tpu.vector_store %arg4[%c0_7, %c0_8, %c0_9], %11 {strides = array<i32>} : memref<1x2x10xf32, #tpu.memory_space<vmem>>, vector<1x2x10xf32>,
    return
  }
  func.func @transform_0(%arg0: i32, %arg1: i32) -> (i32, i32) {
    %c4_i32 = arith.constant 4 : i32
    %0 = arith.muli %arg0, %c4_i32 : i32
    %1 = arith.addi %0, %arg1 : i32
    %c0_i32 = arith.constant 0 : i32
    %c0_i32_0 = arith.constant 0 : i32
    return %c0_i32, %1 : i32, i32
  }
  func.func @transform_1(%arg0: i32, %arg1: i32) -> (i32, i32) {
    %c4_i32 = arith.constant 4 : i32
    %0 = arith.muli %arg0, %c4_i32 : i32
    %1 = arith.addi %0, %arg1 : i32
    %c0_i32 = arith.constant 0 : i32
    %c0_i32_0 = arith.constant 0 : i32
    return %c0_i32, %1 : i32, i32
  }
  func.func @transform_2(%arg0: i32, %arg1: i32) -> (i32, i32, i32) {
    %c0_i32 = arith.constant 0 : i32
    %c0_i32_0 = arith.constant 0 : i32
    %c0_i32_1 = arith.constant 0 : i32
    return %arg0, %c0_i32, %c0_i32_0 : i32, i32, i32
  }
}

</mosaic_0001>

<llo_original>
// kernel: tpu_custom_call.1
$region0: #{tpu_custom_call.1}
  #allocation0 [shape = 'u32[]', space=smem, size = 0x4, offset = 0x4, fixed_abs, tag = 'smem constant byte address 0x4 - core index']
  #allocation1 [shape = 'u32[72,128]{1,0:T(1,128)}', space=vmem, size = 0x9000, scoped, tag = 'internal scratch']
  %s0 = inlined_call_operand.hbm [shape: f32[2,196608], index: 0, kind: input, shape index: {}]
  %s1 = inlined_call_operand.hbm [shape: f32[10,196608], index: 1, kind: input, shape index: {}]
  %s2 = inlined_call_operand.hbm [shape: f32[2,2,10], index: 2, kind: output, shape index: {}]
  %s3 = sld [smem:[#allocation0]]
  $region53: #{tpu_custom_call.1} parent=0
    _
  %s5 = ssub.s32 1, %s3
  %s6 = scalar_select 0, %s5, %s3
  $region1: #{tpu_custom_call.1} parent=0
    #allocation2 [shape = 'u8[393216]{0}', space=vmem, size = 0x60000, scoped, tag = 'input window, operand 0']
    #allocation3 [shape = 's32[2]{0}', space=sflag, size = 0x8, scoped, tag = 'scoped memory for tpu_custom_call.1']
    #allocation4 [shape = 's32[2]{0}', space=sflag, size = 0x8, scoped, tag = 'scoped memory for tpu_custom_call.1']
    #allocation5 [shape = 'u8[3145728]{0}', space=vmem, size = 0x300000, scoped, tag = 'input window, operand 1']
    #allocation6 [shape = 's32[2]{0}', space=sflag, size = 0x8, scoped, tag = 'scoped memory for tpu_custom_call.1']
    #allocation7 [shape = 'u8[2048]{0}', space=vmem, size = 0x800, scoped, tag = 'output window, operand 0']
    %7 = vsyncpa [#allocation3], 0
    %s8 = scalar_lea.sflag [#allocation3], 1
    %9 = vsyncpa %s8, 0
    %10 = vsyncpa [#allocation6], 0
    %s11 = scalar_lea.sflag [#allocation6], 1
    %12 = vsyncpa %s11, 0
    %13 = vsyncpa [#allocation4], 0
    %s14 = scalar_lea.sflag [#allocation4], 1
    %15 = vsyncpa %s14, 0
    loop: start=0, step=1, limit=10
    $region2: #{tpu_custom_call.1} parent=1 // loop_pre_header
      _
    $region3: #{tpu_custom_call.1} parent=1 // loop_header
      %s17 = sphi 0, %s21
      %p18 = scmp.ge.s32.totalorder %s17, 10
      %s24 = sphi 0, %s36
      %s25 = sphi 0, %s32
      %s26 = sphi 0, %s24
      %s27 = sphi 0, %s25
      %s28 = sphi 0, %s26
      %s29 = sphi 0, %s27
      %s43 = sphi 0, %s45
      %s46 = sphi 0, %s43
      %s47 = sphi 0, %s46
      %s63 = sphi 0, %s47
      %s73 = sphi 0, %s75
      %s76 = sphi 0, %s73
      %s77 = sphi 0, %s76
      %s93 = sphi 0, %s77
      %s99 = sphi 0, %s101
      %s102 = sphi 0, %s99
      %s103 = sphi 0, %s102
      %s119 = sphi 0, %s103
    $region4: #{tpu_custom_call.1} parent=1 // loop_header_branch
      %20 = sbr.rel (%p18) target = $region8
    $region5: #{tpu_custom_call.1} parent=1 // loop_body
      %s22 = ssub.s32 %s17, 1
      %s23 = ssub.s32 %s17, 2
      %s30 = sadd.s32 1, %s25
      %p31 = scmp.ge.s32.totalorder %s30, 4
      %s32 = scalar_select %p31, 0, %s30
      %s33 = sadd.s32 1, %s24
      %s34 = scalar_select %p31, %s33, %s24
      %p35 = scmp.ge.s32.totalorder %s34, 2
      %s36 = scalar_select %p35, 0, %s34
      %s37 = smul.u32 %s24, 4
      %s38 = sadd.s32 %s37, %s25
      %s39 = smul.u32 %s36, 4
      %s40 = sadd.s32 %s39, %s32
      %s41 = ssub.s32 %s38, %s40
      %p42 = scmp.eq.s32.totalorder %s41, 0
      %s44 = sadd.s32 %s43, 1
      %s45 = scalar_select %p42, %s43, %s44
      %p48 = pneg %p42
      %p49 = scmp.eq.s32.totalorder %s17, 7
      %p50 = por %p48, %p49
      %p51 = scmp.ne.s32.totalorder %s43, %s46
      %p52 = scmp.eq.s32.totalorder %s17, 0
      %p53 = por %p51, %p52
      %p54 = scmp.ne.s32.totalorder %s43, %s46
      %p55 = scmp.eq.s32.totalorder %s22, 7
      %p56 = por %p54, %p55
      %p57 = scmp.ne.s32.totalorder %s46, %s47
      %p58 = scmp.eq.s32.totalorder %s22, 0
      %p59 = por %p57, %p58
      %p60 = scmp.ne.s32.totalorder %s46, %s47
      %p61 = scmp.eq.s32.totalorder %s23, 7
      %p62 = por %p60, %p61
      %p64 = scmp.ne.s32.totalorder %s47, %s63
      %p65 = scmp.eq.s32.totalorder %s23, 0
      %p66 = por %p64, %p65
      %s67 = smul.u32 %s24, 4
      %s68 = sadd.s32 %s67, %s25
      %s69 = smul.u32 %s36, 4
      %s70 = sadd.s32 %s69, %s32
      %s71 = ssub.s32 %s68, %s70
      %p72 = scmp.eq.s32.totalorder %s71, 0
      %s74 = sadd.s32 %s73, 1
      %s75 = scalar_select %p72, %s73, %s74
      %p78 = pneg %p72
      %p79 = scmp.eq.s32.totalorder %s17, 7
      %p80 = por %p78, %p79
      %p81 = scmp.ne.s32.totalorder %s73, %s76
      %p82 = scmp.eq.s32.totalorder %s17, 0
      %p83 = por %p81, %p82
      %p84 = scmp.ne.s32.totalorder %s73, %s76
      %p85 = scmp.eq.s32.totalorder %s22, 7
      %p86 = por %p84, %p85
      %p87 = scmp.ne.s32.totalorder %s76, %s77
      %p88 = scmp.eq.s32.totalorder %s22, 0
      %p89 = por %p87, %p88
      %p90 = scmp.ne.s32.totalorder %s76, %s77
      %p91 = scmp.eq.s32.totalorder %s23, 7
      %p92 = por %p90, %p91
      %p94 = scmp.ne.s32.totalorder %s77, %s93
      %p95 = scmp.eq.s32.totalorder %s23, 0
      %p96 = por %p94, %p95
      %s97 = ssub.s32 %s24, %s36
      %p98 = scmp.eq.s32.totalorder %s97, 0
      %s100 = sadd.s32 %s99, 1
      %s101 = scalar_select %p98, %s99, %s100
      %p104 = pneg %p98
      %p105 = scmp.eq.s32.totalorder %s17, 7
      %p106 = por %p104, %p105
      %p107 = scmp.ne.s32.totalorder %s99, %s102
      %p108 = scmp.eq.s32.totalorder %s17, 0
      %p109 = por %p107, %p108
      %p110 = scmp.ne.s32.totalorder %s99, %s102
      %p111 = scmp.eq.s32.totalorder %s22, 7
      %p112 = por %p110, %p111
      %p113 = scmp.ne.s32.totalorder %s102, %s103
      %p114 = scmp.eq.s32.totalorder %s22, 0
      %p115 = por %p113, %p114
      %p116 = scmp.ne.s32.totalorder %s102, %s103
      %p117 = scmp.eq.s32.totalorder %s23, 7
      %p118 = por %p116, %p117
      %p120 = scmp.ne.s32.totalorder %s103, %s119
      %p121 = scmp.eq.s32.totalorder %s23, 0
      %p122 = por %p120, %p121
      %p123 = scmp.le.s32.totalorder 1, %s17
      %p124 = scmp.lt.s32.totalorder %s17, 9
      %p125 = pnand %p123, %p124
      %p126 = pneg %p125
      // Predicated region
      $region9: #{tpu_custom_call.1} parent=5 // pred_check
        _
      $region10: #{tpu_custom_call.1} parent=5 // pred_check_branch
        %128 = sbr.rel (%p125) target = $region12
      $region11: #{tpu_custom_call.1} parent=5 // pred_region
        %s129 = ssub.s32 %s17, 1
      $region12: #{tpu_custom_call.1} parent=5 // pred_fallthru
        _
      %p130 = scmp.lt.s32.totalorder %s17, 8
      // Predicated region
      $region13: #{tpu_custom_call.1} parent=5 // pred_check
        %p131 = pneg %p130
      $region14: #{tpu_custom_call.1} parent=5 // pred_check_branch
        %133 = sbr.rel (%p131) target = $region16
      $region15: #{tpu_custom_call.1} parent=5 // pred_region
        // Predicated region
        $region17: #{tpu_custom_call.1} parent=15 // pred_check
          %p134 = pneg %p53
        $region18: #{tpu_custom_call.1} parent=15 // pred_check_branch
          %136 = sbr.rel (%p134) target = $region20
        $region19: #{tpu_custom_call.1} parent=15 // pred_region
          %s137 = sand.u32 %s43, 1
          %s138 = scalar_lea.sflag [#allocation3], %s137
          %s139 = sand.u32 %s43, 1
          %s140 = smul.addr %s139, 384
          %s141 = scalar_lea.vmem [#allocation2], %s140
          %s142 = smul.u32 %s24, 4
          %s143 = sadd.s32 %s142, %s25
          %s144 = smul.u32 192, %s143
          %146 = vsyncadd %s138, 0
          %s147 = smul.addr %s144, 2
          %s148 = scalar_lea.hbm %s0, %s147
          %s150 = sshll.u32 %s148, 4
          %s151 = int_to_ptr.hbm [resolvable:$true] %s150
          %s152 = sshll.u32 %s141, 4
          %s153 = int_to_ptr.vmem [resolvable:$true] %s152
          %155 = dma.hbm_to_vmem [thread:$0]  %s151, 6144, %s153, %s138
        $region20: #{tpu_custom_call.1} parent=15 // pred_fallthru
          _
        // Predicated region
        $region21: #{tpu_custom_call.1} parent=15 // pred_check
          %p156 = pneg %p83
        $region22: #{tpu_custom_call.1} parent=15 // pred_check_branch
          %158 = sbr.rel (%p156) target = $region24
        $region23: #{tpu_custom_call.1} parent=15 // pred_region
          %s159 = sand.u32 %s73, 1
          %s160 = scalar_lea.sflag [#allocation6], %s159
          %s161 = sand.u32 %s73, 1
          %s162 = smul.addr %s161, 3072
          %s163 = scalar_lea.vmem [#allocation5], %s162
          %s164 = smul.u32 %s24, 4
          %s165 = sadd.s32 %s164, %s25
          %s166 = smul.u32 192, %s165
          %168 = vsyncadd %s160, 0
          %s169 = smul.addr %s166, 8
          %s170 = scalar_lea.hbm %s1, %s169
          %s171 = sshll.u32 %s170, 4
          %s172 = int_to_ptr.hbm [resolvable:$true] %s171
          %s173 = sshll.u32 %s163, 4
          %s174 = int_to_ptr.vmem [resolvable:$true] %s173
          %179 = dma.hbm_to_vmem [thread:$0]  %s172, 49152, %s174, %s160, 196608, 24576, 1536
        $region24: #{tpu_custom_call.1} parent=15 // pred_fallthru
          _
      $region16: #{tpu_custom_call.1} parent=5 // pred_fallthru
        _
      %p180 = scmp.le.s32.totalorder 1, %s17
      %p181 = scmp.lt.s32.totalorder %s17, 9
      %p182 = pnand %p180, %p181
      %p183 = pneg %p182
      // Predicated region
      $region25: #{tpu_custom_call.1} parent=5 // pred_check
        _
      $region26: #{tpu_custom_call.1} parent=5 // pred_check_branch
        %185 = sbr.rel (%p182) target = $region28
      $region27: #{tpu_custom_call.1} parent=5 // pred_region
        %s186 = ssub.s32 %s17, 1
        %s187 = sand.u32 %s46, 1
        %s188 = scalar_lea.sflag [#allocation3], %s187
        %s189 = sand.u32 %s46, 1
        %s190 = smul.addr %s189, 384
        %s191 = scalar_lea.vmem [#allocation2], %s190
        // Predicated region
        $region29: #{tpu_custom_call.1} parent=27 // pred_check
          %p192 = pneg %p59
        $region30: #{tpu_custom_call.1} parent=27 // pred_check_branch
          %194 = sbr.rel (%p192) target = $region32
        $region31: #{tpu_custom_call.1} parent=27 // pred_region
          %196 = dma.done %s188, 6144
        $region32: #{tpu_custom_call.1} parent=27 // pred_fallthru
          _
        %s197 = sand.u32 %s76, 1
        %s198 = scalar_lea.sflag [#allocation6], %s197
        %s199 = sand.u32 %s76, 1
        %s200 = smul.addr %s199, 3072
        %s201 = scalar_lea.vmem [#allocation5], %s200
        // Predicated region
        $region33: #{tpu_custom_call.1} parent=27 // pred_check
          %p202 = pneg %p89
        $region34: #{tpu_custom_call.1} parent=27 // pred_check_branch
          %204 = sbr.rel (%p202) target = $region36
        $region35: #{tpu_custom_call.1} parent=27 // pred_region
          %206 = dma.done %s198, 49152
        $region36: #{tpu_custom_call.1} parent=27 // pred_fallthru
          _
        %s207 = sand.u32 %s46, 1
        %s208 = scalar_lea.sflag [#allocation3], %s207
        %s209 = sand.u32 %s46, 1
        %s210 = smul.addr %s209, 384
        %s211 = scalar_lea.vmem [#allocation2], %s210
        %p212 = pneg %p59
        %p213 = pneg %p56
        %s214 = sand.u32 %s76, 1
        %s215 = scalar_lea.sflag [#allocation6], %s214
        %s216 = sand.u32 %s76, 1
        %s217 = smul.addr %s216, 3072
        %s218 = scalar_lea.vmem [#allocation5], %s217
        %p219 = pneg %p89
        %p220 = pneg %p86
        %p221 = pneg %p115
        %p222 = pneg %p112
        %s223 = sand.u32 %s102, 1
        %s224 = scalar_lea.sflag [#allocation4], %s223
        %s225 = sand.u32 %s102, 1
        %s226 = smul.addr %s225, 2
        %s227 = scalar_lea.vmem [#allocation7], %s226
        %s228 = smul.u32 %s26, 4
        %s229 = sadd.s32 %s228, %s27
        %s230 = smul.u32 192, %s229
        %s231 = smul.u32 %s26, 4
        %s232 = sadd.s32 %s231, %s27
        %s233 = smul.u32 192, %s232
        %p234 = scmp.eq.s32.totalorder %s27, 0
        // Predicated region
        $region37: #{tpu_custom_call.1} parent=27 // pred_check
          %p235 = pneg %p234
        $region38: #{tpu_custom_call.1} parent=27 // pred_check_branch
          %237 = sbr.rel (%p235) target = $region40
        $region39: #{tpu_custom_call.1} parent=27 // pred_region
          %vm238 = vcmask 74752
          %239 = vst.msk [vmem:[%s227] sm:$0x3] %vm238, 0.0
        $region40: #{tpu_custom_call.1} parent=27 // pred_fallthru
          _
        %v240 = vld [vmem:[%s227] sm:$0x3]
        %v241 = vld [vmem:[%s191] sm:$0xff]
        %v242 = vld [vmem:[%s191 + $0x8] sm:$0xff]
        %v243 = vld [vmem:[%s191 + $0x10] sm:$0xff]
        %v244 = vld [vmem:[%s191 + $0x18] sm:$0xff]
        %v245 = vld [vmem:[%s191 + $0x20] sm:$0xff]
        %v246 = vld [vmem:[%s191 + $0x28] sm:$0xff]
        %v247 = vld [vmem:[%s191 + $0x30] sm:$0xff]
        %v248 = vld [vmem:[%s191 + $0x38] sm:$0xff]
        %v249 = vld [vmem:[%s191 + $0x40] sm:$0xff]
        %v250 = vld [vmem:[%s191 + $0x48] sm:$0xff]
        %v251 = vld [vmem:[%s191 + $0x50] sm:$0xff]
        %v252 = vld [vmem:[%s191 + $0x58] sm:$0xff]
        %v253 = vld [vmem:[%s191 + $0x60] sm:$0xff]
        %v254 = vld [vmem:[%s191 + $0x68] sm:$0xff]
        %v255 = vld [vmem:[%s191 + $0x70] sm:$0xff]
        %v256 = vld [vmem:[%s191 + $0x78] sm:$0xff]
        %v257 = vld [vmem:[%s191 + $0x80] sm:$0xff]
        %v258 = vld [vmem:[%s191 + $0x88] sm:$0xff]
        %v259 = vld [vmem:[%s191 + $0x90] sm:$0xff]
        %v260 = vld [vmem:[%s191 + $0x98] sm:$0xff]
        %v261 = vld [vmem:[%s191 + $0xa0] sm:$0xff]
        %v262 = vld [vmem:[%s191 + $0xa8] sm:$0xff]
        %v263 = vld [vmem:[%s191 + $0xb0] sm:$0xff]
        %v264 = vld [vmem:[%s191 + $0xb8] sm:$0xff]
        %v265 = vld [vmem:[%s191 + $0xc0] sm:$0xff]
        %v266 = vld [vmem:[%s191 + $0xc8] sm:$0xff]
        %v267 = vld [vmem:[%s191 + $0xd0] sm:$0xff]
        %v268 = vld [vmem:[%s191 + $0xd8] sm:$0xff]
        %v269 = vld [vmem:[%s191 + $0xe0] sm:$0xff]
        %v270 = vld [vmem:[%s191 + $0xe8] sm:$0xff]
        %v271 = vld [vmem:[%s191 + $0xf0] sm:$0xff]
        %v272 = vld [vmem:[%s191 + $0xf8] sm:$0xff]
        %v273 = vld [vmem:[%s191 + $0x100] sm:$0xff]
        %v274 = vld [vmem:[%s191 + $0x108] sm:$0xff]
        %v275 = vld [vmem:[%s191 + $0x110] sm:$0xff]
        %v276 = vld [vmem:[%s191 + $0x118] sm:$0xff]
        %v277 = vld [vmem:[%s191 + $0x120] sm:$0xff]
        %v278 = vld [vmem:[%s191 + $0x128] sm:$0xff]
        %v279 = vld [vmem:[%s191 + $0x130] sm:$0xff]
        %v280 = vld [vmem:[%s191 + $0x138] sm:$0xff]
        %v281 = vld [vmem:[%s191 + $0x140] sm:$0xff]
        %v282 = vld [vmem:[%s191 + $0x148] sm:$0xff]
        %v283 = vld [vmem:[%s191 + $0x150] sm:$0xff]
        %v284 = vld [vmem:[%s191 + $0x158] sm:$0xff]
        %v285 = vld [vmem:[%s191 + $0x160] sm:$0xff]
        %v286 = vld [vmem:[%s191 + $0x168] sm:$0xff]
        %v287 = vld [vmem:[%s191 + $0x170] sm:$0xff]
        %v288 = vld [vmem:[%s191 + $0x178] sm:$0xff]
        %v289 = vld [vmem:[%s201] sm:$0xff]
        %v290 = vld [vmem:[%s201 + $0x8] sm:$0xff]
        %v291 = vld [vmem:[%s201 + $0x10] sm:$0xff]
        %v292 = vld [vmem:[%s201 + $0x18] sm:$0xff]
        %v293 = vld [vmem:[%s201 + $0x20] sm:$0xff]
        %v294 = vld [vmem:[%s201 + $0x28] sm:$0xff]
        %v295 = vld [vmem:[%s201 + $0x30] sm:$0xff]
        %v296 = vld [vmem:[%s201 + $0x38] sm:$0xff]
        %v297 = vld [vmem:[%s201 + $0x40] sm:$0xff]
        %v298 = vld [vmem:[%s201 + $0x48] sm:$0xff]
        %v299 = vld [vmem:[%s201 + $0x50] sm:$0xff]
        %v300 = vld [vmem:[%s201 + $0x58] sm:$0xff]
        %v301 = vld [vmem:[%s201 + $0x60] sm:$0xff]
        %v302 = vld [vmem:[%s201 + $0x68] sm:$0xff]
        %v303 = vld [vmem:[%s201 + $0x70] sm:$0xff]
        %v304 = vld [vmem:[%s201 + $0x78] sm:$0xff]
        %v305 = vld [vmem:[%s201 + $0x80] sm:$0xff]
        %v306 = vld [vmem:[%s201 + $0x88] sm:$0xff]
        %v307 = vld [vmem:[%s201 + $0x90] sm:$0xff]
        %v308 = vld [vmem:[%s201 + $0x98] sm:$0xff]
        %v309 = vld [vmem:[%s201 + $0xa0] sm:$0xff]
        %v310 = vld [vmem:[%s201 + $0xa8] sm:$0xff]
        %v311 = vld [vmem:[%s201 + $0xb0] sm:$0xff]
        %v312 = vld [vmem:[%s201 + $0xb8] sm:$0xff]
        %v313 = vld [vmem:[%s201 + $0xc0] sm:$0xff]
        %v314 = vld [vmem:[%s201 + $0xc8] sm:$0xff]
        %v315 = vld [vmem:[%s201 + $0xd0] sm:$0xff]
        %v316 = vld [vmem:[%s201 + $0xd8] sm:$0xff]
        %v317 = vld [vmem:[%s201 + $0xe0] sm:$0xff]
        %v318 = vld [vmem:[%s201 + $0xe8] sm:$0xff]
        %v319 = vld [vmem:[%s201 + $0xf0] sm:$0xff]
        %v320 = vld [vmem:[%s201 + $0xf8] sm:$0xff]
        %v321 = vld [vmem:[%s201 + $0x100] sm:$0xff]
        %v322 = vld [vmem:[%s201 + $0x108] sm:$0xff]
        %v323 = vld [vmem:[%s201 + $0x110] sm:$0xff]
        %v324 = vld [vmem:[%s201 + $0x118] sm:$0xff]
        %v325 = vld [vmem:[%s201 + $0x120] sm:$0xff]
        %v326 = vld [vmem:[%s201 + $0x128] sm:$0xff]
        %v327 = vld [vmem:[%s201 + $0x130] sm:$0xff]
        %v328 = vld [vmem:[%s201 + $0x138] sm:$0xff]
        %v329 = vld [vmem:[%s201 + $0x140] sm:$0xff]
        %v330 = vld [vmem:[%s201 + $0x148] sm:$0xff]
        %v331 = vld [vmem:[%s201 + $0x150] sm:$0xff]
        %v332 = vld [vmem:[%s201 + $0x158] sm:$0xff]
        %v333 = vld [vmem:[%s201 + $0x160] sm:$0xff]
        %v334 = vld [vmem:[%s201 + $0x168] sm:$0xff]
        %v335 = vld [vmem:[%s201 + $0x170] sm:$0xff]
        %v336 = vld [vmem:[%s201 + $0x178] sm:$0xff]
        %v337 = vld [vmem:[%s201 + $0x180] sm:$0xff]
        %v338 = vld [vmem:[%s201 + $0x188] sm:$0xff]
        %v339 = vld [vmem:[%s201 + $0x190] sm:$0xff]
        %v340 = vld [vmem:[%s201 + $0x198] sm:$0xff]
        %v341 = vld [vmem:[%s201 + $0x1a0] sm:$0xff]
        %v342 = vld [vmem:[%s201 + $0x1a8] sm:$0xff]
        %v343 = vld [vmem:[%s201 + $0x1b0] sm:$0xff]
        %v344 = vld [vmem:[%s201 + $0x1b8] sm:$0xff]
        %v345 = vld [vmem:[%s201 + $0x1c0] sm:$0xff]
        %v346 = vld [vmem:[%s201 + $0x1c8] sm:$0xff]
        %v347 = vld [vmem:[%s201 + $0x1d0] sm:$0xff]
        %v348 = vld [vmem:[%s201 + $0x1d8] sm:$0xff]
        %v349 = vld [vmem:[%s201 + $0x1e0] sm:$0xff]
        %v350 = vld [vmem:[%s201 + $0x1e8] sm:$0xff]
        %v351 = vld [vmem:[%s201 + $0x1f0] sm:$0xff]
        %v352 = vld [vmem:[%s201 + $0x1f8] sm:$0xff]
        %v353 = vld [vmem:[%s201 + $0x200] sm:$0xff]
        %v354 = vld [vmem:[%s201 + $0x208] sm:$0xff]
        %v355 = vld [vmem:[%s201 + $0x210] sm:$0xff]
        %v356 = vld [vmem:[%s201 + $0x218] sm:$0xff]
        %v357 = vld [vmem:[%s201 + $0x220] sm:$0xff]
        %v358 = vld [vmem:[%s201 + $0x228] sm:$0xff]
        %v359 = vld [vmem:[%s201 + $0x230] sm:$0xff]
        %v360 = vld [vmem:[%s201 + $0x238] sm:$0xff]
        %v361 = vld [vmem:[%s201 + $0x240] sm:$0xff]
        %v362 = vld [vmem:[%s201 + $0x248] sm:$0xff]
        %v363 = vld [vmem:[%s201 + $0x250] sm:$0xff]
        %v364 = vld [vmem:[%s201 + $0x258] sm:$0xff]
        %v365 = vld [vmem:[%s201 + $0x260] sm:$0xff]
        %v366 = vld [vmem:[%s201 + $0x268] sm:$0xff]
        %v367 = vld [vmem:[%s201 + $0x270] sm:$0xff]
        %v368 = vld [vmem:[%s201 + $0x278] sm:$0xff]
        %v369 = vld [vmem:[%s201 + $0x280] sm:$0xff]
        %v370 = vld [vmem:[%s201 + $0x288] sm:$0xff]
        %v371 = vld [vmem:[%s201 + $0x290] sm:$0xff]
        %v372 = vld [vmem:[%s201 + $0x298] sm:$0xff]
        %v373 = vld [vmem:[%s201 + $0x2a0] sm:$0xff]
        %v374 = vld [vmem:[%s201 + $0x2a8] sm:$0xff]
        %v375 = vld [vmem:[%s201 + $0x2b0] sm:$0xff]
        %v376 = vld [vmem:[%s201 + $0x2b8] sm:$0xff]
        %v377 = vld [vmem:[%s201 + $0x2c0] sm:$0xff]
        %v378 = vld [vmem:[%s201 + $0x2c8] sm:$0xff]
        %v379 = vld [vmem:[%s201 + $0x2d0] sm:$0xff]
        %v380 = vld [vmem:[%s201 + $0x2d8] sm:$0xff]
        %v381 = vld [vmem:[%s201 + $0x2e0] sm:$0xff]
        %v382 = vld [vmem:[%s201 + $0x2e8] sm:$0xff]
        %v383 = vld [vmem:[%s201 + $0x2f0] sm:$0xff]
        %v384 = vld [vmem:[%s201 + $0x2f8] sm:$0xff]
        %v385 = vld [vmem:[%s201 + $0x300] sm:$0xff]
        %v386 = vld [vmem:[%s201 + $0x308] sm:$0xff]
        %v387 = vld [vmem:[%s201 + $0x310] sm:$0xff]
        %v388 = vld [vmem:[%s201 + $0x318] sm:$0xff]
        %v389 = vld [vmem:[%s201 + $0x320] sm:$0xff]
        %v390 = vld [vmem:[%s201 + $0x328] sm:$0xff]
        %v391 = vld [vmem:[%s201 + $0x330] sm:$0xff]
        %v392 = vld [vmem:[%s201 + $0x338] sm:$0xff]
        %v393 = vld [vmem:[%s201 + $0x340] sm:$0xff]
        %v394 = vld [vmem:[%s201 + $0x348] sm:$0xff]
        %v395 = vld [vmem:[%s201 + $0x350] sm:$0xff]
        %v396 = vld [vmem:[%s201 + $0x358] sm:$0xff]
        %v397 = vld [vmem:[%s201 + $0x360] sm:$0xff]
        %v398 = vld [vmem:[%s201 + $0x368] sm:$0xff]
        %v399 = vld [vmem:[%s201 + $0x370] sm:$0xff]
        %v400 = vld [vmem:[%s201 + $0x378] sm:$0xff]
        %v401 = vld [vmem:[%s201 + $0x380] sm:$0xff]
        %v402 = vld [vmem:[%s201 + $0x388] sm:$0xff]
        %v403 = vld [vmem:[%s201 + $0x390] sm:$0xff]
        %v404 = vld [vmem:[%s201 + $0x398] sm:$0xff]
        %v405 = vld [vmem:[%s201 + $0x3a0] sm:$0xff]
        %v406 = vld [vmem:[%s201 + $0x3a8] sm:$0xff]
        %v407 = vld [vmem:[%s201 + $0x3b0] sm:$0xff]
        %v408 = vld [vmem:[%s201 + $0x3b8] sm:$0xff]
        %v409 = vld [vmem:[%s201 + $0x3c0] sm:$0xff]
        %v410 = vld [vmem:[%s201 + $0x3c8] sm:$0xff]
        %v411 = vld [vmem:[%s201 + $0x3d0] sm:$0xff]
        %v412 = vld [vmem:[%s201 + $0x3d8] sm:$0xff]
        %v413 = vld [vmem:[%s201 + $0x3e0] sm:$0xff]
        %v414 = vld [vmem:[%s201 + $0x3e8] sm:$0xff]
        %v415 = vld [vmem:[%s201 + $0x3f0] sm:$0xff]
        %v416 = vld [vmem:[%s201 + $0x3f8] sm:$0xff]
        %v417 = vld [vmem:[%s201 + $0x400] sm:$0xff]
        %v418 = vld [vmem:[%s201 + $0x408] sm:$0xff]
        %v419 = vld [vmem:[%s201 + $0x410] sm:$0xff]
        %v420 = vld [vmem:[%s201 + $0x418] sm:$0xff]
        %v421 = vld [vmem:[%s201 + $0x420] sm:$0xff]
        %v422 = vld [vmem:[%s201 + $0x428] sm:$0xff]
        %v423 = vld [vmem:[%s201 + $0x430] sm:$0xff]
        %v424 = vld [vmem:[%s201 + $0x438] sm:$0xff]
        %v425 = vld [vmem:[%s201 + $0x440] sm:$0xff]
        %v426 = vld [vmem:[%s201 + $0x448] sm:$0xff]
        %v427 = vld [vmem:[%s201 + $0x450] sm:$0xff]
        %v428 = vld [vmem:[%s201 + $0x458] sm:$0xff]
        %v429 = vld [vmem:[%s201 + $0x460] sm:$0xff]
        %v430 = vld [vmem:[%s201 + $0x468] sm:$0xff]
        %v431 = vld [vmem:[%s201 + $0x470] sm:$0xff]
        %v432 = vld [vmem:[%s201 + $0x478] sm:$0xff]
        %v433 = vld [vmem:[%s201 + $0x480] sm:$0xff]
        %v434 = vld [vmem:[%s201 + $0x488] sm:$0xff]
        %v435 = vld [vmem:[%s201 + $0x490] sm:$0xff]
        %v436 = vld [vmem:[%s201 + $0x498] sm:$0xff]
        %v437 = vld [vmem:[%s201 + $0x4a0] sm:$0xff]
        %v438 = vld [vmem:[%s201 + $0x4a8] sm:$0xff]
        %v439 = vld [vmem:[%s201 + $0x4b0] sm:$0xff]
        %v440 = vld [vmem:[%s201 + $0x4b8] sm:$0xff]
        %v441 = vld [vmem:[%s201 + $0x4c0] sm:$0xff]
        %v442 = vld [vmem:[%s201 + $0x4c8] sm:$0xff]
        %v443 = vld [vmem:[%s201 + $0x4d0] sm:$0xff]
        %v444 = vld [vmem:[%s201 + $0x4d8] sm:$0xff]
        %v445 = vld [vmem:[%s201 + $0x4e0] sm:$0xff]
        %v446 = vld [vmem:[%s201 + $0x4e8] sm:$0xff]
        %v447 = vld [vmem:[%s201 + $0x4f0] sm:$0xff]
        %v448 = vld [vmem:[%s201 + $0x4f8] sm:$0xff]
        %v449 = vld [vmem:[%s201 + $0x500] sm:$0xff]
        %v450 = vld [vmem:[%s201 + $0x508] sm:$0xff]
        %v451 = vld [vmem:[%s201 + $0x510] sm:$0xff]
        %v452 = vld [vmem:[%s201 + $0x518] sm:$0xff]
        %v453 = vld [vmem:[%s201 + $0x520] sm:$0xff]
        %v454 = vld [vmem:[%s201 + $0x528] sm:$0xff]
        %v455 = vld [vmem:[%s201 + $0x530] sm:$0xff]
        %v456 = vld [vmem:[%s201 + $0x538] sm:$0xff]
        %v457 = vld [vmem:[%s201 + $0x540] sm:$0xff]
        %v458 = vld [vmem:[%s201 + $0x548] sm:$0xff]
        %v459 = vld [vmem:[%s201 + $0x550] sm:$0xff]
        %v460 = vld [vmem:[%s201 + $0x558] sm:$0xff]
        %v461 = vld [vmem:[%s201 + $0x560] sm:$0xff]
        %v462 = vld [vmem:[%s201 + $0x568] sm:$0xff]
        %v463 = vld [vmem:[%s201 + $0x570] sm:$0xff]
        %v464 = vld [vmem:[%s201 + $0x578] sm:$0xff]
        %v465 = vld [vmem:[%s201 + $0x580] sm:$0xff]
        %v466 = vld [vmem:[%s201 + $0x588] sm:$0xff]
        %v467 = vld [vmem:[%s201 + $0x590] sm:$0xff]
        %v468 = vld [vmem:[%s201 + $0x598] sm:$0xff]
        %v469 = vld [vmem:[%s201 + $0x5a0] sm:$0xff]
        %v470 = vld [vmem:[%s201 + $0x5a8] sm:$0xff]
        %v471 = vld [vmem:[%s201 + $0x5b0] sm:$0xff]
        %v472 = vld [vmem:[%s201 + $0x5b8] sm:$0xff]
        %v473 = vld [vmem:[%s201 + $0x5c0] sm:$0xff]
        %v474 = vld [vmem:[%s201 + $0x5c8] sm:$0xff]
        %v475 = vld [vmem:[%s201 + $0x5d0] sm:$0xff]
        %v476 = vld [vmem:[%s201 + $0x5d8] sm:$0xff]
        %v477 = vld [vmem:[%s201 + $0x5e0] sm:$0xff]
        %v478 = vld [vmem:[%s201 + $0x5e8] sm:$0xff]
        %v479 = vld [vmem:[%s201 + $0x5f0] sm:$0xff]
        %v480 = vld [vmem:[%s201 + $0x5f8] sm:$0xff]
        %v481 = vld [vmem:[%s201 + $0x600] sm:$0x3]
        %v482 = vld [vmem:[%s201 + $0x608] sm:$0x3]
        %v483 = vld [vmem:[%s201 + $0x610] sm:$0x3]
        %v484 = vld [vmem:[%s201 + $0x618] sm:$0x3]
        %v485 = vld [vmem:[%s201 + $0x620] sm:$0x3]
        %v486 = vld [vmem:[%s201 + $0x628] sm:$0x3]
        %v487 = vld [vmem:[%s201 + $0x630] sm:$0x3]
        %v488 = vld [vmem:[%s201 + $0x638] sm:$0x3]
        %v489 = vld [vmem:[%s201 + $0x640] sm:$0x3]
        %v490 = vld [vmem:[%s201 + $0x648] sm:$0x3]
        %v491 = vld [vmem:[%s201 + $0x650] sm:$0x3]
        %v492 = vld [vmem:[%s201 + $0x658] sm:$0x3]
        %v493 = vld [vmem:[%s201 + $0x660] sm:$0x3]
        %v494 = vld [vmem:[%s201 + $0x668] sm:$0x3]
        %v495 = vld [vmem:[%s201 + $0x670] sm:$0x3]
        %v496 = vld [vmem:[%s201 + $0x678] sm:$0x3]
        %v497 = vld [vmem:[%s201 + $0x680] sm:$0x3]
        %v498 = vld [vmem:[%s201 + $0x688] sm:$0x3]
        %v499 = vld [vmem:[%s201 + $0x690] sm:$0x3]
        %v500 = vld [vmem:[%s201 + $0x698] sm:$0x3]
        %v501 = vld [vmem:[%s201 + $0x6a0] sm:$0x3]
        %v502 = vld [vmem:[%s201 + $0x6a8] sm:$0x3]
        %v503 = vld [vmem:[%s201 + $0x6b0] sm:$0x3]
        %v504 = vld [vmem:[%s201 + $0x6b8] sm:$0x3]
        %v505 = vld [vmem:[%s201 + $0x6c0] sm:$0x3]
        %v506 = vld [vmem:[%s201 + $0x6c8] sm:$0x3]
        %v507 = vld [vmem:[%s201 + $0x6d0] sm:$0x3]
        %v508 = vld [vmem:[%s201 + $0x6d8] sm:$0x3]
        %v509 = vld [vmem:[%s201 + $0x6e0] sm:$0x3]
        %v510 = vld [vmem:[%s201 + $0x6e8] sm:$0x3]
        %v511 = vld [vmem:[%s201 + $0x6f0] sm:$0x3]
        %v512 = vld [vmem:[%s201 + $0x6f8] sm:$0x3]
        %v513 = vld [vmem:[%s201 + $0x700] sm:$0x3]
        %v514 = vld [vmem:[%s201 + $0x708] sm:$0x3]
        %v515 = vld [vmem:[%s201 + $0x710] sm:$0x3]
        %v516 = vld [vmem:[%s201 + $0x718] sm:$0x3]
        %v517 = vld [vmem:[%s201 + $0x720] sm:$0x3]
        %v518 = vld [vmem:[%s201 + $0x728] sm:$0x3]
        %v519 = vld [vmem:[%s201 + $0x730] sm:$0x3]
        %v520 = vld [vmem:[%s201 + $0x738] sm:$0x3]
        %v521 = vld [vmem:[%s201 + $0x740] sm:$0x3]
        %v522 = vld [vmem:[%s201 + $0x748] sm:$0x3]
        %v523 = vld [vmem:[%s201 + $0x750] sm:$0x3]
        %v524 = vld [vmem:[%s201 + $0x758] sm:$0x3]
        %v525 = vld [vmem:[%s201 + $0x760] sm:$0x3]
        %v526 = vld [vmem:[%s201 + $0x768] sm:$0x3]
        %v527 = vld [vmem:[%s201 + $0x770] sm:$0x3]
        %v528 = vld [vmem:[%s201 + $0x778] sm:$0x3]
        %v529 = vld [vmem:[%s201 + $0x780] sm:$0x3]
        %v530 = vld [vmem:[%s201 + $0x788] sm:$0x3]
        %v531 = vld [vmem:[%s201 + $0x790] sm:$0x3]
        %v532 = vld [vmem:[%s201 + $0x798] sm:$0x3]
        %v533 = vld [vmem:[%s201 + $0x7a0] sm:$0x3]
        %v534 = vld [vmem:[%s201 + $0x7a8] sm:$0x3]
        %v535 = vld [vmem:[%s201 + $0x7b0] sm:$0x3]
        %v536 = vld [vmem:[%s201 + $0x7b8] sm:$0x3]
        %v537 = vld [vmem:[%s201 + $0x7c0] sm:$0x3]
        %v538 = vld [vmem:[%s201 + $0x7c8] sm:$0x3]
        %v539 = vld [vmem:[%s201 + $0x7d0] sm:$0x3]
        %v540 = vld [vmem:[%s201 + $0x7d8] sm:$0x3]
        %v541 = vld [vmem:[%s201 + $0x7e0] sm:$0x3]
        %v542 = vld [vmem:[%s201 + $0x7e8] sm:$0x3]
        %v543 = vld [vmem:[%s201 + $0x7f0] sm:$0x3]
        %v544 = vld [vmem:[%s201 + $0x7f8] sm:$0x3]
        %v545 = vld [vmem:[%s201 + $0x800] sm:$0x3]
        %v546 = vld [vmem:[%s201 + $0x808] sm:$0x3]
        %v547 = vld [vmem:[%s201 + $0x810] sm:$0x3]
        %v548 = vld [vmem:[%s201 + $0x818] sm:$0x3]
        %v549 = vld [vmem:[%s201 + $0x820] sm:$0x3]
        %v550 = vld [vmem:[%s201 + $0x828] sm:$0x3]
        %v551 = vld [vmem:[%s201 + $0x830] sm:$0x3]
        %v552 = vld [vmem:[%s201 + $0x838] sm:$0x3]
        %v553 = vld [vmem:[%s201 + $0x840] sm:$0x3]
        %v554 = vld [vmem:[%s201 + $0x848] sm:$0x3]
        %v555 = vld [vmem:[%s201 + $0x850] sm:$0x3]
        %v556 = vld [vmem:[%s201 + $0x858] sm:$0x3]
        %v557 = vld [vmem:[%s201 + $0x860] sm:$0x3]
        %v558 = vld [vmem:[%s201 + $0x868] sm:$0x3]
        %v559 = vld [vmem:[%s201 + $0x870] sm:$0x3]
        %v560 = vld [vmem:[%s201 + $0x878] sm:$0x3]
        %v561 = vld [vmem:[%s201 + $0x880] sm:$0x3]
        %v562 = vld [vmem:[%s201 + $0x888] sm:$0x3]
        %v563 = vld [vmem:[%s201 + $0x890] sm:$0x3]
        %v564 = vld [vmem:[%s201 + $0x898] sm:$0x3]
        %v565 = vld [vmem:[%s201 + $0x8a0] sm:$0x3]
        %v566 = vld [vmem:[%s201 + $0x8a8] sm:$0x3]
        %v567 = vld [vmem:[%s201 + $0x8b0] sm:$0x3]
        %v568 = vld [vmem:[%s201 + $0x8b8] sm:$0x3]
        %v569 = vld [vmem:[%s201 + $0x8c0] sm:$0x3]
        %v570 = vld [vmem:[%s201 + $0x8c8] sm:$0x3]
        %v571 = vld [vmem:[%s201 + $0x8d0] sm:$0x3]
        %v572 = vld [vmem:[%s201 + $0x8d8] sm:$0x3]
        %v573 = vld [vmem:[%s201 + $0x8e0] sm:$0x3]
        %v574 = vld [vmem:[%s201 + $0x8e8] sm:$0x3]
        %v575 = vld [vmem:[%s201 + $0x8f0] sm:$0x3]
        %v576 = vld [vmem:[%s201 + $0x8f8] sm:$0x3]
        %v577 = vld [vmem:[%s201 + $0x900] sm:$0x3]
        %v578 = vld [vmem:[%s201 + $0x908] sm:$0x3]
        %v579 = vld [vmem:[%s201 + $0x910] sm:$0x3]
        %v580 = vld [vmem:[%s201 + $0x918] sm:$0x3]
        %v581 = vld [vmem:[%s201 + $0x920] sm:$0x3]
        %v582 = vld [vmem:[%s201 + $0x928] sm:$0x3]
        %v583 = vld [vmem:[%s201 + $0x930] sm:$0x3]
        %v584 = vld [vmem:[%s201 + $0x938] sm:$0x3]
        %v585 = vld [vmem:[%s201 + $0x940] sm:$0x3]
        %v586 = vld [vmem:[%s201 + $0x948] sm:$0x3]
        %v587 = vld [vmem:[%s201 + $0x950] sm:$0x3]
        %v588 = vld [vmem:[%s201 + $0x958] sm:$0x3]
        %v589 = vld [vmem:[%s201 + $0x960] sm:$0x3]
        %v590 = vld [vmem:[%s201 + $0x968] sm:$0x3]
        %v591 = vld [vmem:[%s201 + $0x970] sm:$0x3]
        %v592 = vld [vmem:[%s201 + $0x978] sm:$0x3]
        %v593 = vld [vmem:[%s201 + $0x980] sm:$0x3]
        %v594 = vld [vmem:[%s201 + $0x988] sm:$0x3]
        %v595 = vld [vmem:[%s201 + $0x990] sm:$0x3]
        %v596 = vld [vmem:[%s201 + $0x998] sm:$0x3]
        %v597 = vld [vmem:[%s201 + $0x9a0] sm:$0x3]
        %v598 = vld [vmem:[%s201 + $0x9a8] sm:$0x3]
        %v599 = vld [vmem:[%s201 + $0x9b0] sm:$0x3]
        %v600 = vld [vmem:[%s201 + $0x9b8] sm:$0x3]
        %v601 = vld [vmem:[%s201 + $0x9c0] sm:$0x3]
        %v602 = vld [vmem:[%s201 + $0x9c8] sm:$0x3]
        %v603 = vld [vmem:[%s201 + $0x9d0] sm:$0x3]
        %v604 = vld [vmem:[%s201 + $0x9d8] sm:$0x3]
        %v605 = vld [vmem:[%s201 + $0x9e0] sm:$0x3]
        %v606 = vld [vmem:[%s201 + $0x9e8] sm:$0x3]
        %v607 = vld [vmem:[%s201 + $0x9f0] sm:$0x3]
        %v608 = vld [vmem:[%s201 + $0x9f8] sm:$0x3]
        %v609 = vld [vmem:[%s201 + $0xa00] sm:$0x3]
        %v610 = vld [vmem:[%s201 + $0xa08] sm:$0x3]
        %v611 = vld [vmem:[%s201 + $0xa10] sm:$0x3]
        %v612 = vld [vmem:[%s201 + $0xa18] sm:$0x3]
        %v613 = vld [vmem:[%s201 + $0xa20] sm:$0x3]
        %v614 = vld [vmem:[%s201 + $0xa28] sm:$0x3]
        %v615 = vld [vmem:[%s201 + $0xa30] sm:$0x3]
        %v616 = vld [vmem:[%s201 + $0xa38] sm:$0x3]
        %v617 = vld [vmem:[%s201 + $0xa40] sm:$0x3]
        %v618 = vld [vmem:[%s201 + $0xa48] sm:$0x3]
        %v619 = vld [vmem:[%s201 + $0xa50] sm:$0x3]
        %v620 = vld [vmem:[%s201 + $0xa58] sm:$0x3]
        %v621 = vld [vmem:[%s201 + $0xa60] sm:$0x3]
        %v622 = vld [vmem:[%s201 + $0xa68] sm:$0x3]
        %v623 = vld [vmem:[%s201 + $0xa70] sm:$0x3]
        %v624 = vld [vmem:[%s201 + $0xa78] sm:$0x3]
        %v625 = vld [vmem:[%s201 + $0xa80] sm:$0x3]
        %v626 = vld [vmem:[%s201 + $0xa88] sm:$0x3]
        %v627 = vld [vmem:[%s201 + $0xa90] sm:$0x3]
        %v628 = vld [vmem:[%s201 + $0xa98] sm:$0x3]
        %v629 = vld [vmem:[%s201 + $0xaa0] sm:$0x3]
        %v630 = vld [vmem:[%s201 + $0xaa8] sm:$0x3]
        %v631 = vld [vmem:[%s201 + $0xab0] sm:$0x3]
        %v632 = vld [vmem:[%s201 + $0xab8] sm:$0x3]
        %v633 = vld [vmem:[%s201 + $0xac0] sm:$0x3]
        %v634 = vld [vmem:[%s201 + $0xac8] sm:$0x3]
        %v635 = vld [vmem:[%s201 + $0xad0] sm:$0x3]
        %v636 = vld [vmem:[%s201 + $0xad8] sm:$0x3]
        %v637 = vld [vmem:[%s201 + $0xae0] sm:$0x3]
        %v638 = vld [vmem:[%s201 + $0xae8] sm:$0x3]
        %v639 = vld [vmem:[%s201 + $0xaf0] sm:$0x3]
        %v640 = vld [vmem:[%s201 + $0xaf8] sm:$0x3]
        %v641 = vld [vmem:[%s201 + $0xb00] sm:$0x3]
        %v642 = vld [vmem:[%s201 + $0xb08] sm:$0x3]
        %v643 = vld [vmem:[%s201 + $0xb10] sm:$0x3]
        %v644 = vld [vmem:[%s201 + $0xb18] sm:$0x3]
        %v645 = vld [vmem:[%s201 + $0xb20] sm:$0x3]
        %v646 = vld [vmem:[%s201 + $0xb28] sm:$0x3]
        %v647 = vld [vmem:[%s201 + $0xb30] sm:$0x3]
        %v648 = vld [vmem:[%s201 + $0xb38] sm:$0x3]
        %v649 = vld [vmem:[%s201 + $0xb40] sm:$0x3]
        %v650 = vld [vmem:[%s201 + $0xb48] sm:$0x3]
        %v651 = vld [vmem:[%s201 + $0xb50] sm:$0x3]
        %v652 = vld [vmem:[%s201 + $0xb58] sm:$0x3]
        %v653 = vld [vmem:[%s201 + $0xb60] sm:$0x3]
        %v654 = vld [vmem:[%s201 + $0xb68] sm:$0x3]
        %v655 = vld [vmem:[%s201 + $0xb70] sm:$0x3]
        %v656 = vld [vmem:[%s201 + $0xb78] sm:$0x3]
        %v657 = vld [vmem:[%s201 + $0xb80] sm:$0x3]
        %v658 = vld [vmem:[%s201 + $0xb88] sm:$0x3]
        %v659 = vld [vmem:[%s201 + $0xb90] sm:$0x3]
        %v660 = vld [vmem:[%s201 + $0xb98] sm:$0x3]
        %v661 = vld [vmem:[%s201 + $0xba0] sm:$0x3]
        %v662 = vld [vmem:[%s201 + $0xba8] sm:$0x3]
        %v663 = vld [vmem:[%s201 + $0xbb0] sm:$0x3]
        %v664 = vld [vmem:[%s201 + $0xbb8] sm:$0x3]
        %v665 = vld [vmem:[%s201 + $0xbc0] sm:$0x3]
        %v666 = vld [vmem:[%s201 + $0xbc8] sm:$0x3]
        %v667 = vld [vmem:[%s201 + $0xbd0] sm:$0x3]
        %v668 = vld [vmem:[%s201 + $0xbd8] sm:$0x3]
        %v669 = vld [vmem:[%s201 + $0xbe0] sm:$0x3]
        %v670 = vld [vmem:[%s201 + $0xbe8] sm:$0x3]
        %v671 = vld [vmem:[%s201 + $0xbf0] sm:$0x3]
        %v672 = vld [vmem:[%s201 + $0xbf8] sm:$0x3]
        %721 = vst [vmem:[#allocation1] ss:$4 sm:$0xff] %v241
        %s722 = scalar_lea.vmem [#allocation1], 32
        %723 = vst [vmem:[%s722] ss:$4 sm:$0xff] %v242
        %v724 = vld.sshfl [vmem:[#allocation1] sm:$0xff pattern:$0x73625140]
        %v725 = vld.sshfl [vmem:[#allocation1 + $0x8] sm:$0xff pattern:$0x73625140]
        %v726 = vld.sshfl [vmem:[#allocation1 + $0x10] sm:$0xff pattern:$0x73625140]
        %v727 = vld.sshfl [vmem:[#allocation1 + $0x18] sm:$0xff pattern:$0x73625140]
        %v728 = vld.sshfl [vmem:[#allocation1 + $0x20] sm:$0xff pattern:$0x73625140]
        %v729 = vld.sshfl [vmem:[#allocation1 + $0x28] sm:$0xff pattern:$0x73625140]
        %v730 = vld.sshfl [vmem:[#allocation1 + $0x30] sm:$0xff pattern:$0x73625140]
        %v731 = vld.sshfl [vmem:[#allocation1 + $0x38] sm:$0xff pattern:$0x73625140]
        %732 = vst [vmem:[#allocation1] ss:$4 sm:$0xff] %v243
        %733 = vst [vmem:[%s722] ss:$4 sm:$0xff] %v244
        %v734 = vld.sshfl [vmem:[#allocation1] sm:$0xff pattern:$0x73625140]
        %v735 = vld.sshfl [vmem:[#allocation1 + $0x8] sm:$0xff pattern:$0x73625140]
        %v736 = vld.sshfl [vmem:[#allocation1 + $0x10] sm:$0xff pattern:$0x73625140]
        %v737 = vld.sshfl [vmem:[#allocation1 + $0x18] sm:$0xff pattern:$0x73625140]
        %v738 = vld.sshfl [vmem:[#allocation1 + $0x20] sm:$0xff pattern:$0x73625140]
        %v739 = vld.sshfl [vmem:[#allocation1 + $0x28] sm:$0xff pattern:$0x73625140]
        %v740 = vld.sshfl [vmem:[#allocation1 + $0x30] sm:$0xff pattern:$0x73625140]
        %v741 = vld.sshfl [vmem:[#allocation1 + $0x38] sm:$0xff pattern:$0x73625140]
        %742 = vst [vmem:[#allocation1] ss:$4 sm:$0xff] %v245
        %743 = vst [vmem:[%s722] ss:$4 sm:$0xff] %v246
        %v744 = vld.sshfl [vmem:[#allocation1] sm:$0xff pattern:$0x73625140]
        %v745 = vld.sshfl [vmem:[#allocation1 + $0x8] sm:$0xff pattern:$0x73625140]
        %v746 = vld.sshfl [vmem:[#allocation1 + $0x10] sm:$0xff pattern:$0x73625140]
        %v747 = vld.sshfl [vmem:[#allocation1 + $0x18] sm:$0xff pattern:$0x73625140]
        %v748 = vld.sshfl [vmem:[#allocation1 + $0x20] sm:$0xff pattern:$0x73625140]
        %v749 = vld.sshfl [vmem:[#allocation1 + $0x28] sm:$0xff pattern:$0x73625140]
        %v750 = vld.sshfl [vmem:[#allocation1 + $0x30] sm:$0xff pattern:$0x73625140]
        %v751 = vld.sshfl [vmem:[#allocation1 + $0x38] sm:$0xff pattern:$0x73625140]
        %752 = vst [vmem:[#allocation1] ss:$4 sm:$0xff] %v247
        %753 = vst [vmem:[%s722] ss:$4 sm:$0xff] %v248
        %v754 = vld.sshfl [vmem:[#allocation1] sm:$0xff pattern:$0x73625140]
        %v755 = vld.sshfl [vmem:[#allocation1 + $0x8] sm:$0xff pattern:$0x73625140]
        %v756 = vld.sshfl [vmem:[#allocation1 + $0x10] sm:$0xff pattern:$0x73625140]
        %v757 = vld.sshfl [vmem:[#allocation1 + $0x18] sm:$0xff pattern:$0x73625140]
        %v758 = vld.sshfl [vmem:[#allocation1 + $0x20] sm:$0xff pattern:$0x73625140]
        %v759 = vld.sshfl [vmem:[#allocation1 + $0x28] sm:$0xff pattern:$0x73625140]
        %v760 = vld.sshfl [vmem:[#allocation1 + $0x30] sm:$0xff pattern:$0x73625140]
        %v761 = vld.sshfl [vmem:[#allocation1 + $0x38] sm:$0xff pattern:$0x73625140]
        %762 = vst [vmem:[#allocation1] ss:$4 sm:$0xff] %v249
        %763 = vst [vmem:[%s722] ss:$4 sm:$0xff] %v250
        %v764 = vld.sshfl [vmem:[#allocation1] sm:$0xff pattern:$0x73625140]
        %v765 = vld.sshfl [vmem:[#allocation1 + $0x8] sm:$0xff pattern:$0x73625140]
        %v766 = vld.sshfl [vmem:[#allocation1 + $0x10] sm:$0xff pattern:$0x73625140]
        %v767 = vld.sshfl [vmem:[#allocation1 + $0x18] sm:$0xff pattern:$0x73625140]
        %v768 = vld.sshfl [vmem:[#allocation1 + $0x20] sm:$0xff pattern:$0x73625140]
        %v769 = vld.sshfl [vmem:[#allocation1 + $0x28] sm:$0xff pattern:$0x73625140]
        %v770 = vld.sshfl [vmem:[#allocation1 + $0x30] sm:$0xff pattern:$0x73625140]
        %v771 = vld.sshfl [vmem:[#allocation1 + $0x38] sm:$0xff pattern:$0x73625140]
        %772 = vst [vmem:[#allocation1] ss:$4 sm:$0xff] %v251
        %773 = vst [vmem:[%s722] ss:$4 sm:$0xff] %v252
        %v774 = vld.sshfl [vmem:[#allocation1] sm:$0xff pattern:$0x73625140]
        %v775 = vld.sshfl [vmem:[#allocation1 + $0x8] sm:$0xff pattern:$0x73625140]
        %v776 = vld.sshfl [vmem:[#allocation1 + $0x10] sm:$0xff pattern:$0x73625140]
        %v777 = vld.sshfl [vmem:[#allocation1 + $0x18] sm:$0xff pattern:$0x73625140]
        %v778 = vld.sshfl [vmem:[#allocation1 + $0x20] sm:$0xff pattern:$0x73625140]
        %v779 = vld.sshfl [vmem:[#allocation1 + $0x28] sm:$0xff pattern:$0x73625140]
        %v780 = vld.sshfl [vmem:[#allocation1 + $0x30] sm:$0xff pattern:$0x73625140]
        %v781 = vld.sshfl [vmem:[#allocation1 + $0x38] sm:$0xff pattern:$0x73625140]
        %782 = vst [vmem:[#allocation1] ss:$4 sm:$0xff] %v253
        %783 = vst [vmem:[%s722] ss:$4 sm:$0xff] %v254
        %v784 = vld.sshfl [vmem:[#allocation1] sm:$0xff pattern:$0x73625140]
        %v785 = vld.sshfl [vmem:[#allocation1 + $0x8] sm:$0xff pattern:$0x73625140]
        %v786 = vld.sshfl [vmem:[#allocation1 + $0x10] sm:$0xff pattern:$0x73625140]
        %v787 = vld.sshfl [vmem:[#allocation1 + $0x18] sm:$0xff pattern:$0x73625140]
        %v788 = vld.sshfl [vmem:[#allocation1 + $0x20] sm:$0xff pattern:$0x73625140]
        %v789 = vld.sshfl [vmem:[#allocation1 + $0x28] sm:$0xff pattern:$0x73625140]
        %v790 = vld.sshfl [vmem:[#allocation1 + $0x30] sm:$0xff pattern:$0x73625140]
        %v791 = vld.sshfl [vmem:[#allocation1 + $0x38] sm:$0xff pattern:$0x73625140]
        %792 = vst [vmem:[#allocation1] ss:$4 sm:$0xff] %v255
        %793 = vst [vmem:[%s722] ss:$4 sm:$0xff] %v256
        %v794 = vld.sshfl [vmem:[#allocation1] sm:$0xff pattern:$0x73625140]
        %v795 = vld.sshfl [vmem:[#allocation1 + $0x8] sm:$0xff pattern:$0x73625140]
        %v796 = vld.sshfl [vmem:[#allocation1 + $0x10] sm:$0xff pattern:$0x73625140]
        %v797 = vld.sshfl [vmem:[#allocation1 + $0x18] sm:$0xff pattern:$0x73625140]
        %v798 = vld.sshfl [vmem:[#allocation1 + $0x20] sm:$0xff pattern:$0x73625140]
        %v799 = vld.sshfl [vmem:[#allocation1 + $0x28] sm:$0xff pattern:$0x73625140]
        %v800 = vld.sshfl [vmem:[#allocation1 + $0x30] sm:$0xff pattern:$0x73625140]
        %v801 = vld.sshfl [vmem:[#allocation1 + $0x38] sm:$0xff pattern:$0x73625140]
        %802 = vst [vmem:[#allocation1] ss:$4 sm:$0xff] %v257
        %803 = vst [vmem:[%s722] ss:$4 sm:$0xff] %v258
        %v804 = vld.sshfl [vmem:[#allocation1] sm:$0xff pattern:$0x73625140]
        %v805 = vld.sshfl [vmem:[#allocation1 + $0x8] sm:$0xff pattern:$0x73625140]
        %v806 = vld.sshfl [vmem:[#allocation1 + $0x10] sm:$0xff pattern:$0x73625140]
        %v807 = vld.sshfl [vmem:[#allocation1 + $0x18] sm:$0xff pattern:$0x73625140]
        %v808 = vld.sshfl [vmem:[#allocation1 + $0x20] sm:$0xff pattern:$0x73625140]
        %v809 = vld.sshfl [vmem:[#allocation1 + $0x28] sm:$0xff pattern:$0x73625140]
        %v810 = vld.sshfl [vmem:[#allocation1 + $0x30] sm:$0xff pattern:$0x73625140]
        %v811 = vld.sshfl [vmem:[#allocation1 + $0x38] sm:$0xff pattern:$0x73625140]
        %812 = vst [vmem:[#allocation1] ss:$4 sm:$0xff] %v259
        %813 = vst [vmem:[%s722] ss:$4 sm:$0xff] %v260
        %v814 = vld.sshfl [vmem:[#allocation1] sm:$0xff pattern:$0x73625140]
        %v815 = vld.sshfl [vmem:[#allocation1 + $0x8] sm:$0xff pattern:$0x73625140]
        %v816 = vld.sshfl [vmem:[#allocation1 + $0x10] sm:$0xff pattern:$0x73625140]
        %v817 = vld.sshfl [vmem:[#allocation1 + $0x18] sm:$0xff pattern:$0x73625140]
        %v818 = vld.sshfl [vmem:[#allocation1 + $0x20] sm:$0xff pattern:$0x73625140]
        %v819 = vld.sshfl [vmem:[#allocation1 + $0x28] sm:$0xff pattern:$0x73625140]
        %v820 = vld.sshfl [vmem:[#allocation1 + $0x30] sm:$0xff pattern:$0x73625140]
        %v821 = vld.sshfl [vmem:[#allocation1 + $0x38] sm:$0xff pattern:$0x73625140]
        %822 = vst [vmem:[#allocation1] ss:$4 sm:$0xff] %v261
        %823 = vst [vmem:[%s722] ss:$4 sm:$0xff] %v262
        %v824 = vld.sshfl [vmem:[#allocation1] sm:$0xff pattern:$0x73625140]
        %v825 = vld.sshfl [vmem:[#allocation1 + $0x8] sm:$0xff pattern:$0x73625140]
        %v826 = vld.sshfl [vmem:[#allocation1 + $0x10] sm:$0xff pattern:$0x73625140]
        %v827 = vld.sshfl [vmem:[#allocation1 + $0x18] sm:$0xff pattern:$0x73625140]
        %v828 = vld.sshfl [vmem:[#allocation1 + $0x20] sm:$0xff pattern:$0x73625140]
        %v829 = vld.sshfl [vmem:[#allocation1 + $0x28] sm:$0xff pattern:$0x73625140]
        %v830 = vld.sshfl [vmem:[#allocation1 + $0x30] sm:$0xff pattern:$0x73625140]
        %v831 = vld.sshfl [vmem:[#allocation1 + $0x38] sm:$0xff pattern:$0x73625140]
        %832 = vst [vmem:[#allocation1] ss:$4 sm:$0xff] %v263
        %833 = vst [vmem:[%s722] ss:$4 sm:$0xff] %v264
        %v834 = vld.sshfl [vmem:[#allocation1] sm:$0xff pattern:$0x73625140]
        %v835 = vld.sshfl [vmem:[#allocation1 + $0x8] sm:$0xff pattern:$0x73625140]
        %v836 = vld.sshfl [vmem:[#allocation1 + $0x10] sm:$0xff pattern:$0x73625140]
        %v837 = vld.sshfl [vmem:[#allocation1 + $0x18] sm:$0xff pattern:$0x73625140]
        %v838 = vld.sshfl [vmem:[#allocation1 + $0x20] sm:$0xff pattern:$0x73625140]
        %v839 = vld.sshfl [vmem:[#allocation1 + $0x28] sm:$0xff pattern:$0x73625140]
        %v840 = vld.sshfl [vmem:[#allocation1 + $0x30] sm:$0xff pattern:$0x73625140]
        %v841 = vld.sshfl [vmem:[#allocation1 + $0x38] sm:$0xff pattern:$0x73625140]
        %842 = vst [vmem:[#allocation1] ss:$4 sm:$0xff] %v265
        %843 = vst [vmem:[%s722] ss:$4 sm:$0xff] %v266
        %v844 = vld.sshfl [vmem:[#allocation1] sm:$0xff pattern:$0x73625140]
        %v845 = vld.sshfl [vmem:[#allocation1 + $0x8] sm:$0xff pattern:$0x73625140]
        %v846 = vld.sshfl [vmem:[#allocation1 + $0x10] sm:$0xff pattern:$0x73625140]
        %v847 = vld.sshfl [vmem:[#allocation1 + $0x18] sm:$0xff pattern:$0x73625140]
        %v848 = vld.sshfl [vmem:[#allocation1 + $0x20] sm:$0xff pattern:$0x73625140]
        %v849 = vld.sshfl [vmem:[#allocation1 + $0x28] sm:$0xff pattern:$0x73625140]
        %v850 = vld.sshfl [vmem:[#allocation1 + $0x30] sm:$0xff pattern:$0x73625140]
        %v851 = vld.sshfl [vmem:[#allocation1 + $0x38] sm:$0xff pattern:$0x73625140]
        %852 = vst [vmem:[#allocation1] ss:$4 sm:$0xff] %v267
        %853 = vst [vmem:[%s722] ss:$4 sm:$0xff] %v268
        %v854 = vld.sshfl [vmem:[#allocation1] sm:$0xff pattern:$0x73625140]
        %v855 = vld.sshfl [vmem:[#allocation1 + $0x8] sm:$0xff pattern:$0x73625140]
        %v856 = vld.sshfl [vmem:[#allocation1 + $0x10] sm:$0xff pattern:$0x73625140]
        %v857 = vld.sshfl [vmem:[#allocation1 + $0x18] sm:$0xff pattern:$0x73625140]
        %v858 = vld.sshfl [vmem:[#allocation1 + $0x20] sm:$0xff pattern:$0x73625140]
        %v859 = vld.sshfl [vmem:[#allocation1 + $0x28] sm:$0xff pattern:$0x73625140]
        %v860 = vld.sshfl [vmem:[#allocation1 + $0x30] sm:$0xff pattern:$0x73625140]
        %v861 = vld.sshfl [vmem:[#allocation1 + $0x38] sm:$0xff pattern:$0x73625140]
        %862 = vst [vmem:[#allocation1] ss:$4 sm:$0xff] %v269
        %863 = vst [vmem:[%s722] ss:$4 sm:$0xff] %v270
        %v864 = vld.sshfl [vmem:[#allocation1] sm:$0xff pattern:$0x73625140]
        %v865 = vld.sshfl [vmem:[#allocation1 + $0x8] sm:$0xff pattern:$0x73625140]
        %v866 = vld.sshfl [vmem:[#allocation1 + $0x10] sm:$0xff pattern:$0x73625140]
        %v867 = vld.sshfl [vmem:[#allocation1 + $0x18] sm:$0xff pattern:$0x73625140]
        %v868 = vld.sshfl [vmem:[#allocation1 + $0x20] sm:$0xff pattern:$0x73625140]
        %v869 = vld.sshfl [vmem:[#allocation1 + $0x28] sm:$0xff pattern:$0x73625140]
        %v870 = vld.sshfl [vmem:[#allocation1 + $0x30] sm:$0xff pattern:$0x73625140]
        %v871 = vld.sshfl [vmem:[#allocation1 + $0x38] sm:$0xff pattern:$0x73625140]
        %872 = vst [vmem:[#allocation1] ss:$4 sm:$0xff] %v271
        %873 = vst [vmem:[%s722] ss:$4 sm:$0xff] %v272
        %v874 = vld.sshfl [vmem:[#allocation1] sm:$0xff pattern:$0x73625140]
        %v875 = vld.sshfl [vmem:[#allocation1 + $0x8] sm:$0xff pattern:$0x73625140]
        %v876 = vld.sshfl [vmem:[#allocation1 + $0x10] sm:$0xff pattern:$0x73625140]
        %v877 = vld.sshfl [vmem:[#allocation1 + $0x18] sm:$0xff pattern:$0x73625140]
        %v878 = vld.sshfl [vmem:[#allocation1 + $0x20] sm:$0xff pattern:$0x73625140]
        %v879 = vld.sshfl [vmem:[#allocation1 + $0x28] sm:$0xff pattern:$0x73625140]
        %v880 = vld.sshfl [vmem:[#allocation1 + $0x30] sm:$0xff pattern:$0x73625140]
        %v881 = vld.sshfl [vmem:[#allocation1 + $0x38] sm:$0xff pattern:$0x73625140]
        %882 = vst [vmem:[#allocation1] ss:$4 sm:$0xff] %v273
        %883 = vst [vmem:[%s722] ss:$4 sm:$0xff] %v274
        %v884 = vld.sshfl [vmem:[#allocation1] sm:$0xff pattern:$0x73625140]
        %v885 = vld.sshfl [vmem:[#allocation1 + $0x8] sm:$0xff pattern:$0x73625140]
        %v886 = vld.sshfl [vmem:[#allocation1 + $0x10] sm:$0xff pattern:$0x73625140]
        %v887 = vld.sshfl [vmem:[#allocation1 + $0x18] sm:$0xff pattern:$0x73625140]
        %v888 = vld.sshfl [vmem:[#allocation1 + $0x20] sm:$0xff pattern:$0x73625140]
        %v889 = vld.sshfl [vmem:[#allocation1 + $0x28] sm:$0xff pattern:$0x73625140]
        %v890 = vld.sshfl [vmem:[#allocation1 + $0x30] sm:$0xff pattern:$0x73625140]
        %v891 = vld.sshfl [vmem:[#allocation1 + $0x38] sm:$0xff pattern:$0x73625140]
        %892 = vst [vmem:[#allocation1] ss:$4 sm:$0xff] %v275
        %893 = vst [vmem:[%s722] ss:$4 sm:$0xff] %v276
        %v894 = vld.sshfl [vmem:[#allocation1] sm:$0xff pattern:$0x73625140]
        %v895 = vld.sshfl [vmem:[#allocation1 + $0x8] sm:$0xff pattern:$0x73625140]
        %v896 = vld.sshfl [vmem:[#allocation1 + $0x10] sm:$0xff pattern:$0x73625140]
        %v897 = vld.sshfl [vmem:[#allocation1 + $0x18] sm:$0xff pattern:$0x73625140]
        %v898 = vld.sshfl [vmem:[#allocation1 + $0x20] sm:$0xff pattern:$0x73625140]
        %v899 = vld.sshfl [vmem:[#allocation1 + $0x28] sm:$0xff pattern:$0x73625140]
        %v900 = vld.sshfl [vmem:[#allocation1 + $0x30] sm:$0xff pattern:$0x73625140]
        %v901 = vld.sshfl [vmem:[#allocation1 + $0x38] sm:$0xff pattern:$0x73625140]
        %902 = vst [vmem:[#allocation1] ss:$4 sm:$0xff] %v277
        %903 = vst [vmem:[%s722] ss:$4 sm:$0xff] %v278
        %v904 = vld.sshfl [vmem:[#allocation1] sm:$0xff pattern:$0x73625140]
        %v905 = vld.sshfl [vmem:[#allocation1 + $0x8] sm:$0xff pattern:$0x73625140]
        %v906 = vld.sshfl [vmem:[#allocation1 + $0x10] sm:$0xff pattern:$0x73625140]
        %v907 = vld.sshfl [vmem:[#allocation1 + $0x18] sm:$0xff pattern:$0x73625140]
        %v908 = vld.sshfl [vmem:[#allocation1 + $0x20] sm:$0xff pattern:$0x73625140]
        %v909 = vld.sshfl [vmem:[#allocation1 + $0x28] sm:$0xff pattern:$0x73625140]
        %v910 = vld.sshfl [vmem:[#allocation1 + $0x30] sm:$0xff pattern:$0x73625140]
        %v911 = vld.sshfl [vmem:[#allocation1 + $0x38] sm:$0xff pattern:$0x73625140]
        %912 = vst [vmem:[#allocation1] ss:$4 sm:$0xff] %v279
        %913 = vst [vmem:[%s722] ss:$4 sm:$0xff] %v280
        %v914 = vld.sshfl [vmem:[#allocation1] sm:$0xff pattern:$0x73625140]
        %v915 = vld.sshfl [vmem:[#allocation1 + $0x8] sm:$0xff pattern:$0x73625140]
        %v916 = vld.sshfl [vmem:[#allocation1 + $0x10] sm:$0xff pattern:$0x73625140]
        %v917 = vld.sshfl [vmem:[#allocation1 + $0x18] sm:$0xff pattern:$0x73625140]
        %v918 = vld.sshfl [vmem:[#allocation1 + $0x20] sm:$0xff pattern:$0x73625140]
        %v919 = vld.sshfl [vmem:[#allocation1 + $0x28] sm:$0xff pattern:$0x73625140]
        %v920 = vld.sshfl [vmem:[#allocation1 + $0x30] sm:$0xff pattern:$0x73625140]
        %v921 = vld.sshfl [vmem:[#allocation1 + $0x38] sm:$0xff pattern:$0x73625140]
        %922 = vst [vmem:[#allocation1] ss:$4 sm:$0xff] %v281
        %923 = vst [vmem:[%s722] ss:$4 sm:$0xff] %v282
        %v924 = vld.sshfl [vmem:[#allocation1] sm:$0xff pattern:$0x73625140]
        %v925 = vld.sshfl [vmem:[#allocation1 + $0x8] sm:$0xff pattern:$0x73625140]
        %v926 = vld.sshfl [vmem:[#allocation1 + $0x10] sm:$0xff pattern:$0x73625140]
        %v927 = vld.sshfl [vmem:[#allocation1 + $0x18] sm:$0xff pattern:$0x73625140]
        %v928 = vld.sshfl [vmem:[#allocation1 + $0x20] sm:$0xff pattern:$0x73625140]
        %v929 = vld.sshfl [vmem:[#allocation1 + $0x28] sm:$0xff pattern:$0x73625140]
        %v930 = vld.sshfl [vmem:[#allocation1 + $0x30] sm:$0xff pattern:$0x73625140]
        %v931 = vld.sshfl [vmem:[#allocation1 + $0x38] sm:$0xff pattern:$0x73625140]
        %932 = vst [vmem:[#allocation1] ss:$4 sm:$0xff] %v283
        %933 = vst [vmem:[%s722] ss:$4 sm:$0xff] %v284
        %v934 = vld.sshfl [vmem:[#allocation1] sm:$0xff pattern:$0x73625140]
        %v935 = vld.sshfl [vmem:[#allocation1 + $0x8] sm:$0xff pattern:$0x73625140]
        %v936 = vld.sshfl [vmem:[#allocation1 + $0x10] sm:$0xff pattern:$0x73625140]
        %v937 = vld.sshfl [vmem:[#allocation1 + $0x18] sm:$0xff pattern:$0x73625140]
        %v938 = vld.sshfl [vmem:[#allocation1 + $0x20] sm:$0xff pattern:$0x73625140]
        %v939 = vld.sshfl [vmem:[#allocation1 + $0x28] sm:$0xff pattern:$0x73625140]
        %v940 = vld.sshfl [vmem:[#allocation1 + $0x30] sm:$0xff pattern:$0x73625140]
        %v941 = vld.sshfl [vmem:[#allocation1 + $0x38] sm:$0xff pattern:$0x73625140]
        %942 = vst [vmem:[#allocation1] ss:$4 sm:$0xff] %v285
        %943 = vst [vmem:[%s722] ss:$4 sm:$0xff] %v286
        %v944 = vld.sshfl [vmem:[#allocation1] sm:$0xff pattern:$0x73625140]
        %v945 = vld.sshfl [vmem:[#allocation1 + $0x8] sm:$0xff pattern:$0x73625140]
        %v946 = vld.sshfl [vmem:[#allocation1 + $0x10] sm:$0xff pattern:$0x73625140]
        %v947 = vld.sshfl [vmem:[#allocation1 + $0x18] sm:$0xff pattern:$0x73625140]
        %v948 = vld.sshfl [vmem:[#allocation1 + $0x20] sm:$0xff pattern:$0x73625140]
        %v949 = vld.sshfl [vmem:[#allocation1 + $0x28] sm:$0xff pattern:$0x73625140]
        %v950 = vld.sshfl [vmem:[#allocation1 + $0x30] sm:$0xff pattern:$0x73625140]
        %v951 = vld.sshfl [vmem:[#allocation1 + $0x38] sm:$0xff pattern:$0x73625140]
        %952 = vst [vmem:[#allocation1] ss:$4 sm:$0xff] %v287
        %953 = vst [vmem:[%s722] ss:$4 sm:$0xff] %v288
        %v954 = vld.sshfl [vmem:[#allocation1] sm:$0xff pattern:$0x73625140]
        %v955 = vld.sshfl [vmem:[#allocation1 + $0x8] sm:$0xff pattern:$0x73625140]
        %v956 = vld.sshfl [vmem:[#allocation1 + $0x10] sm:$0xff pattern:$0x73625140]
        %v957 = vld.sshfl [vmem:[#allocation1 + $0x18] sm:$0xff pattern:$0x73625140]
        %v958 = vld.sshfl [vmem:[#allocation1 + $0x20] sm:$0xff pattern:$0x73625140]
        %v959 = vld.sshfl [vmem:[#allocation1 + $0x28] sm:$0xff pattern:$0x73625140]
        %v960 = vld.sshfl [vmem:[#allocation1 + $0x30] sm:$0xff pattern:$0x73625140]
        %v961 = vld.sshfl [vmem:[#allocation1 + $0x38] sm:$0xff pattern:$0x73625140]
        %1154 = vmatpush.xpose.msra.mxu0 0.0
        %1155 = vmatpush.xpose.msra.mxu0 0.0
        %1156 = vmatpush.xpose.msra.mxu0 0.0
        %1157 = vmatpush.xpose.msra.mxu0 0.0
        %1158 = vmatpush.xpose.msra.mxu0 0.0
        %1159 = vmatpush.xpose.msra.mxu0 0.0
        %1160 = vmatpush.xpose.msra.mxu0 0.0
        %1161 = vmatpush.xpose.msra.mxu0 0.0
        %1162 = vmatpush.xpose.msra.mxu0 0.0
        %1163 = vmatpush.xpose.msra.mxu0 0.0
        %1164 = vmatpush.xpose.msra.mxu0 0.0
        %1165 = vmatpush.xpose.msra.mxu0 0.0
        %1166 = vmatpush.xpose.msra.mxu0 0.0
        %1167 = vmatpush.xpose.msra.mxu0 0.0
        %1168 = vmatpush.xpose.msra.mxu0 %v481
        %1169 = vmatpush.xpose.msra.mxu0 %v289
        %1170 = vmatmul.f32.gmra.mxu0 %v724
        %v1171 = vpop.f32.mrf.mxu0
        %v1172 = vadd.f32 0.0, %v1171
        %1173 = vdwg.mxu0
        %1174 = vmatpush.xpose.msra.mxu0 0.0
        %1175 = vmatpush.xpose.msra.mxu0 0.0
        %1176 = vmatpush.xpose.msra.mxu0 0.0
        %1177 = vmatpush.xpose.msra.mxu0 0.0
        %1178 = vmatpush.xpose.msra.mxu0 0.0
        %1179 = vmatpush.xpose.msra.mxu0 0.0
        %1180 = vmatpush.xpose.msra.mxu0 0.0
        %1181 = vmatpush.xpose.msra.mxu0 0.0
        %1182 = vmatpush.xpose.msra.mxu0 0.0
        %1183 = vmatpush.xpose.msra.mxu0 0.0
        %1184 = vmatpush.xpose.msra.mxu0 0.0
        %1185 = vmatpush.xpose.msra.mxu0 0.0
        %1186 = vmatpush.xpose.msra.mxu0 0.0
        %1187 = vmatpush.xpose.msra.mxu0 0.0
        %1188 = vmatpush.xpose.msra.mxu0 %v482
        %1189 = vmatpush.xpose.msra.mxu0 %v290
        %1190 = vmatmul.f32.gmra.mxu0 %v725
        %v1191 = vpop.f32.mrf.mxu0
        %v1192 = vadd.f32 %v1172, %v1191
        %1193 = vdwg.mxu0
        %1194 = vmatpush.xpose.msra.mxu0 0.0
        %1195 = vmatpush.xpose.msra.mxu0 0.0
        %1196 = vmatpush.xpose.msra.mxu0 0.0
        %1197 = vmatpush.xpose.msra.mxu0 0.0
        %1198 = vmatpush.xpose.msra.mxu0 0.0
        %1199 = vmatpush.xpose.msra.mxu0 0.0
        %1200 = vmatpush.xpose.msra.mxu0 0.0
        %1201 = vmatpush.xpose.msra.mxu0 0.0
        %1202 = vmatpush.xpose.msra.mxu0 0.0
        %1203 = vmatpush.xpose.msra.mxu0 0.0
        %1204 = vmatpush.xpose.msra.mxu0 0.0
        %1205 = vmatpush.xpose.msra.mxu0 0.0
        %1206 = vmatpush.xpose.msra.mxu0 0.0
        %1207 = vmatpush.xpose.msra.mxu0 0.0
        %1208 = vmatpush.xpose.msra.mxu0 %v483
        %1209 = vmatpush.xpose.msra.mxu0 %v291
        %1210 = vmatmul.f32.gmra.mxu0 %v726
        %v1211 = vpop.f32.mrf.mxu0
        %v1212 = vadd.f32 %v1192, %v1211
        %1213 = vdwg.mxu0
        %1214 = vmatpush.xpose.msra.mxu0 0.0
        %1215 = vmatpush.xpose.msra.mxu0 0.0
        %1216 = vmatpush.xpose.msra.mxu0 0.0
        %1217 = vmatpush.xpose.msra.mxu0 0.0
        %1218 = vmatpush.xpose.msra.mxu0 0.0
        %1219 = vmatpush.xpose.msra.mxu0 0.0
        %1220 = vmatpush.xpose.msra.mxu0 0.0
        %1221 = vmatpush.xpose.msra.mxu0 0.0
        %1222 = vmatpush.xpose.msra.mxu0 0.0
        %1223 = vmatpush.xpose.msra.mxu0 0.0
        %1224 = vmatpush.xpose.msra.mxu0 0.0
        %1225 = vmatpush.xpose.msra.mxu0 0.0
        %1226 = vmatpush.xpose.msra.mxu0 0.0
        %1227 = vmatpush.xpose.msra.mxu0 0.0
        %1228 = vmatpush.xpose.msra.mxu0 %v484
        %1229 = vmatpush.xpose.msra.mxu0 %v292
        %1230 = vmatmul.f32.gmra.mxu0 %v727
        %v1231 = vpop.f32.mrf.mxu0
        %v1232 = vadd.f32 %v1212, %v1231
        %1233 = vdwg.mxu0
        %1234 = vmatpush.xpose.msra.mxu0 0.0
        %1235 = vmatpush.xpose.msra.mxu0 0.0
        %1236 = vmatpush.xpose.msra.mxu0 0.0
        %1237 = vmatpush.xpose.msra.mxu0 0.0
        %1238 = vmatpush.xpose.msra.mxu0 0.0
        %1239 = vmatpush.xpose.msra.mxu0 0.0
        %1240 = vmatpush.xpose.msra.mxu0 0.0
        %1241 = vmatpush.xpose.msra.mxu0 0.0
        %1242 = vmatpush.xpose.msra.mxu0 0.0
        %1243 = vmatpush.xpose.msra.mxu0 0.0
        %1244 = vmatpush.xpose.msra.mxu0 0.0
        %1245 = vmatpush.xpose.msra.mxu0 0.0
        %1246 = vmatpush.xpose.msra.mxu0 0.0
        %1247 = vmatpush.xpose.msra.mxu0 0.0
        %1248 = vmatpush.xpose.msra.mxu0 %v485
        %1249 = vmatpush.xpose.msra.mxu0 %v293
        %1250 = vmatmul.f32.gmra.mxu0 %v728
        %v1251 = vpop.f32.mrf.mxu0
        %v1252 = vadd.f32 %v1232, %v1251
        %1253 = vdwg.mxu0
        %1254 = vmatpush.xpose.msra.mxu0 0.0
        %1255 = vmatpush.xpose.msra.mxu0 0.0
        %1256 = vmatpush.xpose.msra.mxu0 0.0
        %1257 = vmatpush.xpose.msra.mxu0 0.0
        %1258 = vmatpush.xpose.msra.mxu0 0.0
        %1259 = vmatpush.xpose.msra.mxu0 0.0
        %1260 = vmatpush.xpose.msra.mxu0 0.0
        %1261 = vmatpush.xpose.msra.mxu0 0.0
        %1262 = vmatpush.xpose.msra.mxu0 0.0
        %1263 = vmatpush.xpose.msra.mxu0 0.0
        %1264 = vmatpush.xpose.msra.mxu0 0.0
        %1265 = vmatpush.xpose.msra.mxu0 0.0
        %1266 = vmatpush.xpose.msra.mxu0 0.0
        %1267 = vmatpush.xpose.msra.mxu0 0.0
        %1268 = vmatpush.xpose.msra.mxu0 %v486
        %1269 = vmatpush.xpose.msra.mxu0 %v294
        %1270 = vmatmul.f32.gmra.mxu0 %v729
        %v1271 = vpop.f32.mrf.mxu0
        %v1272 = vadd.f32 %v1252, %v1271
        %1273 = vdwg.mxu0
        %1274 = vmatpush.xpose.msra.mxu0 0.0
        %1275 = vmatpush.xpose.msra.mxu0 0.0
        %1276 = vmatpush.xpose.msra.mxu0 0.0
        %1277 = vmatpush.xpose.msra.mxu0 0.0
        %1278 = vmatpush.xpose.msra.mxu0 0.0
        %1279 = vmatpush.xpose.msra.mxu0 0.0
        %1280 = vmatpush.xpose.msra.mxu0 0.0
        %1281 = vmatpush.xpose.msra.mxu0 0.0
        %1282 = vmatpush.xpose.msra.mxu0 0.0
        %1283 = vmatpush.xpose.msra.mxu0 0.0
        %1284 = vmatpush.xpose.msra.mxu0 0.0
        %1285 = vmatpush.xpose.msra.mxu0 0.0
        %1286 = vmatpush.xpose.msra.mxu0 0.0
        %1287 = vmatpush.xpose.msra.mxu0 0.0
        %1288 = vmatpush.xpose.msra.mxu0 %v487
        %1289 = vmatpush.xpose.msra.mxu0 %v295
        %1290 = vmatmul.f32.gmra.mxu0 %v730
        %v1291 = vpop.f32.mrf.mxu0
        %v1292 = vadd.f32 %v1272, %v1291
        %1293 = vdwg.mxu0
        %1294 = vmatpush.xpose.msra.mxu0 0.0
        %1295 = vmatpush.xpose.msra.mxu0 0.0
        %1296 = vmatpush.xpose.msra.mxu0 0.0
        %1297 = vmatpush.xpose.msra.mxu0 0.0
        %1298 = vmatpush.xpose.msra.mxu0 0.0
        %1299 = vmatpush.xpose.msra.mxu0 0.0
        %1300 = vmatpush.xpose.msra.mxu0 0.0
        %1301 = vmatpush.xpose.msra.mxu0 0.0
        %1302 = vmatpush.xpose.msra.mxu0 0.0
        %1303 = vmatpush.xpose.msra.mxu0 0.0
        %1304 = vmatpush.xpose.msra.mxu0 0.0
        %1305 = vmatpush.xpose.msra.mxu0 0.0
        %1306 = vmatpush.xpose.msra.mxu0 0.0
        %1307 = vmatpush.xpose.msra.mxu0 0.0
        %1308 = vmatpush.xpose.msra.mxu0 %v488
        %1309 = vmatpush.xpose.msra.mxu0 %v296
        %1310 = vmatmul.f32.gmra.mxu0 %v731
        %v1311 = vpop.f32.mrf.mxu0
        %v1312 = vadd.f32 %v1292, %v1311
        %1313 = vdwg.mxu0
        %1314 = vmatpush.xpose.msra.mxu0 0.0
        %1315 = vmatpush.xpose.msra.mxu0 0.0
        %1316 = vmatpush.xpose.msra.mxu0 0.0
        %1317 = vmatpush.xpose.msra.mxu0 0.0
        %1318 = vmatpush.xpose.msra.mxu0 0.0
        %1319 = vmatpush.xpose.msra.mxu0 0.0
        %1320 = vmatpush.xpose.msra.mxu0 0.0
        %1321 = vmatpush.xpose.msra.mxu0 0.0
        %1322 = vmatpush.xpose.msra.mxu0 0.0
        %1323 = vmatpush.xpose.msra.mxu0 0.0
        %1324 = vmatpush.xpose.msra.mxu0 0.0
        %1325 = vmatpush.xpose.msra.mxu0 0.0
        %1326 = vmatpush.xpose.msra.mxu0 0.0
        %1327 = vmatpush.xpose.msra.mxu0 0.0
        %1328 = vmatpush.xpose.msra.mxu0 %v489
        %1329 = vmatpush.xpose.msra.mxu0 %v297
        %1330 = vmatmul.f32.gmra.mxu0 %v734
        %v1331 = vpop.f32.mrf.mxu0
        %v1332 = vadd.f32 %v1312, %v1331
        %1333 = vdwg.mxu0
        %1334 = vmatpush.xpose.msra.mxu0 0.0
        %1335 = vmatpush.xpose.msra.mxu0 0.0
        %1336 = vmatpush.xpose.msra.mxu0 0.0
        %1337 = vmatpush.xpose.msra.mxu0 0.0
        %1338 = vmatpush.xpose.msra.mxu0 0.0
        %1339 = vmatpush.xpose.msra.mxu0 0.0
        %1340 = vmatpush.xpose.msra.mxu0 0.0
        %1341 = vmatpush.xpose.msra.mxu0 0.0
        %1342 = vmatpush.xpose.msra.mxu0 0.0
        %1343 = vmatpush.xpose.msra.mxu0 0.0
        %1344 = vmatpush.xpose.msra.mxu0 0.0
        %1345 = vmatpush.xpose.msra.mxu0 0.0
        %1346 = vmatpush.xpose.msra.mxu0 0.0
        %1347 = vmatpush.xpose.msra.mxu0 0.0
        %1348 = vmatpush.xpose.msra.mxu0 %v490
        %1349 = vmatpush.xpose.msra.mxu0 %v298
        %1350 = vmatmul.f32.gmra.mxu0 %v735
        %v1351 = vpop.f32.mrf.mxu0
        %v1352 = vadd.f32 %v1332, %v1351
        %1353 = vdwg.mxu0
        %1354 = vmatpush.xpose.msra.mxu0 0.0
        %1355 = vmatpush.xpose.msra.mxu0 0.0
        %1356 = vmatpush.xpose.msra.mxu0 0.0
        %1357 = vmatpush.xpose.msra.mxu0 0.0
        %1358 = vmatpush.xpose.msra.mxu0 0.0
        %1359 = vmatpush.xpose.msra.mxu0 0.0
        %1360 = vmatpush.xpose.msra.mxu0 0.0
        %1361 = vmatpush.xpose.msra.mxu0 0.0
        %1362 = vmatpush.xpose.msra.mxu0 0.0
        %1363 = vmatpush.xpose.msra.mxu0 0.0
        %1364 = vmatpush.xpose.msra.mxu0 0.0
        %1365 = vmatpush.xpose.msra.mxu0 0.0
        %1366 = vmatpush.xpose.msra.mxu0 0.0
        %1367 = vmatpush.xpose.msra.mxu0 0.0
        %1368 = vmatpush.xpose.msra.mxu0 %v491
        %1369 = vmatpush.xpose.msra.mxu0 %v299
        %1370 = vmatmul.f32.gmra.mxu0 %v736
        %v1371 = vpop.f32.mrf.mxu0
        %v1372 = vadd.f32 %v1352, %v1371
        %1373 = vdwg.mxu0
        %1374 = vmatpush.xpose.msra.mxu0 0.0
        %1375 = vmatpush.xpose.msra.mxu0 0.0
        %1376 = vmatpush.xpose.msra.mxu0 0.0
        %1377 = vmatpush.xpose.msra.mxu0 0.0
        %1378 = vmatpush.xpose.msra.mxu0 0.0
        %1379 = vmatpush.xpose.msra.mxu0 0.0
        %1380 = vmatpush.xpose.msra.mxu0 0.0
        %1381 = vmatpush.xpose.msra.mxu0 0.0
        %1382 = vmatpush.xpose.msra.mxu0 0.0
        %1383 = vmatpush.xpose.msra.mxu0 0.0
        %1384 = vmatpush.xpose.msra.mxu0 0.0
        %1385 = vmatpush.xpose.msra.mxu0 0.0
        %1386 = vmatpush.xpose.msra.mxu0 0.0
        %1387 = vmatpush.xpose.msra.mxu0 0.0
        %1388 = vmatpush.xpose.msra.mxu0 %v492
        %1389 = vmatpush.xpose.msra.mxu0 %v300
        %1390 = vmatmul.f32.gmra.mxu0 %v737
        %v1391 = vpop.f32.mrf.mxu0
        %v1392 = vadd.f32 %v1372, %v1391
        %1393 = vdwg.mxu0
        %1394 = vmatpush.xpose.msra.mxu0 0.0
        %1395 = vmatpush.xpose.msra.mxu0 0.0
        %1396 = vmatpush.xpose.msra.mxu0 0.0
        %1397 = vmatpush.xpose.msra.mxu0 0.0
        %1398 = vmatpush.xpose.msra.mxu0 0.0
        %1399 = vmatpush.xpose.msra.mxu0 0.0
        %1400 = vmatpush.xpose.msra.mxu0 0.0
        %1401 = vmatpush.xpose.msra.mxu0 0.0
        %1402 = vmatpush.xpose.msra.mxu0 0.0
        %1403 = vmatpush.xpose.msra.mxu0 0.0
        %1404 = vmatpush.xpose.msra.mxu0 0.0
        %1405 = vmatpush.xpose.msra.mxu0 0.0
        %1406 = vmatpush.xpose.msra.mxu0 0.0
        %1407 = vmatpush.xpose.msra.mxu0 0.0
        %1408 = vmatpush.xpose.msra.mxu0 %v493
        %1409 = vmatpush.xpose.msra.mxu0 %v301
        %1410 = vmatmul.f32.gmra.mxu0 %v738
        %v1411 = vpop.f32.mrf.mxu0
        %v1412 = vadd.f32 %v1392, %v1411
        %1413 = vdwg.mxu0
        %1414 = vmatpush.xpose.msra.mxu0 0.0
        %1415 = vmatpush.xpose.msra.mxu0 0.0
        %1416 = vmatpush.xpose.msra.mxu0 0.0
        %1417 = vmatpush.xpose.msra.mxu0 0.0
        %1418 = vmatpush.xpose.msra.mxu0 0.0
        %1419 = vmatpush.xpose.msra.mxu0 0.0
        %1420 = vmatpush.xpose.msra.mxu0 0.0
        %1421 = vmatpush.xpose.msra.mxu0 0.0
        %1422 = vmatpush.xpose.msra.mxu0 0.0
        %1423 = vmatpush.xpose.msra.mxu0 0.0
        %1424 = vmatpush.xpose.msra.mxu0 0.0
        %1425 = vmatpush.xpose.msra.mxu0 0.0
        %1426 = vmatpush.xpose.msra.mxu0 0.0
        %1427 = vmatpush.xpose.msra.mxu0 0.0
        %1428 = vmatpush.xpose.msra.mxu0 %v494
        %1429 = vmatpush.xpose.msra.mxu0 %v302
        %1430 = vmatmul.f32.gmra.mxu0 %v739
        %v1431 = vpop.f32.mrf.mxu0
        %v1432 = vadd.f32 %v1412, %v1431
        %1433 = vdwg.mxu0
        %1434 = vmatpush.xpose.msra.mxu0 0.0
        %1435 = vmatpush.xpose.msra.mxu0 0.0
        %1436 = vmatpush.xpose.msra.mxu0 0.0
        %1437 = vmatpush.xpose.msra.mxu0 0.0
        %1438 = vmatpush.xpose.msra.mxu0 0.0
        %1439 = vmatpush.xpose.msra.mxu0 0.0
        %1440 = vmatpush.xpose.msra.mxu0 0.0
        %1441 = vmatpush.xpose.msra.mxu0 0.0
        %1442 = vmatpush.xpose.msra.mxu0 0.0
        %1443 = vmatpush.xpose.msra.mxu0 0.0
        %1444 = vmatpush.xpose.msra.mxu0 0.0
        %1445 = vmatpush.xpose.msra.mxu0 0.0
        %1446 = vmatpush.xpose.msra.mxu0 0.0
        %1447 = vmatpush.xpose.msra.mxu0 0.0
        %1448 = vmatpush.xpose.msra.mxu0 %v495
        %1449 = vmatpush.xpose.msra.mxu0 %v303
        %1450 = vmatmul.f32.gmra.mxu0 %v740
        %v1451 = vpop.f32.mrf.mxu0
        %v1452 = vadd.f32 %v1432, %v1451
        %1453 = vdwg.mxu0
        %1454 = vmatpush.xpose.msra.mxu0 0.0
        %1455 = vmatpush.xpose.msra.mxu0 0.0
        %1456 = vmatpush.xpose.msra.mxu0 0.0
        %1457 = vmatpush.xpose.msra.mxu0 0.0
        %1458 = vmatpush.xpose.msra.mxu0 0.0
        %1459 = vmatpush.xpose.msra.mxu0 0.0
        %1460 = vmatpush.xpose.msra.mxu0 0.0
        %1461 = vmatpush.xpose.msra.mxu0 0.0
        %1462 = vmatpush.xpose.msra.mxu0 0.0
        %1463 = vmatpush.xpose.msra.mxu0 0.0
        %1464 = vmatpush.xpose.msra.mxu0 0.0
        %1465 = vmatpush.xpose.msra.mxu0 0.0
        %1466 = vmatpush.xpose.msra.mxu0 0.0
        %1467 = vmatpush.xpose.msra.mxu0 0.0
        %1468 = vmatpush.xpose.msra.mxu0 %v496
        %1469 = vmatpush.xpose.msra.mxu0 %v304
        %1470 = vmatmul.f32.gmra.mxu0 %v741
        %v1471 = vpop.f32.mrf.mxu0
        %v1472 = vadd.f32 %v1452, %v1471
        %1473 = vdwg.mxu0
        %1474 = vmatpush.xpose.msra.mxu0 0.0
        %1475 = vmatpush.xpose.msra.mxu0 0.0
        %1476 = vmatpush.xpose.msra.mxu0 0.0
        %1477 = vmatpush.xpose.msra.mxu0 0.0
        %1478 = vmatpush.xpose.msra.mxu0 0.0
        %1479 = vmatpush.xpose.msra.mxu0 0.0
        %1480 = vmatpush.xpose.msra.mxu0 0.0
        %1481 = vmatpush.xpose.msra.mxu0 0.0
        %1482 = vmatpush.xpose.msra.mxu0 0.0
        %1483 = vmatpush.xpose.msra.mxu0 0.0
        %1484 = vmatpush.xpose.msra.mxu0 0.0
        %1485 = vmatpush.xpose.msra.mxu0 0.0
        %1486 = vmatpush.xpose.msra.mxu0 0.0
        %1487 = vmatpush.xpose.msra.mxu0 0.0
        %1488 = vmatpush.xpose.msra.mxu0 %v497
        %1489 = vmatpush.xpose.msra.mxu0 %v305
        %1490 = vmatmul.f32.gmra.mxu0 %v744
        %v1491 = vpop.f32.mrf.mxu0
        %v1492 = vadd.f32 %v1472, %v1491
        %1493 = vdwg.mxu0
        %1494 = vmatpush.xpose.msra.mxu0 0.0
        %1495 = vmatpush.xpose.msra.mxu0 0.0
        %1496 = vmatpush.xpose.msra.mxu0 0.0
        %1497 = vmatpush.xpose.msra.mxu0 0.0
        %1498 = vmatpush.xpose.msra.mxu0 0.0
        %1499 = vmatpush.xpose.msra.mxu0 0.0
        %1500 = vmatpush.xpose.msra.mxu0 0.0
        %1501 = vmatpush.xpose.msra.mxu0 0.0
        %1502 = vmatpush.xpose.msra.mxu0 0.0
        %1503 = vmatpush.xpose.msra.mxu0 0.0
        %1504 = vmatpush.xpose.msra.mxu0 0.0
        %1505 = vmatpush.xpose.msra.mxu0 0.0
        %1506 = vmatpush.xpose.msra.mxu0 0.0
        %1507 = vmatpush.xpose.msra.mxu0 0.0
        %1508 = vmatpush.xpose.msra.mxu0 %v498
        %1509 = vmatpush.xpose.msra.mxu0 %v306
        %1510 = vmatmul.f32.gmra.mxu0 %v745
        %v1511 = vpop.f32.mrf.mxu0
        %v1512 = vadd.f32 %v1492, %v1511
        %1513 = vdwg.mxu0
        %1514 = vmatpush.xpose.msra.mxu0 0.0
        %1515 = vmatpush.xpose.msra.mxu0 0.0
        %1516 = vmatpush.xpose.msra.mxu0 0.0
        %1517 = vmatpush.xpose.msra.mxu0 0.0
        %1518 = vmatpush.xpose.msra.mxu0 0.0
        %1519 = vmatpush.xpose.msra.mxu0 0.0
        %1520 = vmatpush.xpose.msra.mxu0 0.0
        %1521 = vmatpush.xpose.msra.mxu0 0.0
        %1522 = vmatpush.xpose.msra.mxu0 0.0
        %1523 = vmatpush.xpose.msra.mxu0 0.0
        %1524 = vmatpush.xpose.msra.mxu0 0.0
        %1525 = vmatpush.xpose.msra.mxu0 0.0
        %1526 = vmatpush.xpose.msra.mxu0 0.0
        %1527 = vmatpush.xpose.msra.mxu0 0.0
        %1528 = vmatpush.xpose.msra.mxu0 %v499
        %1529 = vmatpush.xpose.msra.mxu0 %v307
        %1530 = vmatmul.f32.gmra.mxu0 %v746
        %v1531 = vpop.f32.mrf.mxu0
        %v1532 = vadd.f32 %v1512, %v1531
        %1533 = vdwg.mxu0
        %1534 = vmatpush.xpose.msra.mxu0 0.0
        %1535 = vmatpush.xpose.msra.mxu0 0.0
        %1536 = vmatpush.xpose.msra.mxu0 0.0
        %1537 = vmatpush.xpose.msra.mxu0 0.0
        %1538 = vmatpush.xpose.msra.mxu0 0.0
        %1539 = vmatpush.xpose.msra.mxu0 0.0
        %1540 = vmatpush.xpose.msra.mxu0 0.0
        %1541 = vmatpush.xpose.msra.mxu0 0.0
        %1542 = vmatpush.xpose.msra.mxu0 0.0
        %1543 = vmatpush.xpose.msra.mxu0 0.0
        %1544 = vmatpush.xpose.msra.mxu0 0.0
        %1545 = vmatpush.xpose.msra.mxu0 0.0
        %1546 = vmatpush.xpose.msra.mxu0 0.0
        %1547 = vmatpush.xpose.msra.mxu0 0.0
        %1548 = vmatpush.xpose.msra.mxu0 %v500
        %1549 = vmatpush.xpose.msra.mxu0 %v308
        %1550 = vmatmul.f32.gmra.mxu0 %v747
        %v1551 = vpop.f32.mrf.mxu0
        %v1552 = vadd.f32 %v1532, %v1551
        %1553 = vdwg.mxu0
        %1554 = vmatpush.xpose.msra.mxu0 0.0
        %1555 = vmatpush.xpose.msra.mxu0 0.0
        %1556 = vmatpush.xpose.msra.mxu0 0.0
        %1557 = vmatpush.xpose.msra.mxu0 0.0
        %1558 = vmatpush.xpose.msra.mxu0 0.0
        %1559 = vmatpush.xpose.msra.mxu0 0.0
        %1560 = vmatpush.xpose.msra.mxu0 0.0
        %1561 = vmatpush.xpose.msra.mxu0 0.0
        %1562 = vmatpush.xpose.msra.mxu0 0.0
        %1563 = vmatpush.xpose.msra.mxu0 0.0
        %1564 = vmatpush.xpose.msra.mxu0 0.0
        %1565 = vmatpush.xpose.msra.mxu0 0.0
        %1566 = vmatpush.xpose.msra.mxu0 0.0
        %1567 = vmatpush.xpose.msra.mxu0 0.0
        %1568 = vmatpush.xpose.msra.mxu0 %v501
        %1569 = vmatpush.xpose.msra.mxu0 %v309
        %1570 = vmatmul.f32.gmra.mxu0 %v748
        %v1571 = vpop.f32.mrf.mxu0
        %v1572 = vadd.f32 %v1552, %v1571
        %1573 = vdwg.mxu0
        %1574 = vmatpush.xpose.msra.mxu0 0.0
        %1575 = vmatpush.xpose.msra.mxu0 0.0
        %1576 = vmatpush.xpose.msra.mxu0 0.0
        %1577 = vmatpush.xpose.msra.mxu0 0.0
        %1578 = vmatpush.xpose.msra.mxu0 0.0
        %1579 = vmatpush.xpose.msra.mxu0 0.0
        %1580 = vmatpush.xpose.msra.mxu0 0.0
        %1581 = vmatpush.xpose.msra.mxu0 0.0
        %1582 = vmatpush.xpose.msra.mxu0 0.0
        %1583 = vmatpush.xpose.msra.mxu0 0.0
        %1584 = vmatpush.xpose.msra.mxu0 0.0
        %1585 = vmatpush.xpose.msra.mxu0 0.0
        %1586 = vmatpush.xpose.msra.mxu0 0.0
        %1587 = vmatpush.xpose.msra.mxu0 0.0
        %1588 = vmatpush.xpose.msra.mxu0 %v502
        %1589 = vmatpush.xpose.msra.mxu0 %v310
        %1590 = vmatmul.f32.gmra.mxu0 %v749
        %v1591 = vpop.f32.mrf.mxu0
        %v1592 = vadd.f32 %v1572, %v1591
        %1593 = vdwg.mxu0
        %1594 = vmatpush.xpose.msra.mxu0 0.0
        %1595 = vmatpush.xpose.msra.mxu0 0.0
        %1596 = vmatpush.xpose.msra.mxu0 0.0
        %1597 = vmatpush.xpose.msra.mxu0 0.0
        %1598 = vmatpush.xpose.msra.mxu0 0.0
        %1599 = vmatpush.xpose.msra.mxu0 0.0
        %1600 = vmatpush.xpose.msra.mxu0 0.0
        %1601 = vmatpush.xpose.msra.mxu0 0.0
        %1602 = vmatpush.xpose.msra.mxu0 0.0
        %1603 = vmatpush.xpose.msra.mxu0 0.0
        %1604 = vmatpush.xpose.msra.mxu0 0.0
        %1605 = vmatpush.xpose.msra.mxu0 0.0
        %1606 = vmatpush.xpose.msra.mxu0 0.0
        %1607 = vmatpush.xpose.msra.mxu0 0.0
        %1608 = vmatpush.xpose.msra.mxu0 %v503
        %1609 = vmatpush.xpose.msra.mxu0 %v311
        %1610 = vmatmul.f32.gmra.mxu0 %v750
        %v1611 = vpop.f32.mrf.mxu0
        %v1612 = vadd.f32 %v1592, %v1611
        %1613 = vdwg.mxu0
        %1614 = vmatpush.xpose.msra.mxu0 0.0
        %1615 = vmatpush.xpose.msra.mxu0 0.0
        %1616 = vmatpush.xpose.msra.mxu0 0.0
        %1617 = vmatpush.xpose.msra.mxu0 0.0
        %1618 = vmatpush.xpose.msra.mxu0 0.0
        %1619 = vmatpush.xpose.msra.mxu0 0.0
        %1620 = vmatpush.xpose.msra.mxu0 0.0
        %1621 = vmatpush.xpose.msra.mxu0 0.0
        %1622 = vmatpush.xpose.msra.mxu0 0.0
        %1623 = vmatpush.xpose.msra.mxu0 0.0
        %1624 = vmatpush.xpose.msra.mxu0 0.0
        %1625 = vmatpush.xpose.msra.mxu0 0.0
        %1626 = vmatpush.xpose.msra.mxu0 0.0
        %1627 = vmatpush.xpose.msra.mxu0 0.0
        %1628 = vmatpush.xpose.msra.mxu0 %v504
        %1629 = vmatpush.xpose.msra.mxu0 %v312
        %1630 = vmatmul.f32.gmra.mxu0 %v751
        %v1631 = vpop.f32.mrf.mxu0
        %v1632 = vadd.f32 %v1612, %v1631
        %1633 = vdwg.mxu0
        %1634 = vmatpush.xpose.msra.mxu0 0.0
        %1635 = vmatpush.xpose.msra.mxu0 0.0
        %1636 = vmatpush.xpose.msra.mxu0 0.0
        %1637 = vmatpush.xpose.msra.mxu0 0.0
        %1638 = vmatpush.xpose.msra.mxu0 0.0
        %1639 = vmatpush.xpose.msra.mxu0 0.0
        %1640 = vmatpush.xpose.msra.mxu0 0.0
        %1641 = vmatpush.xpose.msra.mxu0 0.0
        %1642 = vmatpush.xpose.msra.mxu0 0.0
        %1643 = vmatpush.xpose.msra.mxu0 0.0
        %1644 = vmatpush.xpose.msra.mxu0 0.0
        %1645 = vmatpush.xpose.msra.mxu0 0.0
        %1646 = vmatpush.xpose.msra.mxu0 0.0
        %1647 = vmatpush.xpose.msra.mxu0 0.0
        %1648 = vmatpush.xpose.msra.mxu0 %v505
        %1649 = vmatpush.xpose.msra.mxu0 %v313
        %1650 = vmatmul.f32.gmra.mxu0 %v754
        %v1651 = vpop.f32.mrf.mxu0
        %v1652 = vadd.f32 %v1632, %v1651
        %1653 = vdwg.mxu0
        %1654 = vmatpush.xpose.msra.mxu0 0.0
        %1655 = vmatpush.xpose.msra.mxu0 0.0
        %1656 = vmatpush.xpose.msra.mxu0 0.0
        %1657 = vmatpush.xpose.msra.mxu0 0.0
        %1658 = vmatpush.xpose.msra.mxu0 0.0
        %1659 = vmatpush.xpose.msra.mxu0 0.0
        %1660 = vmatpush.xpose.msra.mxu0 0.0
        %1661 = vmatpush.xpose.msra.mxu0 0.0
        %1662 = vmatpush.xpose.msra.mxu0 0.0
        %1663 = vmatpush.xpose.msra.mxu0 0.0
        %1664 = vmatpush.xpose.msra.mxu0 0.0
        %1665 = vmatpush.xpose.msra.mxu0 0.0
        %1666 = vmatpush.xpose.msra.mxu0 0.0
        %1667 = vmatpush.xpose.msra.mxu0 0.0
        %1668 = vmatpush.xpose.msra.mxu0 %v506
        %1669 = vmatpush.xpose.msra.mxu0 %v314
        %1670 = vmatmul.f32.gmra.mxu0 %v755
        %v1671 = vpop.f32.mrf.mxu0
        %v1672 = vadd.f32 %v1652, %v1671
        %1673 = vdwg.mxu0
        %1674 = vmatpush.xpose.msra.mxu0 0.0
        %1675 = vmatpush.xpose.msra.mxu0 0.0
        %1676 = vmatpush.xpose.msra.mxu0 0.0
        %1677 = vmatpush.xpose.msra.mxu0 0.0
        %1678 = vmatpush.xpose.msra.mxu0 0.0
        %1679 = vmatpush.xpose.msra.mxu0 0.0
        %1680 = vmatpush.xpose.msra.mxu0 0.0
        %1681 = vmatpush.xpose.msra.mxu0 0.0
        %1682 = vmatpush.xpose.msra.mxu0 0.0
        %1683 = vmatpush.xpose.msra.mxu0 0.0
        %1684 = vmatpush.xpose.msra.mxu0 0.0
        %1685 = vmatpush.xpose.msra.mxu0 0.0
        %1686 = vmatpush.xpose.msra.mxu0 0.0
        %1687 = vmatpush.xpose.msra.mxu0 0.0
        %1688 = vmatpush.xpose.msra.mxu0 %v507
        %1689 = vmatpush.xpose.msra.mxu0 %v315
        %1690 = vmatmul.f32.gmra.mxu0 %v756
        %v1691 = vpop.f32.mrf.mxu0
        %v1692 = vadd.f32 %v1672, %v1691
        %1693 = vdwg.mxu0
        %1694 = vmatpush.xpose.msra.mxu0 0.0
        %1695 = vmatpush.xpose.msra.mxu0 0.0
        %1696 = vmatpush.xpose.msra.mxu0 0.0
        %1697 = vmatpush.xpose.msra.mxu0 0.0
        %1698 = vmatpush.xpose.msra.mxu0 0.0
        %1699 = vmatpush.xpose.msra.mxu0 0.0
        %1700 = vmatpush.xpose.msra.mxu0 0.0
        %1701 = vmatpush.xpose.msra.mxu0 0.0
        %1702 = vmatpush.xpose.msra.mxu0 0.0
        %1703 = vmatpush.xpose.msra.mxu0 0.0
        %1704 = vmatpush.xpose.msra.mxu0 0.0
        %1705 = vmatpush.xpose.msra.mxu0 0.0
        %1706 = vmatpush.xpose.msra.mxu0 0.0
        %1707 = vmatpush.xpose.msra.mxu0 0.0
        %1708 = vmatpush.xpose.msra.mxu0 %v508
        %1709 = vmatpush.xpose.msra.mxu0 %v316
        %1710 = vmatmul.f32.gmra.mxu0 %v757
        %v1711 = vpop.f32.mrf.mxu0
        %v1712 = vadd.f32 %v1692, %v1711
        %1713 = vdwg.mxu0
        %1714 = vmatpush.xpose.msra.mxu0 0.0
        %1715 = vmatpush.xpose.msra.mxu0 0.0
        %1716 = vmatpush.xpose.msra.mxu0 0.0
        %1717 = vmatpush.xpose.msra.mxu0 0.0
        %1718 = vmatpush.xpose.msra.mxu0 0.0
        %1719 = vmatpush.xpose.msra.mxu0 0.0
        %1720 = vmatpush.xpose.msra.mxu0 0.0
        %1721 = vmatpush.xpose.msra.mxu0 0.0
        %1722 = vmatpush.xpose.msra.mxu0 0.0
        %1723 = vmatpush.xpose.msra.mxu0 0.0
        %1724 = vmatpush.xpose.msra.mxu0 0.0
        %1725 = vmatpush.xpose.msra.mxu0 0.0
        %1726 = vmatpush.xpose.msra.mxu0 0.0
        %1727 = vmatpush.xpose.msra.mxu0 0.0
        %1728 = vmatpush.xpose.msra.mxu0 %v509
        %1729 = vmatpush.xpose.msra.mxu0 %v317
        %1730 = vmatmul.f32.gmra.mxu0 %v758
        %v1731 = vpop.f32.mrf.mxu0
        %v1732 = vadd.f32 %v1712, %v1731
        %1733 = vdwg.mxu0
        %1734 = vmatpush.xpose.msra.mxu0 0.0
        %1735 = vmatpush.xpose.msra.mxu0 0.0
        %1736 = vmatpush.xpose.msra.mxu0 0.0
        %1737 = vmatpush.xpose.msra.mxu0 0.0
        %1738 = vmatpush.xpose.msra.mxu0 0.0
        %1739 = vmatpush.xpose.msra.mxu0 0.0
        %1740 = vmatpush.xpose.msra.mxu0 0.0
        %1741 = vmatpush.xpose.msra.mxu0 0.0
        %1742 = vmatpush.xpose.msra.mxu0 0.0
        %1743 = vmatpush.xpose.msra.mxu0 0.0
        %1744 = vmatpush.xpose.msra.mxu0 0.0
        %1745 = vmatpush.xpose.msra.mxu0 0.0
        %1746 = vmatpush.xpose.msra.mxu0 0.0
        %1747 = vmatpush.xpose.msra.mxu0 0.0
        %1748 = vmatpush.xpose.msra.mxu0 %v510
        %1749 = vmatpush.xpose.msra.mxu0 %v318
        %1750 = vmatmul.f32.gmra.mxu0 %v759
        %v1751 = vpop.f32.mrf.mxu0
        %v1752 = vadd.f32 %v1732, %v1751
        %1753 = vdwg.mxu0
        %1754 = vmatpush.xpose.msra.mxu0 0.0
        %1755 = vmatpush.xpose.msra.mxu0 0.0
        %1756 = vmatpush.xpose.msra.mxu0 0.0
        %1757 = vmatpush.xpose.msra.mxu0 0.0
        %1758 = vmatpush.xpose.msra.mxu0 0.0
        %1759 = vmatpush.xpose.msra.mxu0 0.0
        %1760 = vmatpush.xpose.msra.mxu0 0.0
        %1761 = vmatpush.xpose.msra.mxu0 0.0
        %1762 = vmatpush.xpose.msra.mxu0 0.0
        %1763 = vmatpush.xpose.msra.mxu0 0.0
        %1764 = vmatpush.xpose.msra.mxu0 0.0
        %1765 = vmatpush.xpose.msra.mxu0 0.0
        %1766 = vmatpush.xpose.msra.mxu0 0.0
        %1767 = vmatpush.xpose.msra.mxu0 0.0
        %1768 = vmatpush.xpose.msra.mxu0 %v511
        %1769 = vmatpush.xpose.msra.mxu0 %v319
        %1770 = vmatmul.f32.gmra.mxu0 %v760
        %v1771 = vpop.f32.mrf.mxu0
        %v1772 = vadd.f32 %v1752, %v1771
        %1773 = vdwg.mxu0
        %1774 = vmatpush.xpose.msra.mxu0 0.0
        %1775 = vmatpush.xpose.msra.mxu0 0.0
        %1776 = vmatpush.xpose.msra.mxu0 0.0
        %1777 = vmatpush.xpose.msra.mxu0 0.0
        %1778 = vmatpush.xpose.msra.mxu0 0.0
        %1779 = vmatpush.xpose.msra.mxu0 0.0
        %1780 = vmatpush.xpose.msra.mxu0 0.0
        %1781 = vmatpush.xpose.msra.mxu0 0.0
        %1782 = vmatpush.xpose.msra.mxu0 0.0
        %1783 = vmatpush.xpose.msra.mxu0 0.0
        %1784 = vmatpush.xpose.msra.mxu0 0.0
        %1785 = vmatpush.xpose.msra.mxu0 0.0
        %1786 = vmatpush.xpose.msra.mxu0 0.0
        %1787 = vmatpush.xpose.msra.mxu0 0.0
        %1788 = vmatpush.xpose.msra.mxu0 %v512
        %1789 = vmatpush.xpose.msra.mxu0 %v320
        %1790 = vmatmul.f32.gmra.mxu0 %v761
        %v1791 = vpop.f32.mrf.mxu0
        %v1792 = vadd.f32 %v1772, %v1791
        %1793 = vdwg.mxu0
        %1794 = vmatpush.xpose.msra.mxu0 0.0
        %1795 = vmatpush.xpose.msra.mxu0 0.0
        %1796 = vmatpush.xpose.msra.mxu0 0.0
        %1797 = vmatpush.xpose.msra.mxu0 0.0
        %1798 = vmatpush.xpose.msra.mxu0 0.0
        %1799 = vmatpush.xpose.msra.mxu0 0.0
        %1800 = vmatpush.xpose.msra.mxu0 0.0
        %1801 = vmatpush.xpose.msra.mxu0 0.0
        %1802 = vmatpush.xpose.msra.mxu0 0.0
        %1803 = vmatpush.xpose.msra.mxu0 0.0
        %1804 = vmatpush.xpose.msra.mxu0 0.0
        %1805 = vmatpush.xpose.msra.mxu0 0.0
        %1806 = vmatpush.xpose.msra.mxu0 0.0
        %1807 = vmatpush.xpose.msra.mxu0 0.0
        %1808 = vmatpush.xpose.msra.mxu0 %v513
        %1809 = vmatpush.xpose.msra.mxu0 %v321
        %1810 = vmatmul.f32.gmra.mxu0 %v764
        %v1811 = vpop.f32.mrf.mxu0
        %v1812 = vadd.f32 %v1792, %v1811
        %1813 = vdwg.mxu0
        %1814 = vmatpush.xpose.msra.mxu0 0.0
        %1815 = vmatpush.xpose.msra.mxu0 0.0
        %1816 = vmatpush.xpose.msra.mxu0 0.0
        %1817 = vmatpush.xpose.msra.mxu0 0.0
        %1818 = vmatpush.xpose.msra.mxu0 0.0
        %1819 = vmatpush.xpose.msra.mxu0 0.0
        %1820 = vmatpush.xpose.msra.mxu0 0.0
        %1821 = vmatpush.xpose.msra.mxu0 0.0
        %1822 = vmatpush.xpose.msra.mxu0 0.0
        %1823 = vmatpush.xpose.msra.mxu0 0.0
        %1824 = vmatpush.xpose.msra.mxu0 0.0
        %1825 = vmatpush.xpose.msra.mxu0 0.0
        %1826 = vmatpush.xpose.msra.mxu0 0.0
        %1827 = vmatpush.xpose.msra.mxu0 0.0
        %1828 = vmatpush.xpose.msra.mxu0 %v514
        %1829 = vmatpush.xpose.msra.mxu0 %v322
        %1830 = vmatmul.f32.gmra.mxu0 %v765
        %v1831 = vpop.f32.mrf.mxu0
        %v1832 = vadd.f32 %v1812, %v1831
        %1833 = vdwg.mxu0
        %1834 = vmatpush.xpose.msra.mxu0 0.0
        %1835 = vmatpush.xpose.msra.mxu0 0.0
        %1836 = vmatpush.xpose.msra.mxu0 0.0
        %1837 = vmatpush.xpose.msra.mxu0 0.0
        %1838 = vmatpush.xpose.msra.mxu0 0.0
        %1839 = vmatpush.xpose.msra.mxu0 0.0
        %1840 = vmatpush.xpose.msra.mxu0 0.0
        %1841 = vmatpush.xpose.msra.mxu0 0.0
        %1842 = vmatpush.xpose.msra.mxu0 0.0
        %1843 = vmatpush.xpose.msra.mxu0 0.0
        %1844 = vmatpush.xpose.msra.mxu0 0.0
        %1845 = vmatpush.xpose.msra.mxu0 0.0
        %1846 = vmatpush.xpose.msra.mxu0 0.0
        %1847 = vmatpush.xpose.msra.mxu0 0.0
        %1848 = vmatpush.xpose.msra.mxu0 %v515
        %1849 = vmatpush.xpose.msra.mxu0 %v323
        %1850 = vmatmul.f32.gmra.mxu0 %v766
        %v1851 = vpop.f32.mrf.mxu0
        %v1852 = vadd.f32 %v1832, %v1851
        %1853 = vdwg.mxu0
        %1854 = vmatpush.xpose.msra.mxu0 0.0
        %1855 = vmatpush.xpose.msra.mxu0 0.0
        %1856 = vmatpush.xpose.msra.mxu0 0.0
        %1857 = vmatpush.xpose.msra.mxu0 0.0
        %1858 = vmatpush.xpose.msra.mxu0 0.0
        %1859 = vmatpush.xpose.msra.mxu0 0.0
        %1860 = vmatpush.xpose.msra.mxu0 0.0
        %1861 = vmatpush.xpose.msra.mxu0 0.0
        %1862 = vmatpush.xpose.msra.mxu0 0.0
        %1863 = vmatpush.xpose.msra.mxu0 0.0
        %1864 = vmatpush.xpose.msra.mxu0 0.0
        %1865 = vmatpush.xpose.msra.mxu0 0.0
        %1866 = vmatpush.xpose.msra.mxu0 0.0
        %1867 = vmatpush.xpose.msra.mxu0 0.0
        %1868 = vmatpush.xpose.msra.mxu0 %v516
        %1869 = vmatpush.xpose.msra.mxu0 %v324
        %1870 = vmatmul.f32.gmra.mxu0 %v767
        %v1871 = vpop.f32.mrf.mxu0
        %v1872 = vadd.f32 %v1852, %v1871
        %1873 = vdwg.mxu0
        %1874 = vmatpush.xpose.msra.mxu0 0.0
        %1875 = vmatpush.xpose.msra.mxu0 0.0
        %1876 = vmatpush.xpose.msra.mxu0 0.0
        %1877 = vmatpush.xpose.msra.mxu0 0.0
        %1878 = vmatpush.xpose.msra.mxu0 0.0
        %1879 = vmatpush.xpose.msra.mxu0 0.0
        %1880 = vmatpush.xpose.msra.mxu0 0.0
        %1881 = vmatpush.xpose.msra.mxu0 0.0
        %1882 = vmatpush.xpose.msra.mxu0 0.0
        %1883 = vmatpush.xpose.msra.mxu0 0.0
        %1884 = vmatpush.xpose.msra.mxu0 0.0
        %1885 = vmatpush.xpose.msra.mxu0 0.0
        %1886 = vmatpush.xpose.msra.mxu0 0.0
        %1887 = vmatpush.xpose.msra.mxu0 0.0
        %1888 = vmatpush.xpose.msra.mxu0 %v517
        %1889 = vmatpush.xpose.msra.mxu0 %v325
        %1890 = vmatmul.f32.gmra.mxu0 %v768
        %v1891 = vpop.f32.mrf.mxu0
        %v1892 = vadd.f32 %v1872, %v1891
        %1893 = vdwg.mxu0
        %1894 = vmatpush.xpose.msra.mxu0 0.0
        %1895 = vmatpush.xpose.msra.mxu0 0.0
        %1896 = vmatpush.xpose.msra.mxu0 0.0
        %1897 = vmatpush.xpose.msra.mxu0 0.0
        %1898 = vmatpush.xpose.msra.mxu0 0.0
        %1899 = vmatpush.xpose.msra.mxu0 0.0
        %1900 = vmatpush.xpose.msra.mxu0 0.0
        %1901 = vmatpush.xpose.msra.mxu0 0.0
        %1902 = vmatpush.xpose.msra.mxu0 0.0
        %1903 = vmatpush.xpose.msra.mxu0 0.0
        %1904 = vmatpush.xpose.msra.mxu0 0.0
        %1905 = vmatpush.xpose.msra.mxu0 0.0
        %1906 = vmatpush.xpose.msra.mxu0 0.0
        %1907 = vmatpush.xpose.msra.mxu0 0.0
        %1908 = vmatpush.xpose.msra.mxu0 %v518
        %1909 = vmatpush.xpose.msra.mxu0 %v326
        %1910 = vmatmul.f32.gmra.mxu0 %v769
        %v1911 = vpop.f32.mrf.mxu0
        %v1912 = vadd.f32 %v1892, %v1911
        %1913 = vdwg.mxu0
        %1914 = vmatpush.xpose.msra.mxu0 0.0
        %1915 = vmatpush.xpose.msra.mxu0 0.0
        %1916 = vmatpush.xpose.msra.mxu0 0.0
        %1917 = vmatpush.xpose.msra.mxu0 0.0
        %1918 = vmatpush.xpose.msra.mxu0 0.0
        %1919 = vmatpush.xpose.msra.mxu0 0.0
        %1920 = vmatpush.xpose.msra.mxu0 0.0
        %1921 = vmatpush.xpose.msra.mxu0 0.0
        %1922 = vmatpush.xpose.msra.mxu0 0.0
        %1923 = vmatpush.xpose.msra.mxu0 0.0
        %1924 = vmatpush.xpose.msra.mxu0 0.0
        %1925 = vmatpush.xpose.msra.mxu0 0.0
        %1926 = vmatpush.xpose.msra.mxu0 0.0
        %1927 = vmatpush.xpose.msra.mxu0 0.0
        %1928 = vmatpush.xpose.msra.mxu0 %v519
        %1929 = vmatpush.xpose.msra.mxu0 %v327
        %1930 = vmatmul.f32.gmra.mxu0 %v770
        %v1931 = vpop.f32.mrf.mxu0
        %v1932 = vadd.f32 %v1912, %v1931
        %1933 = vdwg.mxu0
        %1934 = vmatpush.xpose.msra.mxu0 0.0
        %1935 = vmatpush.xpose.msra.mxu0 0.0
        %1936 = vmatpush.xpose.msra.mxu0 0.0
        %1937 = vmatpush.xpose.msra.mxu0 0.0
        %1938 = vmatpush.xpose.msra.mxu0 0.0
        %1939 = vmatpush.xpose.msra.mxu0 0.0
        %1940 = vmatpush.xpose.msra.mxu0 0.0
        %1941 = vmatpush.xpose.msra.mxu0 0.0
        %1942 = vmatpush.xpose.msra.mxu0 0.0
        %1943 = vmatpush.xpose.msra.mxu0 0.0
        %1944 = vmatpush.xpose.msra.mxu0 0.0
        %1945 = vmatpush.xpose.msra.mxu0 0.0
        %1946 = vmatpush.xpose.msra.mxu0 0.0
        %1947 = vmatpush.xpose.msra.mxu0 0.0
        %1948 = vmatpush.xpose.msra.mxu0 %v520
        %1949 = vmatpush.xpose.msra.mxu0 %v328
        %1950 = vmatmul.f32.gmra.mxu0 %v771
        %v1951 = vpop.f32.mrf.mxu0
        %v1952 = vadd.f32 %v1932, %v1951
        %1953 = vdwg.mxu0
        %1954 = vmatpush.xpose.msra.mxu0 0.0
        %1955 = vmatpush.xpose.msra.mxu0 0.0
        %1956 = vmatpush.xpose.msra.mxu0 0.0
        %1957 = vmatpush.xpose.msra.mxu0 0.0
        %1958 = vmatpush.xpose.msra.mxu0 0.0
        %1959 = vmatpush.xpose.msra.mxu0 0.0
        %1960 = vmatpush.xpose.msra.mxu0 0.0
        %1961 = vmatpush.xpose.msra.mxu0 0.0
        %1962 = vmatpush.xpose.msra.mxu0 0.0
        %1963 = vmatpush.xpose.msra.mxu0 0.0
        %1964 = vmatpush.xpose.msra.mxu0 0.0
        %1965 = vmatpush.xpose.msra.mxu0 0.0
        %1966 = vmatpush.xpose.msra.mxu0 0.0
        %1967 = vmatpush.xpose.msra.mxu0 0.0
        %1968 = vmatpush.xpose.msra.mxu0 %v521
        %1969 = vmatpush.xpose.msra.mxu0 %v329
        %1970 = vmatmul.f32.gmra.mxu0 %v774
        %v1971 = vpop.f32.mrf.mxu0
        %v1972 = vadd.f32 %v1952, %v1971
        %1973 = vdwg.mxu0
        %1974 = vmatpush.xpose.msra.mxu0 0.0
        %1975 = vmatpush.xpose.msra.mxu0 0.0
        %1976 = vmatpush.xpose.msra.mxu0 0.0
        %1977 = vmatpush.xpose.msra.mxu0 0.0
        %1978 = vmatpush.xpose.msra.mxu0 0.0
        %1979 = vmatpush.xpose.msra.mxu0 0.0
        %1980 = vmatpush.xpose.msra.mxu0 0.0
        %1981 = vmatpush.xpose.msra.mxu0 0.0
        %1982 = vmatpush.xpose.msra.mxu0 0.0
        %1983 = vmatpush.xpose.msra.mxu0 0.0
        %1984 = vmatpush.xpose.msra.mxu0 0.0
        %1985 = vmatpush.xpose.msra.mxu0 0.0
        %1986 = vmatpush.xpose.msra.mxu0 0.0
        %1987 = vmatpush.xpose.msra.mxu0 0.0
        %1988 = vmatpush.xpose.msra.mxu0 %v522
        %1989 = vmatpush.xpose.msra.mxu0 %v330
        %1990 = vmatmul.f32.gmra.mxu0 %v775
        %v1991 = vpop.f32.mrf.mxu0
        %v1992 = vadd.f32 %v1972, %v1991
        %1993 = vdwg.mxu0
        %1994 = vmatpush.xpose.msra.mxu0 0.0
        %1995 = vmatpush.xpose.msra.mxu0 0.0
        %1996 = vmatpush.xpose.msra.mxu0 0.0
        %1997 = vmatpush.xpose.msra.mxu0 0.0
        %1998 = vmatpush.xpose.msra.mxu0 0.0
        %1999 = vmatpush.xpose.msra.mxu0 0.0
        %2000 = vmatpush.xpose.msra.mxu0 0.0
        %2001 = vmatpush.xpose.msra.mxu0 0.0
        %2002 = vmatpush.xpose.msra.mxu0 0.0
        %2003 = vmatpush.xpose.msra.mxu0 0.0
        %2004 = vmatpush.xpose.msra.mxu0 0.0
        %2005 = vmatpush.xpose.msra.mxu0 0.0
        %2006 = vmatpush.xpose.msra.mxu0 0.0
        %2007 = vmatpush.xpose.msra.mxu0 0.0
        %2008 = vmatpush.xpose.msra.mxu0 %v523
        %2009 = vmatpush.xpose.msra.mxu0 %v331
        %2010 = vmatmul.f32.gmra.mxu0 %v776
        %v2011 = vpop.f32.mrf.mxu0
        %v2012 = vadd.f32 %v1992, %v2011
        %2013 = vdwg.mxu0
        %2014 = vmatpush.xpose.msra.mxu0 0.0
        %2015 = vmatpush.xpose.msra.mxu0 0.0
        %2016 = vmatpush.xpose.msra.mxu0 0.0
        %2017 = vmatpush.xpose.msra.mxu0 0.0
        %2018 = vmatpush.xpose.msra.mxu0 0.0
        %2019 = vmatpush.xpose.msra.mxu0 0.0
        %2020 = vmatpush.xpose.msra.mxu0 0.0
        %2021 = vmatpush.xpose.msra.mxu0 0.0
        %2022 = vmatpush.xpose.msra.mxu0 0.0
        %2023 = vmatpush.xpose.msra.mxu0 0.0
        %2024 = vmatpush.xpose.msra.mxu0 0.0
        %2025 = vmatpush.xpose.msra.mxu0 0.0
        %2026 = vmatpush.xpose.msra.mxu0 0.0
        %2027 = vmatpush.xpose.msra.mxu0 0.0
        %2028 = vmatpush.xpose.msra.mxu0 %v524
        %2029 = vmatpush.xpose.msra.mxu0 %v332
        %2030 = vmatmul.f32.gmra.mxu0 %v777
        %v2031 = vpop.f32.mrf.mxu0
        %v2032 = vadd.f32 %v2012, %v2031
        %2033 = vdwg.mxu0
        %2034 = vmatpush.xpose.msra.mxu0 0.0
        %2035 = vmatpush.xpose.msra.mxu0 0.0
        %2036 = vmatpush.xpose.msra.mxu0 0.0
        %2037 = vmatpush.xpose.msra.mxu0 0.0
        %2038 = vmatpush.xpose.msra.mxu0 0.0
        %2039 = vmatpush.xpose.msra.mxu0 0.0
        %2040 = vmatpush.xpose.msra.mxu0 0.0
        %2041 = vmatpush.xpose.msra.mxu0 0.0
        %2042 = vmatpush.xpose.msra.mxu0 0.0
        %2043 = vmatpush.xpose.msra.mxu0 0.0
        %2044 = vmatpush.xpose.msra.mxu0 0.0
        %2045 = vmatpush.xpose.msra.mxu0 0.0
        %2046 = vmatpush.xpose.msra.mxu0 0.0
        %2047 = vmatpush.xpose.msra.mxu0 0.0
        %2048 = vmatpush.xpose.msra.mxu0 %v525
        %2049 = vmatpush.xpose.msra.mxu0 %v333
        %2050 = vmatmul.f32.gmra.mxu0 %v778
        %v2051 = vpop.f32.mrf.mxu0
        %v2052 = vadd.f32 %v2032, %v2051
        %2053 = vdwg.mxu0
        %2054 = vmatpush.xpose.msra.mxu0 0.0
        %2055 = vmatpush.xpose.msra.mxu0 0.0
        %2056 = vmatpush.xpose.msra.mxu0 0.0
        %2057 = vmatpush.xpose.msra.mxu0 0.0
        %2058 = vmatpush.xpose.msra.mxu0 0.0
        %2059 = vmatpush.xpose.msra.mxu0 0.0
        %2060 = vmatpush.xpose.msra.mxu0 0.0
        %2061 = vmatpush.xpose.msra.mxu0 0.0
        %2062 = vmatpush.xpose.msra.mxu0 0.0
        %2063 = vmatpush.xpose.msra.mxu0 0.0
        %2064 = vmatpush.xpose.msra.mxu0 0.0
        %2065 = vmatpush.xpose.msra.mxu0 0.0
        %2066 = vmatpush.xpose.msra.mxu0 0.0
        %2067 = vmatpush.xpose.msra.mxu0 0.0
        %2068 = vmatpush.xpose.msra.mxu0 %v526
        %2069 = vmatpush.xpose.msra.mxu0 %v334
        %2070 = vmatmul.f32.gmra.mxu0 %v779
        %v2071 = vpop.f32.mrf.mxu0
        %v2072 = vadd.f32 %v2052, %v2071
        %2073 = vdwg.mxu0
        %2074 = vmatpush.xpose.msra.mxu0 0.0
        %2075 = vmatpush.xpose.msra.mxu0 0.0
        %2076 = vmatpush.xpose.msra.mxu0 0.0
        %2077 = vmatpush.xpose.msra.mxu0 0.0
        %2078 = vmatpush.xpose.msra.mxu0 0.0
        %2079 = vmatpush.xpose.msra.mxu0 0.0
        %2080 = vmatpush.xpose.msra.mxu0 0.0
        %2081 = vmatpush.xpose.msra.mxu0 0.0
        %2082 = vmatpush.xpose.msra.mxu0 0.0
        %2083 = vmatpush.xpose.msra.mxu0 0.0
        %2084 = vmatpush.xpose.msra.mxu0 0.0
        %2085 = vmatpush.xpose.msra.mxu0 0.0
        %2086 = vmatpush.xpose.msra.mxu0 0.0
        %2087 = vmatpush.xpose.msra.mxu0 0.0
        %2088 = vmatpush.xpose.msra.mxu0 %v527
        %2089 = vmatpush.xpose.msra.mxu0 %v335
        %2090 = vmatmul.f32.gmra.mxu0 %v780
        %v2091 = vpop.f32.mrf.mxu0
        %v2092 = vadd.f32 %v2072, %v2091
        %2093 = vdwg.mxu0
        %2094 = vmatpush.xpose.msra.mxu0 0.0
        %2095 = vmatpush.xpose.msra.mxu0 0.0
        %2096 = vmatpush.xpose.msra.mxu0 0.0
        %2097 = vmatpush.xpose.msra.mxu0 0.0
        %2098 = vmatpush.xpose.msra.mxu0 0.0
        %2099 = vmatpush.xpose.msra.mxu0 0.0
        %2100 = vmatpush.xpose.msra.mxu0 0.0
        %2101 = vmatpush.xpose.msra.mxu0 0.0
        %2102 = vmatpush.xpose.msra.mxu0 0.0
        %2103 = vmatpush.xpose.msra.mxu0 0.0
        %2104 = vmatpush.xpose.msra.mxu0 0.0
        %2105 = vmatpush.xpose.msra.mxu0 0.0
        %2106 = vmatpush.xpose.msra.mxu0 0.0
        %2107 = vmatpush.xpose.msra.mxu0 0.0
        %2108 = vmatpush.xpose.msra.mxu0 %v528
        %2109 = vmatpush.xpose.msra.mxu0 %v336
        %2110 = vmatmul.f32.gmra.mxu0 %v781
        %v2111 = vpop.f32.mrf.mxu0
        %v2112 = vadd.f32 %v2092, %v2111
        %2113 = vdwg.mxu0
        %2114 = vmatpush.xpose.msra.mxu0 0.0
        %2115 = vmatpush.xpose.msra.mxu0 0.0
        %2116 = vmatpush.xpose.msra.mxu0 0.0
        %2117 = vmatpush.xpose.msra.mxu0 0.0
        %2118 = vmatpush.xpose.msra.mxu0 0.0
        %2119 = vmatpush.xpose.msra.mxu0 0.0
        %2120 = vmatpush.xpose.msra.mxu0 0.0
        %2121 = vmatpush.xpose.msra.mxu0 0.0
        %2122 = vmatpush.xpose.msra.mxu0 0.0
        %2123 = vmatpush.xpose.msra.mxu0 0.0
        %2124 = vmatpush.xpose.msra.mxu0 0.0
        %2125 = vmatpush.xpose.msra.mxu0 0.0
        %2126 = vmatpush.xpose.msra.mxu0 0.0
        %2127 = vmatpush.xpose.msra.mxu0 0.0
        %2128 = vmatpush.xpose.msra.mxu0 %v529
        %2129 = vmatpush.xpose.msra.mxu0 %v337
        %2130 = vmatmul.f32.gmra.mxu0 %v784
        %v2131 = vpop.f32.mrf.mxu0
        %v2132 = vadd.f32 %v2112, %v2131
        %2133 = vdwg.mxu0
        %2134 = vmatpush.xpose.msra.mxu0 0.0
        %2135 = vmatpush.xpose.msra.mxu0 0.0
        %2136 = vmatpush.xpose.msra.mxu0 0.0
        %2137 = vmatpush.xpose.msra.mxu0 0.0
        %2138 = vmatpush.xpose.msra.mxu0 0.0
        %2139 = vmatpush.xpose.msra.mxu0 0.0
        %2140 = vmatpush.xpose.msra.mxu0 0.0
        %2141 = vmatpush.xpose.msra.mxu0 0.0
        %2142 = vmatpush.xpose.msra.mxu0 0.0
        %2143 = vmatpush.xpose.msra.mxu0 0.0
        %2144 = vmatpush.xpose.msra.mxu0 0.0
        %2145 = vmatpush.xpose.msra.mxu0 0.0
        %2146 = vmatpush.xpose.msra.mxu0 0.0
        %2147 = vmatpush.xpose.msra.mxu0 0.0
        %2148 = vmatpush.xpose.msra.mxu0 %v530
        %2149 = vmatpush.xpose.msra.mxu0 %v338
        %2150 = vmatmul.f32.gmra.mxu0 %v785
        %v2151 = vpop.f32.mrf.mxu0
        %v2152 = vadd.f32 %v2132, %v2151
        %2153 = vdwg.mxu0
        %2154 = vmatpush.xpose.msra.mxu0 0.0
        %2155 = vmatpush.xpose.msra.mxu0 0.0
        %2156 = vmatpush.xpose.msra.mxu0 0.0
        %2157 = vmatpush.xpose.msra.mxu0 0.0
        %2158 = vmatpush.xpose.msra.mxu0 0.0
        %2159 = vmatpush.xpose.msra.mxu0 0.0
        %2160 = vmatpush.xpose.msra.mxu0 0.0
        %2161 = vmatpush.xpose.msra.mxu0 0.0
        %2162 = vmatpush.xpose.msra.mxu0 0.0
        %2163 = vmatpush.xpose.msra.mxu0 0.0
        %2164 = vmatpush.xpose.msra.mxu0 0.0
        %2165 = vmatpush.xpose.msra.mxu0 0.0
        %2166 = vmatpush.xpose.msra.mxu0 0.0
        %2167 = vmatpush.xpose.msra.mxu0 0.0
        %2168 = vmatpush.xpose.msra.mxu0 %v531
        %2169 = vmatpush.xpose.msra.mxu0 %v339
        %2170 = vmatmul.f32.gmra.mxu0 %v786
        %v2171 = vpop.f32.mrf.mxu0
        %v2172 = vadd.f32 %v2152, %v2171
        %2173 = vdwg.mxu0
        %2174 = vmatpush.xpose.msra.mxu0 0.0
        %2175 = vmatpush.xpose.msra.mxu0 0.0
        %2176 = vmatpush.xpose.msra.mxu0 0.0
        %2177 = vmatpush.xpose.msra.mxu0 0.0
        %2178 = vmatpush.xpose.msra.mxu0 0.0
        %2179 = vmatpush.xpose.msra.mxu0 0.0
        %2180 = vmatpush.xpose.msra.mxu0 0.0
        %2181 = vmatpush.xpose.msra.mxu0 0.0
        %2182 = vmatpush.xpose.msra.mxu0 0.0
        %2183 = vmatpush.xpose.msra.mxu0 0.0
        %2184 = vmatpush.xpose.msra.mxu0 0.0
        %2185 = vmatpush.xpose.msra.mxu0 0.0
        %2186 = vmatpush.xpose.msra.mxu0 0.0
        %2187 = vmatpush.xpose.msra.mxu0 0.0
        %2188 = vmatpush.xpose.msra.mxu0 %v532
        %2189 = vmatpush.xpose.msra.mxu0 %v340
        %2190 = vmatmul.f32.gmra.mxu0 %v787
        %v2191 = vpop.f32.mrf.mxu0
        %v2192 = vadd.f32 %v2172, %v2191
        %2193 = vdwg.mxu0
        %2194 = vmatpush.xpose.msra.mxu0 0.0
        %2195 = vmatpush.xpose.msra.mxu0 0.0
        %2196 = vmatpush.xpose.msra.mxu0 0.0
        %2197 = vmatpush.xpose.msra.mxu0 0.0
        %2198 = vmatpush.xpose.msra.mxu0 0.0
        %2199 = vmatpush.xpose.msra.mxu0 0.0
        %2200 = vmatpush.xpose.msra.mxu0 0.0
        %2201 = vmatpush.xpose.msra.mxu0 0.0
        %2202 = vmatpush.xpose.msra.mxu0 0.0
        %2203 = vmatpush.xpose.msra.mxu0 0.0
        %2204 = vmatpush.xpose.msra.mxu0 0.0
        %2205 = vmatpush.xpose.msra.mxu0 0.0
        %2206 = vmatpush.xpose.msra.mxu0 0.0
        %2207 = vmatpush.xpose.msra.mxu0 0.0
        %2208 = vmatpush.xpose.msra.mxu0 %v533
        %2209 = vmatpush.xpose.msra.mxu0 %v341
        %2210 = vmatmul.f32.gmra.mxu0 %v788
        %v2211 = vpop.f32.mrf.mxu0
        %v2212 = vadd.f32 %v2192, %v2211
        %2213 = vdwg.mxu0
        %2214 = vmatpush.xpose.msra.mxu0 0.0
        %2215 = vmatpush.xpose.msra.mxu0 0.0
        %2216 = vmatpush.xpose.msra.mxu0 0.0
        %2217 = vmatpush.xpose.msra.mxu0 0.0
        %2218 = vmatpush.xpose.msra.mxu0 0.0
        %2219 = vmatpush.xpose.msra.mxu0 0.0
        %2220 = vmatpush.xpose.msra.mxu0 0.0
        %2221 = vmatpush.xpose.msra.mxu0 0.0
        %2222 = vmatpush.xpose.msra.mxu0 0.0
        %2223 = vmatpush.xpose.msra.mxu0 0.0
        %2224 = vmatpush.xpose.msra.mxu0 0.0
        %2225 = vmatpush.xpose.msra.mxu0 0.0
        %2226 = vmatpush.xpose.msra.mxu0 0.0
        %2227 = vmatpush.xpose.msra.mxu0 0.0
        %2228 = vmatpush.xpose.msra.mxu0 %v534
        %2229 = vmatpush.xpose.msra.mxu0 %v342
        %2230 = vmatmul.f32.gmra.mxu0 %v789
        %v2231 = vpop.f32.mrf.mxu0
        %v2232 = vadd.f32 %v2212, %v2231
        %2233 = vdwg.mxu0
        %2234 = vmatpush.xpose.msra.mxu0 0.0
        %2235 = vmatpush.xpose.msra.mxu0 0.0
        %2236 = vmatpush.xpose.msra.mxu0 0.0
        %2237 = vmatpush.xpose.msra.mxu0 0.0
        %2238 = vmatpush.xpose.msra.mxu0 0.0
        %2239 = vmatpush.xpose.msra.mxu0 0.0
        %2240 = vmatpush.xpose.msra.mxu0 0.0
        %2241 = vmatpush.xpose.msra.mxu0 0.0
        %2242 = vmatpush.xpose.msra.mxu0 0.0
        %2243 = vmatpush.xpose.msra.mxu0 0.0
        %2244 = vmatpush.xpose.msra.mxu0 0.0
        %2245 = vmatpush.xpose.msra.mxu0 0.0
        %2246 = vmatpush.xpose.msra.mxu0 0.0
        %2247 = vmatpush.xpose.msra.mxu0 0.0
        %2248 = vmatpush.xpose.msra.mxu0 %v535
        %2249 = vmatpush.xpose.msra.mxu0 %v343
        %2250 = vmatmul.f32.gmra.mxu0 %v790
        %v2251 = vpop.f32.mrf.mxu0
        %v2252 = vadd.f32 %v2232, %v2251
        %2253 = vdwg.mxu0
        %2254 = vmatpush.xpose.msra.mxu0 0.0
        %2255 = vmatpush.xpose.msra.mxu0 0.0
        %2256 = vmatpush.xpose.msra.mxu0 0.0
        %2257 = vmatpush.xpose.msra.mxu0 0.0
        %2258 = vmatpush.xpose.msra.mxu0 0.0
        %2259 = vmatpush.xpose.msra.mxu0 0.0
        %2260 = vmatpush.xpose.msra.mxu0 0.0
        %2261 = vmatpush.xpose.msra.mxu0 0.0
        %2262 = vmatpush.xpose.msra.mxu0 0.0
        %2263 = vmatpush.xpose.msra.mxu0 0.0
        %2264 = vmatpush.xpose.msra.mxu0 0.0
        %2265 = vmatpush.xpose.msra.mxu0 0.0
        %2266 = vmatpush.xpose.msra.mxu0 0.0
        %2267 = vmatpush.xpose.msra.mxu0 0.0
        %2268 = vmatpush.xpose.msra.mxu0 %v536
        %2269 = vmatpush.xpose.msra.mxu0 %v344
        %2270 = vmatmul.f32.gmra.mxu0 %v791
        %v2271 = vpop.f32.mrf.mxu0
        %v2272 = vadd.f32 %v2252, %v2271
        %2273 = vdwg.mxu0
        %2274 = vmatpush.xpose.msra.mxu0 0.0
        %2275 = vmatpush.xpose.msra.mxu0 0.0
        %2276 = vmatpush.xpose.msra.mxu0 0.0
        %2277 = vmatpush.xpose.msra.mxu0 0.0
        %2278 = vmatpush.xpose.msra.mxu0 0.0
        %2279 = vmatpush.xpose.msra.mxu0 0.0
        %2280 = vmatpush.xpose.msra.mxu0 0.0
        %2281 = vmatpush.xpose.msra.mxu0 0.0
        %2282 = vmatpush.xpose.msra.mxu0 0.0
        %2283 = vmatpush.xpose.msra.mxu0 0.0
        %2284 = vmatpush.xpose.msra.mxu0 0.0
        %2285 = vmatpush.xpose.msra.mxu0 0.0
        %2286 = vmatpush.xpose.msra.mxu0 0.0
        %2287 = vmatpush.xpose.msra.mxu0 0.0
        %2288 = vmatpush.xpose.msra.mxu0 %v537
        %2289 = vmatpush.xpose.msra.mxu0 %v345
        %2290 = vmatmul.f32.gmra.mxu0 %v794
        %v2291 = vpop.f32.mrf.mxu0
        %v2292 = vadd.f32 %v2272, %v2291
        %2293 = vdwg.mxu0
        %2294 = vmatpush.xpose.msra.mxu0 0.0
        %2295 = vmatpush.xpose.msra.mxu0 0.0
        %2296 = vmatpush.xpose.msra.mxu0 0.0
        %2297 = vmatpush.xpose.msra.mxu0 0.0
        %2298 = vmatpush.xpose.msra.mxu0 0.0
        %2299 = vmatpush.xpose.msra.mxu0 0.0
        %2300 = vmatpush.xpose.msra.mxu0 0.0
        %2301 = vmatpush.xpose.msra.mxu0 0.0
        %2302 = vmatpush.xpose.msra.mxu0 0.0
        %2303 = vmatpush.xpose.msra.mxu0 0.0
        %2304 = vmatpush.xpose.msra.mxu0 0.0
        %2305 = vmatpush.xpose.msra.mxu0 0.0
        %2306 = vmatpush.xpose.msra.mxu0 0.0
        %2307 = vmatpush.xpose.msra.mxu0 0.0
        %2308 = vmatpush.xpose.msra.mxu0 %v538
        %2309 = vmatpush.xpose.msra.mxu0 %v346
        %2310 = vmatmul.f32.gmra.mxu0 %v795
        %v2311 = vpop.f32.mrf.mxu0
        %v2312 = vadd.f32 %v2292, %v2311
        %2313 = vdwg.mxu0
        %2314 = vmatpush.xpose.msra.mxu0 0.0
        %2315 = vmatpush.xpose.msra.mxu0 0.0
        %2316 = vmatpush.xpose.msra.mxu0 0.0
        %2317 = vmatpush.xpose.msra.mxu0 0.0
        %2318 = vmatpush.xpose.msra.mxu0 0.0
        %2319 = vmatpush.xpose.msra.mxu0 0.0
        %2320 = vmatpush.xpose.msra.mxu0 0.0
        %2321 = vmatpush.xpose.msra.mxu0 0.0
        %2322 = vmatpush.xpose.msra.mxu0 0.0
        %2323 = vmatpush.xpose.msra.mxu0 0.0
        %2324 = vmatpush.xpose.msra.mxu0 0.0
        %2325 = vmatpush.xpose.msra.mxu0 0.0
        %2326 = vmatpush.xpose.msra.mxu0 0.0
        %2327 = vmatpush.xpose.msra.mxu0 0.0
        %2328 = vmatpush.xpose.msra.mxu0 %v539
        %2329 = vmatpush.xpose.msra.mxu0 %v347
        %2330 = vmatmul.f32.gmra.mxu0 %v796
        %v2331 = vpop.f32.mrf.mxu0
        %v2332 = vadd.f32 %v2312, %v2331
        %2333 = vdwg.mxu0
        %2334 = vmatpush.xpose.msra.mxu0 0.0
        %2335 = vmatpush.xpose.msra.mxu0 0.0
        %2336 = vmatpush.xpose.msra.mxu0 0.0
        %2337 = vmatpush.xpose.msra.mxu0 0.0
        %2338 = vmatpush.xpose.msra.mxu0 0.0
        %2339 = vmatpush.xpose.msra.mxu0 0.0
        %2340 = vmatpush.xpose.msra.mxu0 0.0
        %2341 = vmatpush.xpose.msra.mxu0 0.0
        %2342 = vmatpush.xpose.msra.mxu0 0.0
        %2343 = vmatpush.xpose.msra.mxu0 0.0
        %2344 = vmatpush.xpose.msra.mxu0 0.0
        %2345 = vmatpush.xpose.msra.mxu0 0.0
        %2346 = vmatpush.xpose.msra.mxu0 0.0
        %2347 = vmatpush.xpose.msra.mxu0 0.0
        %2348 = vmatpush.xpose.msra.mxu0 %v540
        %2349 = vmatpush.xpose.msra.mxu0 %v348
        %2350 = vmatmul.f32.gmra.mxu0 %v797
        %v2351 = vpop.f32.mrf.mxu0
        %v2352 = vadd.f32 %v2332, %v2351
        %2353 = vdwg.mxu0
        %2354 = vmatpush.xpose.msra.mxu0 0.0
        %2355 = vmatpush.xpose.msra.mxu0 0.0
        %2356 = vmatpush.xpose.msra.mxu0 0.0
        %2357 = vmatpush.xpose.msra.mxu0 0.0
        %2358 = vmatpush.xpose.msra.mxu0 0.0
        %2359 = vmatpush.xpose.msra.mxu0 0.0
        %2360 = vmatpush.xpose.msra.mxu0 0.0
        %2361 = vmatpush.xpose.msra.mxu0 0.0
        %2362 = vmatpush.xpose.msra.mxu0 0.0
        %2363 = vmatpush.xpose.msra.mxu0 0.0
        %2364 = vmatpush.xpose.msra.mxu0 0.0
        %2365 = vmatpush.xpose.msra.mxu0 0.0
        %2366 = vmatpush.xpose.msra.mxu0 0.0
        %2367 = vmatpush.xpose.msra.mxu0 0.0
        %2368 = vmatpush.xpose.msra.mxu0 %v541
        %2369 = vmatpush.xpose.msra.mxu0 %v349
        %2370 = vmatmul.f32.gmra.mxu0 %v798
        %v2371 = vpop.f32.mrf.mxu0
        %v2372 = vadd.f32 %v2352, %v2371
        %2373 = vdwg.mxu0
        %2374 = vmatpush.xpose.msra.mxu0 0.0
        %2375 = vmatpush.xpose.msra.mxu0 0.0
        %2376 = vmatpush.xpose.msra.mxu0 0.0
        %2377 = vmatpush.xpose.msra.mxu0 0.0
        %2378 = vmatpush.xpose.msra.mxu0 0.0
        %2379 = vmatpush.xpose.msra.mxu0 0.0
        %2380 = vmatpush.xpose.msra.mxu0 0.0
        %2381 = vmatpush.xpose.msra.mxu0 0.0
        %2382 = vmatpush.xpose.msra.mxu0 0.0
        %2383 = vmatpush.xpose.msra.mxu0 0.0
        %2384 = vmatpush.xpose.msra.mxu0 0.0
        %2385 = vmatpush.xpose.msra.mxu0 0.0
        %2386 = vmatpush.xpose.msra.mxu0 0.0
        %2387 = vmatpush.xpose.msra.mxu0 0.0
        %2388 = vmatpush.xpose.msra.mxu0 %v542
        %2389 = vmatpush.xpose.msra.mxu0 %v350
        %2390 = vmatmul.f32.gmra.mxu0 %v799
        %v2391 = vpop.f32.mrf.mxu0
        %v2392 = vadd.f32 %v2372, %v2391
        %2393 = vdwg.mxu0
        %2394 = vmatpush.xpose.msra.mxu0 0.0
        %2395 = vmatpush.xpose.msra.mxu0 0.0
        %2396 = vmatpush.xpose.msra.mxu0 0.0
        %2397 = vmatpush.xpose.msra.mxu0 0.0
        %2398 = vmatpush.xpose.msra.mxu0 0.0
        %2399 = vmatpush.xpose.msra.mxu0 0.0
        %2400 = vmatpush.xpose.msra.mxu0 0.0
        %2401 = vmatpush.xpose.msra.mxu0 0.0
        %2402 = vmatpush.xpose.msra.mxu0 0.0
        %2403 = vmatpush.xpose.msra.mxu0 0.0
        %2404 = vmatpush.xpose.msra.mxu0 0.0
        %2405 = vmatpush.xpose.msra.mxu0 0.0
        %2406 = vmatpush.xpose.msra.mxu0 0.0
        %2407 = vmatpush.xpose.msra.mxu0 0.0
        %2408 = vmatpush.xpose.msra.mxu0 %v543
        %2409 = vmatpush.xpose.msra.mxu0 %v351
        %2410 = vmatmul.f32.gmra.mxu0 %v800
        %v2411 = vpop.f32.mrf.mxu0
        %v2412 = vadd.f32 %v2392, %v2411
        %2413 = vdwg.mxu0
        %2414 = vmatpush.xpose.msra.mxu0 0.0
        %2415 = vmatpush.xpose.msra.mxu0 0.0
        %2416 = vmatpush.xpose.msra.mxu0 0.0
        %2417 = vmatpush.xpose.msra.mxu0 0.0
        %2418 = vmatpush.xpose.msra.mxu0 0.0
        %2419 = vmatpush.xpose.msra.mxu0 0.0
        %2420 = vmatpush.xpose.msra.mxu0 0.0
        %2421 = vmatpush.xpose.msra.mxu0 0.0
        %2422 = vmatpush.xpose.msra.mxu0 0.0
        %2423 = vmatpush.xpose.msra.mxu0 0.0
        %2424 = vmatpush.xpose.msra.mxu0 0.0
        %2425 = vmatpush.xpose.msra.mxu0 0.0
        %2426 = vmatpush.xpose.msra.mxu0 0.0
        %2427 = vmatpush.xpose.msra.mxu0 0.0
        %2428 = vmatpush.xpose.msra.mxu0 %v544
        %2429 = vmatpush.xpose.msra.mxu0 %v352
        %2430 = vmatmul.f32.gmra.mxu0 %v801
        %v2431 = vpop.f32.mrf.mxu0
        %v2432 = vadd.f32 %v2412, %v2431
        %2433 = vdwg.mxu0
        %2434 = vmatpush.xpose.msra.mxu0 0.0
        %2435 = vmatpush.xpose.msra.mxu0 0.0
        %2436 = vmatpush.xpose.msra.mxu0 0.0
        %2437 = vmatpush.xpose.msra.mxu0 0.0
        %2438 = vmatpush.xpose.msra.mxu0 0.0
        %2439 = vmatpush.xpose.msra.mxu0 0.0
        %2440 = vmatpush.xpose.msra.mxu0 0.0
        %2441 = vmatpush.xpose.msra.mxu0 0.0
        %2442 = vmatpush.xpose.msra.mxu0 0.0
        %2443 = vmatpush.xpose.msra.mxu0 0.0
        %2444 = vmatpush.xpose.msra.mxu0 0.0
        %2445 = vmatpush.xpose.msra.mxu0 0.0
        %2446 = vmatpush.xpose.msra.mxu0 0.0
        %2447 = vmatpush.xpose.msra.mxu0 0.0
        %2448 = vmatpush.xpose.msra.mxu0 %v545
        %2449 = vmatpush.xpose.msra.mxu0 %v353
        %2450 = vmatmul.f32.gmra.mxu0 %v804
        %v2451 = vpop.f32.mrf.mxu0
        %v2452 = vadd.f32 %v2432, %v2451
        %2453 = vdwg.mxu0
        %2454 = vmatpush.xpose.msra.mxu0 0.0
        %2455 = vmatpush.xpose.msra.mxu0 0.0
        %2456 = vmatpush.xpose.msra.mxu0 0.0
        %2457 = vmatpush.xpose.msra.mxu0 0.0
        %2458 = vmatpush.xpose.msra.mxu0 0.0
        %2459 = vmatpush.xpose.msra.mxu0 0.0
        %2460 = vmatpush.xpose.msra.mxu0 0.0
        %2461 = vmatpush.xpose.msra.mxu0 0.0
        %2462 = vmatpush.xpose.msra.mxu0 0.0
        %2463 = vmatpush.xpose.msra.mxu0 0.0
        %2464 = vmatpush.xpose.msra.mxu0 0.0
        %2465 = vmatpush.xpose.msra.mxu0 0.0
        %2466 = vmatpush.xpose.msra.mxu0 0.0
        %2467 = vmatpush.xpose.msra.mxu0 0.0
        %2468 = vmatpush.xpose.msra.mxu0 %v546
        %2469 = vmatpush.xpose.msra.mxu0 %v354
        %2470 = vmatmul.f32.gmra.mxu0 %v805
        %v2471 = vpop.f32.mrf.mxu0
        %v2472 = vadd.f32 %v2452, %v2471
        %2473 = vdwg.mxu0
        %2474 = vmatpush.xpose.msra.mxu0 0.0
        %2475 = vmatpush.xpose.msra.mxu0 0.0
        %2476 = vmatpush.xpose.msra.mxu0 0.0
        %2477 = vmatpush.xpose.msra.mxu0 0.0
        %2478 = vmatpush.xpose.msra.mxu0 0.0
        %2479 = vmatpush.xpose.msra.mxu0 0.0
        %2480 = vmatpush.xpose.msra.mxu0 0.0
        %2481 = vmatpush.xpose.msra.mxu0 0.0
        %2482 = vmatpush.xpose.msra.mxu0 0.0
        %2483 = vmatpush.xpose.msra.mxu0 0.0
        %2484 = vmatpush.xpose.msra.mxu0 0.0
        %2485 = vmatpush.xpose.msra.mxu0 0.0
        %2486 = vmatpush.xpose.msra.mxu0 0.0
        %2487 = vmatpush.xpose.msra.mxu0 0.0
        %2488 = vmatpush.xpose.msra.mxu0 %v547
        %2489 = vmatpush.xpose.msra.mxu0 %v355
        %2490 = vmatmul.f32.gmra.mxu0 %v806
        %v2491 = vpop.f32.mrf.mxu0
        %v2492 = vadd.f32 %v2472, %v2491
        %2493 = vdwg.mxu0
        %2494 = vmatpush.xpose.msra.mxu0 0.0
        %2495 = vmatpush.xpose.msra.mxu0 0.0
        %2496 = vmatpush.xpose.msra.mxu0 0.0
        %2497 = vmatpush.xpose.msra.mxu0 0.0
        %2498 = vmatpush.xpose.msra.mxu0 0.0
        %2499 = vmatpush.xpose.msra.mxu0 0.0
        %2500 = vmatpush.xpose.msra.mxu0 0.0
        %2501 = vmatpush.xpose.msra.mxu0 0.0
        %2502 = vmatpush.xpose.msra.mxu0 0.0
        %2503 = vmatpush.xpose.msra.mxu0 0.0
        %2504 = vmatpush.xpose.msra.mxu0 0.0
        %2505 = vmatpush.xpose.msra.mxu0 0.0
        %2506 = vmatpush.xpose.msra.mxu0 0.0
        %2507 = vmatpush.xpose.msra.mxu0 0.0
        %2508 = vmatpush.xpose.msra.mxu0 %v548
        %2509 = vmatpush.xpose.msra.mxu0 %v356
        %2510 = vmatmul.f32.gmra.mxu0 %v807
        %v2511 = vpop.f32.mrf.mxu0
        %v2512 = vadd.f32 %v2492, %v2511
        %2513 = vdwg.mxu0
        %2514 = vmatpush.xpose.msra.mxu0 0.0
        %2515 = vmatpush.xpose.msra.mxu0 0.0
        %2516 = vmatpush.xpose.msra.mxu0 0.0
        %2517 = vmatpush.xpose.msra.mxu0 0.0
        %2518 = vmatpush.xpose.msra.mxu0 0.0
        %2519 = vmatpush.xpose.msra.mxu0 0.0
        %2520 = vmatpush.xpose.msra.mxu0 0.0
        %2521 = vmatpush.xpose.msra.mxu0 0.0
        %2522 = vmatpush.xpose.msra.mxu0 0.0
        %2523 = vmatpush.xpose.msra.mxu0 0.0
        %2524 = vmatpush.xpose.msra.mxu0 0.0
        %2525 = vmatpush.xpose.msra.mxu0 0.0
        %2526 = vmatpush.xpose.msra.mxu0 0.0
        %2527 = vmatpush.xpose.msra.mxu0 0.0
        %2528 = vmatpush.xpose.msra.mxu0 %v549
        %2529 = vmatpush.xpose.msra.mxu0 %v357
        %2530 = vmatmul.f32.gmra.mxu0 %v808
        %v2531 = vpop.f32.mrf.mxu0
        %v2532 = vadd.f32 %v2512, %v2531
        %2533 = vdwg.mxu0
        %2534 = vmatpush.xpose.msra.mxu0 0.0
        %2535 = vmatpush.xpose.msra.mxu0 0.0
        %2536 = vmatpush.xpose.msra.mxu0 0.0
        %2537 = vmatpush.xpose.msra.mxu0 0.0
        %2538 = vmatpush.xpose.msra.mxu0 0.0
        %2539 = vmatpush.xpose.msra.mxu0 0.0
        %2540 = vmatpush.xpose.msra.mxu0 0.0
        %2541 = vmatpush.xpose.msra.mxu0 0.0
        %2542 = vmatpush.xpose.msra.mxu0 0.0
        %2543 = vmatpush.xpose.msra.mxu0 0.0
        %2544 = vmatpush.xpose.msra.mxu0 0.0
        %2545 = vmatpush.xpose.msra.mxu0 0.0
        %2546 = vmatpush.xpose.msra.mxu0 0.0
        %2547 = vmatpush.xpose.msra.mxu0 0.0
        %2548 = vmatpush.xpose.msra.mxu0 %v550
        %2549 = vmatpush.xpose.msra.mxu0 %v358
        %2550 = vmatmul.f32.gmra.mxu0 %v809
        %v2551 = vpop.f32.mrf.mxu0
        %v2552 = vadd.f32 %v2532, %v2551
        %2553 = vdwg.mxu0
        %2554 = vmatpush.xpose.msra.mxu0 0.0
        %2555 = vmatpush.xpose.msra.mxu0 0.0
        %2556 = vmatpush.xpose.msra.mxu0 0.0
        %2557 = vmatpush.xpose.msra.mxu0 0.0
        %2558 = vmatpush.xpose.msra.mxu0 0.0
        %2559 = vmatpush.xpose.msra.mxu0 0.0
        %2560 = vmatpush.xpose.msra.mxu0 0.0
        %2561 = vmatpush.xpose.msra.mxu0 0.0
        %2562 = vmatpush.xpose.msra.mxu0 0.0
        %2563 = vmatpush.xpose.msra.mxu0 0.0
        %2564 = vmatpush.xpose.msra.mxu0 0.0
        %2565 = vmatpush.xpose.msra.mxu0 0.0
        %2566 = vmatpush.xpose.msra.mxu0 0.0
        %2567 = vmatpush.xpose.msra.mxu0 0.0
        %2568 = vmatpush.xpose.msra.mxu0 %v551
        %2569 = vmatpush.xpose.msra.mxu0 %v359
        %2570 = vmatmul.f32.gmra.mxu0 %v810
        %v2571 = vpop.f32.mrf.mxu0
        %v2572 = vadd.f32 %v2552, %v2571
        %2573 = vdwg.mxu0
        %2574 = vmatpush.xpose.msra.mxu0 0.0
        %2575 = vmatpush.xpose.msra.mxu0 0.0
        %2576 = vmatpush.xpose.msra.mxu0 0.0
        %2577 = vmatpush.xpose.msra.mxu0 0.0
        %2578 = vmatpush.xpose.msra.mxu0 0.0
        %2579 = vmatpush.xpose.msra.mxu0 0.0
        %2580 = vmatpush.xpose.msra.mxu0 0.0
        %2581 = vmatpush.xpose.msra.mxu0 0.0
        %2582 = vmatpush.xpose.msra.mxu0 0.0
        %2583 = vmatpush.xpose.msra.mxu0 0.0
        %2584 = vmatpush.xpose.msra.mxu0 0.0
        %2585 = vmatpush.xpose.msra.mxu0 0.0
        %2586 = vmatpush.xpose.msra.mxu0 0.0
        %2587 = vmatpush.xpose.msra.mxu0 0.0
        %2588 = vmatpush.xpose.msra.mxu0 %v552
        %2589 = vmatpush.xpose.msra.mxu0 %v360
        %2590 = vmatmul.f32.gmra.mxu0 %v811
        %v2591 = vpop.f32.mrf.mxu0
        %v2592 = vadd.f32 %v2572, %v2591
        %2593 = vdwg.mxu0
        %2594 = vmatpush.xpose.msra.mxu0 0.0
        %2595 = vmatpush.xpose.msra.mxu0 0.0
        %2596 = vmatpush.xpose.msra.mxu0 0.0
        %2597 = vmatpush.xpose.msra.mxu0 0.0
        %2598 = vmatpush.xpose.msra.mxu0 0.0
        %2599 = vmatpush.xpose.msra.mxu0 0.0
        %2600 = vmatpush.xpose.msra.mxu0 0.0
        %2601 = vmatpush.xpose.msra.mxu0 0.0
        %2602 = vmatpush.xpose.msra.mxu0 0.0
        %2603 = vmatpush.xpose.msra.mxu0 0.0
        %2604 = vmatpush.xpose.msra.mxu0 0.0
        %2605 = vmatpush.xpose.msra.mxu0 0.0
        %2606 = vmatpush.xpose.msra.mxu0 0.0
        %2607 = vmatpush.xpose.msra.mxu0 0.0
        %2608 = vmatpush.xpose.msra.mxu0 %v553
        %2609 = vmatpush.xpose.msra.mxu0 %v361
        %2610 = vmatmul.f32.gmra.mxu0 %v814
        %v2611 = vpop.f32.mrf.mxu0
        %v2612 = vadd.f32 %v2592, %v2611
        %2613 = vdwg.mxu0
        %2614 = vmatpush.xpose.msra.mxu0 0.0
        %2615 = vmatpush.xpose.msra.mxu0 0.0
        %2616 = vmatpush.xpose.msra.mxu0 0.0
        %2617 = vmatpush.xpose.msra.mxu0 0.0
        %2618 = vmatpush.xpose.msra.mxu0 0.0
        %2619 = vmatpush.xpose.msra.mxu0 0.0
        %2620 = vmatpush.xpose.msra.mxu0 0.0
        %2621 = vmatpush.xpose.msra.mxu0 0.0
        %2622 = vmatpush.xpose.msra.mxu0 0.0
        %2623 = vmatpush.xpose.msra.mxu0 0.0
        %2624 = vmatpush.xpose.msra.mxu0 0.0
        %2625 = vmatpush.xpose.msra.mxu0 0.0
        %2626 = vmatpush.xpose.msra.mxu0 0.0
        %2627 = vmatpush.xpose.msra.mxu0 0.0
        %2628 = vmatpush.xpose.msra.mxu0 %v554
        %2629 = vmatpush.xpose.msra.mxu0 %v362
        %2630 = vmatmul.f32.gmra.mxu0 %v815
        %v2631 = vpop.f32.mrf.mxu0
        %v2632 = vadd.f32 %v2612, %v2631
        %2633 = vdwg.mxu0
        %2634 = vmatpush.xpose.msra.mxu0 0.0
        %2635 = vmatpush.xpose.msra.mxu0 0.0
        %2636 = vmatpush.xpose.msra.mxu0 0.0
        %2637 = vmatpush.xpose.msra.mxu0 0.0
        %2638 = vmatpush.xpose.msra.mxu0 0.0
        %2639 = vmatpush.xpose.msra.mxu0 0.0
        %2640 = vmatpush.xpose.msra.mxu0 0.0
        %2641 = vmatpush.xpose.msra.mxu0 0.0
        %2642 = vmatpush.xpose.msra.mxu0 0.0
        %2643 = vmatpush.xpose.msra.mxu0 0.0
        %2644 = vmatpush.xpose.msra.mxu0 0.0
        %2645 = vmatpush.xpose.msra.mxu0 0.0
        %2646 = vmatpush.xpose.msra.mxu0 0.0
        %2647 = vmatpush.xpose.msra.mxu0 0.0
        %2648 = vmatpush.xpose.msra.mxu0 %v555
        %2649 = vmatpush.xpose.msra.mxu0 %v363
        %2650 = vmatmul.f32.gmra.mxu0 %v816
        %v2651 = vpop.f32.mrf.mxu0
        %v2652 = vadd.f32 %v2632, %v2651
        %2653 = vdwg.mxu0
        %2654 = vmatpush.xpose.msra.mxu0 0.0
        %2655 = vmatpush.xpose.msra.mxu0 0.0
        %2656 = vmatpush.xpose.msra.mxu0 0.0
        %2657 = vmatpush.xpose.msra.mxu0 0.0
        %2658 = vmatpush.xpose.msra.mxu0 0.0
        %2659 = vmatpush.xpose.msra.mxu0 0.0
        %2660 = vmatpush.xpose.msra.mxu0 0.0
        %2661 = vmatpush.xpose.msra.mxu0 0.0
        %2662 = vmatpush.xpose.msra.mxu0 0.0
        %2663 = vmatpush.xpose.msra.mxu0 0.0
        %2664 = vmatpush.xpose.msra.mxu0 0.0
        %2665 = vmatpush.xpose.msra.mxu0 0.0
        %2666 = vmatpush.xpose.msra.mxu0 0.0
        %2667 = vmatpush.xpose.msra.mxu0 0.0
        %2668 = vmatpush.xpose.msra.mxu0 %v556
        %2669 = vmatpush.xpose.msra.mxu0 %v364
        %2670 = vmatmul.f32.gmra.mxu0 %v817
        %v2671 = vpop.f32.mrf.mxu0
        %v2672 = vadd.f32 %v2652, %v2671
        %2673 = vdwg.mxu0
        %2674 = vmatpush.xpose.msra.mxu0 0.0
        %2675 = vmatpush.xpose.msra.mxu0 0.0
        %2676 = vmatpush.xpose.msra.mxu0 0.0
        %2677 = vmatpush.xpose.msra.mxu0 0.0
        %2678 = vmatpush.xpose.msra.mxu0 0.0
        %2679 = vmatpush.xpose.msra.mxu0 0.0
        %2680 = vmatpush.xpose.msra.mxu0 0.0
        %2681 = vmatpush.xpose.msra.mxu0 0.0
        %2682 = vmatpush.xpose.msra.mxu0 0.0
        %2683 = vmatpush.xpose.msra.mxu0 0.0
        %2684 = vmatpush.xpose.msra.mxu0 0.0
        %2685 = vmatpush.xpose.msra.mxu0 0.0
        %2686 = vmatpush.xpose.msra.mxu0 0.0
        %2687 = vmatpush.xpose.msra.mxu0 0.0
        %2688 = vmatpush.xpose.msra.mxu0 %v557
        %2689 = vmatpush.xpose.msra.mxu0 %v365
        %2690 = vmatmul.f32.gmra.mxu0 %v818
        %v2691 = vpop.f32.mrf.mxu0
        %v2692 = vadd.f32 %v2672, %v2691
        %2693 = vdwg.mxu0
        %2694 = vmatpush.xpose.msra.mxu0 0.0
        %2695 = vmatpush.xpose.msra.mxu0 0.0
        %2696 = vmatpush.xpose.msra.mxu0 0.0
        %2697 = vmatpush.xpose.msra.mxu0 0.0
        %2698 = vmatpush.xpose.msra.mxu0 0.0
        %2699 = vmatpush.xpose.msra.mxu0 0.0
        %2700 = vmatpush.xpose.msra.mxu0 0.0
        %2701 = vmatpush.xpose.msra.mxu0 0.0
        %2702 = vmatpush.xpose.msra.mxu0 0.0
        %2703 = vmatpush.xpose.msra.mxu0 0.0
        %2704 = vmatpush.xpose.msra.mxu0 0.0
        %2705 = vmatpush.xpose.msra.mxu0 0.0
        %2706 = vmatpush.xpose.msra.mxu0 0.0
        %2707 = vmatpush.xpose.msra.mxu0 0.0
        %2708 = vmatpush.xpose.msra.mxu0 %v558
        %2709 = vmatpush.xpose.msra.mxu0 %v366
        %2710 = vmatmul.f32.gmra.mxu0 %v819
        %v2711 = vpop.f32.mrf.mxu0
        %v2712 = vadd.f32 %v2692, %v2711
        %2713 = vdwg.mxu0
        %2714 = vmatpush.xpose.msra.mxu0 0.0
        %2715 = vmatpush.xpose.msra.mxu0 0.0
        %2716 = vmatpush.xpose.msra.mxu0 0.0
        %2717 = vmatpush.xpose.msra.mxu0 0.0
        %2718 = vmatpush.xpose.msra.mxu0 0.0
        %2719 = vmatpush.xpose.msra.mxu0 0.0
        %2720 = vmatpush.xpose.msra.mxu0 0.0
        %2721 = vmatpush.xpose.msra.mxu0 0.0
        %2722 = vmatpush.xpose.msra.mxu0 0.0
        %2723 = vmatpush.xpose.msra.mxu0 0.0
        %2724 = vmatpush.xpose.msra.mxu0 0.0
        %2725 = vmatpush.xpose.msra.mxu0 0.0
        %2726 = vmatpush.xpose.msra.mxu0 0.0
        %2727 = vmatpush.xpose.msra.mxu0 0.0
        %2728 = vmatpush.xpose.msra.mxu0 %v559
        %2729 = vmatpush.xpose.msra.mxu0 %v367
        %2730 = vmatmul.f32.gmra.mxu0 %v820
        %v2731 = vpop.f32.mrf.mxu0
        %v2732 = vadd.f32 %v2712, %v2731
        %2733 = vdwg.mxu0
        %2734 = vmatpush.xpose.msra.mxu0 0.0
        %2735 = vmatpush.xpose.msra.mxu0 0.0
        %2736 = vmatpush.xpose.msra.mxu0 0.0
        %2737 = vmatpush.xpose.msra.mxu0 0.0
        %2738 = vmatpush.xpose.msra.mxu0 0.0
        %2739 = vmatpush.xpose.msra.mxu0 0.0
        %2740 = vmatpush.xpose.msra.mxu0 0.0
        %2741 = vmatpush.xpose.msra.mxu0 0.0
        %2742 = vmatpush.xpose.msra.mxu0 0.0
        %2743 = vmatpush.xpose.msra.mxu0 0.0
        %2744 = vmatpush.xpose.msra.mxu0 0.0
        %2745 = vmatpush.xpose.msra.mxu0 0.0
        %2746 = vmatpush.xpose.msra.mxu0 0.0
        %2747 = vmatpush.xpose.msra.mxu0 0.0
        %2748 = vmatpush.xpose.msra.mxu0 %v560
        %2749 = vmatpush.xpose.msra.mxu0 %v368
        %2750 = vmatmul.f32.gmra.mxu0 %v821
        %v2751 = vpop.f32.mrf.mxu0
        %v2752 = vadd.f32 %v2732, %v2751
        %2753 = vdwg.mxu0
        %2754 = vmatpush.xpose.msra.mxu0 0.0
        %2755 = vmatpush.xpose.msra.mxu0 0.0
        %2756 = vmatpush.xpose.msra.mxu0 0.0
        %2757 = vmatpush.xpose.msra.mxu0 0.0
        %2758 = vmatpush.xpose.msra.mxu0 0.0
        %2759 = vmatpush.xpose.msra.mxu0 0.0
        %2760 = vmatpush.xpose.msra.mxu0 0.0
        %2761 = vmatpush.xpose.msra.mxu0 0.0
        %2762 = vmatpush.xpose.msra.mxu0 0.0
        %2763 = vmatpush.xpose.msra.mxu0 0.0
        %2764 = vmatpush.xpose.msra.mxu0 0.0
        %2765 = vmatpush.xpose.msra.mxu0 0.0
        %2766 = vmatpush.xpose.msra.mxu0 0.0
        %2767 = vmatpush.xpose.msra.mxu0 0.0
        %2768 = vmatpush.xpose.msra.mxu0 %v561
        %2769 = vmatpush.xpose.msra.mxu0 %v369
        %2770 = vmatmul.f32.gmra.mxu0 %v824
        %v2771 = vpop.f32.mrf.mxu0
        %v2772 = vadd.f32 %v2752, %v2771
        %2773 = vdwg.mxu0
        %2774 = vmatpush.xpose.msra.mxu0 0.0
        %2775 = vmatpush.xpose.msra.mxu0 0.0
        %2776 = vmatpush.xpose.msra.mxu0 0.0
        %2777 = vmatpush.xpose.msra.mxu0 0.0
        %2778 = vmatpush.xpose.msra.mxu0 0.0
        %2779 = vmatpush.xpose.msra.mxu0 0.0
        %2780 = vmatpush.xpose.msra.mxu0 0.0
        %2781 = vmatpush.xpose.msra.mxu0 0.0
        %2782 = vmatpush.xpose.msra.mxu0 0.0
        %2783 = vmatpush.xpose.msra.mxu0 0.0
        %2784 = vmatpush.xpose.msra.mxu0 0.0
        %2785 = vmatpush.xpose.msra.mxu0 0.0
        %2786 = vmatpush.xpose.msra.mxu0 0.0
        %2787 = vmatpush.xpose.msra.mxu0 0.0
        %2788 = vmatpush.xpose.msra.mxu0 %v562
        %2789 = vmatpush.xpose.msra.mxu0 %v370
        %2790 = vmatmul.f32.gmra.mxu0 %v825
        %v2791 = vpop.f32.mrf.mxu0
        %v2792 = vadd.f32 %v2772, %v2791
        %2793 = vdwg.mxu0
        %2794 = vmatpush.xpose.msra.mxu0 0.0
        %2795 = vmatpush.xpose.msra.mxu0 0.0
        %2796 = vmatpush.xpose.msra.mxu0 0.0
        %2797 = vmatpush.xpose.msra.mxu0 0.0
        %2798 = vmatpush.xpose.msra.mxu0 0.0
        %2799 = vmatpush.xpose.msra.mxu0 0.0
        %2800 = vmatpush.xpose.msra.mxu0 0.0
        %2801 = vmatpush.xpose.msra.mxu0 0.0
        %2802 = vmatpush.xpose.msra.mxu0 0.0
        %2803 = vmatpush.xpose.msra.mxu0 0.0
        %2804 = vmatpush.xpose.msra.mxu0 0.0
        %2805 = vmatpush.xpose.msra.mxu0 0.0
        %2806 = vmatpush.xpose.msra.mxu0 0.0
        %2807 = vmatpush.xpose.msra.mxu0 0.0
        %2808 = vmatpush.xpose.msra.mxu0 %v563
        %2809 = vmatpush.xpose.msra.mxu0 %v371
        %2810 = vmatmul.f32.gmra.mxu0 %v826
        %v2811 = vpop.f32.mrf.mxu0
        %v2812 = vadd.f32 %v2792, %v2811
        %2813 = vdwg.mxu0
        %2814 = vmatpush.xpose.msra.mxu0 0.0
        %2815 = vmatpush.xpose.msra.mxu0 0.0
        %2816 = vmatpush.xpose.msra.mxu0 0.0
        %2817 = vmatpush.xpose.msra.mxu0 0.0
        %2818 = vmatpush.xpose.msra.mxu0 0.0
        %2819 = vmatpush.xpose.msra.mxu0 0.0
        %2820 = vmatpush.xpose.msra.mxu0 0.0
        %2821 = vmatpush.xpose.msra.mxu0 0.0
        %2822 = vmatpush.xpose.msra.mxu0 0.0
        %2823 = vmatpush.xpose.msra.mxu0 0.0
        %2824 = vmatpush.xpose.msra.mxu0 0.0
        %2825 = vmatpush.xpose.msra.mxu0 0.0
        %2826 = vmatpush.xpose.msra.mxu0 0.0
        %2827 = vmatpush.xpose.msra.mxu0 0.0
        %2828 = vmatpush.xpose.msra.mxu0 %v564
        %2829 = vmatpush.xpose.msra.mxu0 %v372
        %2830 = vmatmul.f32.gmra.mxu0 %v827
        %v2831 = vpop.f32.mrf.mxu0
        %v2832 = vadd.f32 %v2812, %v2831
        %2833 = vdwg.mxu0
        %2834 = vmatpush.xpose.msra.mxu0 0.0
        %2835 = vmatpush.xpose.msra.mxu0 0.0
        %2836 = vmatpush.xpose.msra.mxu0 0.0
        %2837 = vmatpush.xpose.msra.mxu0 0.0
        %2838 = vmatpush.xpose.msra.mxu0 0.0
        %2839 = vmatpush.xpose.msra.mxu0 0.0
        %2840 = vmatpush.xpose.msra.mxu0 0.0
        %2841 = vmatpush.xpose.msra.mxu0 0.0
        %2842 = vmatpush.xpose.msra.mxu0 0.0
        %2843 = vmatpush.xpose.msra.mxu0 0.0
        %2844 = vmatpush.xpose.msra.mxu0 0.0
        %2845 = vmatpush.xpose.msra.mxu0 0.0
        %2846 = vmatpush.xpose.msra.mxu0 0.0
        %2847 = vmatpush.xpose.msra.mxu0 0.0
        %2848 = vmatpush.xpose.msra.mxu0 %v565
        %2849 = vmatpush.xpose.msra.mxu0 %v373
        %2850 = vmatmul.f32.gmra.mxu0 %v828
        %v2851 = vpop.f32.mrf.mxu0
        %v2852 = vadd.f32 %v2832, %v2851
        %2853 = vdwg.mxu0
        %2854 = vmatpush.xpose.msra.mxu0 0.0
        %2855 = vmatpush.xpose.msra.mxu0 0.0
        %2856 = vmatpush.xpose.msra.mxu0 0.0
        %2857 = vmatpush.xpose.msra.mxu0 0.0
        %2858 = vmatpush.xpose.msra.mxu0 0.0
        %2859 = vmatpush.xpose.msra.mxu0 0.0
        %2860 = vmatpush.xpose.msra.mxu0 0.0
        %2861 = vmatpush.xpose.msra.mxu0 0.0
        %2862 = vmatpush.xpose.msra.mxu0 0.0
        %2863 = vmatpush.xpose.msra.mxu0 0.0
        %2864 = vmatpush.xpose.msra.mxu0 0.0
        %2865 = vmatpush.xpose.msra.mxu0 0.0
        %2866 = vmatpush.xpose.msra.mxu0 0.0
        %2867 = vmatpush.xpose.msra.mxu0 0.0
        %2868 = vmatpush.xpose.msra.mxu0 %v566
        %2869 = vmatpush.xpose.msra.mxu0 %v374
        %2870 = vmatmul.f32.gmra.mxu0 %v829
        %v2871 = vpop.f32.mrf.mxu0
        %v2872 = vadd.f32 %v2852, %v2871
        %2873 = vdwg.mxu0
        %2874 = vmatpush.xpose.msra.mxu0 0.0
        %2875 = vmatpush.xpose.msra.mxu0 0.0
        %2876 = vmatpush.xpose.msra.mxu0 0.0
        %2877 = vmatpush.xpose.msra.mxu0 0.0
        %2878 = vmatpush.xpose.msra.mxu0 0.0
        %2879 = vmatpush.xpose.msra.mxu0 0.0
        %2880 = vmatpush.xpose.msra.mxu0 0.0
        %2881 = vmatpush.xpose.msra.mxu0 0.0
        %2882 = vmatpush.xpose.msra.mxu0 0.0
        %2883 = vmatpush.xpose.msra.mxu0 0.0
        %2884 = vmatpush.xpose.msra.mxu0 0.0
        %2885 = vmatpush.xpose.msra.mxu0 0.0
        %2886 = vmatpush.xpose.msra.mxu0 0.0
        %2887 = vmatpush.xpose.msra.mxu0 0.0
        %2888 = vmatpush.xpose.msra.mxu0 %v567
        %2889 = vmatpush.xpose.msra.mxu0 %v375
        %2890 = vmatmul.f32.gmra.mxu0 %v830
        %v2891 = vpop.f32.mrf.mxu0
        %v2892 = vadd.f32 %v2872, %v2891
        %2893 = vdwg.mxu0
        %2894 = vmatpush.xpose.msra.mxu0 0.0
        %2895 = vmatpush.xpose.msra.mxu0 0.0
        %2896 = vmatpush.xpose.msra.mxu0 0.0
        %2897 = vmatpush.xpose.msra.mxu0 0.0
        %2898 = vmatpush.xpose.msra.mxu0 0.0
        %2899 = vmatpush.xpose.msra.mxu0 0.0
        %2900 = vmatpush.xpose.msra.mxu0 0.0
        %2901 = vmatpush.xpose.msra.mxu0 0.0
        %2902 = vmatpush.xpose.msra.mxu0 0.0
        %2903 = vmatpush.xpose.msra.mxu0 0.0
        %2904 = vmatpush.xpose.msra.mxu0 0.0
        %2905 = vmatpush.xpose.msra.mxu0 0.0
        %2906 = vmatpush.xpose.msra.mxu0 0.0
        %2907 = vmatpush.xpose.msra.mxu0 0.0
        %2908 = vmatpush.xpose.msra.mxu0 %v568
        %2909 = vmatpush.xpose.msra.mxu0 %v376
        %2910 = vmatmul.f32.gmra.mxu0 %v831
        %v2911 = vpop.f32.mrf.mxu0
        %v2912 = vadd.f32 %v2892, %v2911
        %2913 = vdwg.mxu0
        %2914 = vmatpush.xpose.msra.mxu0 0.0
        %2915 = vmatpush.xpose.msra.mxu0 0.0
        %2916 = vmatpush.xpose.msra.mxu0 0.0
        %2917 = vmatpush.xpose.msra.mxu0 0.0
        %2918 = vmatpush.xpose.msra.mxu0 0.0
        %2919 = vmatpush.xpose.msra.mxu0 0.0
        %2920 = vmatpush.xpose.msra.mxu0 0.0
        %2921 = vmatpush.xpose.msra.mxu0 0.0
        %2922 = vmatpush.xpose.msra.mxu0 0.0
        %2923 = vmatpush.xpose.msra.mxu0 0.0
        %2924 = vmatpush.xpose.msra.mxu0 0.0
        %2925 = vmatpush.xpose.msra.mxu0 0.0
        %2926 = vmatpush.xpose.msra.mxu0 0.0
        %2927 = vmatpush.xpose.msra.mxu0 0.0
        %2928 = vmatpush.xpose.msra.mxu0 %v569
        %2929 = vmatpush.xpose.msra.mxu0 %v377
        %2930 = vmatmul.f32.gmra.mxu0 %v834
        %v2931 = vpop.f32.mrf.mxu0
        %v2932 = vadd.f32 %v2912, %v2931
        %2933 = vdwg.mxu0
        %2934 = vmatpush.xpose.msra.mxu0 0.0
        %2935 = vmatpush.xpose.msra.mxu0 0.0
        %2936 = vmatpush.xpose.msra.mxu0 0.0
        %2937 = vmatpush.xpose.msra.mxu0 0.0
        %2938 = vmatpush.xpose.msra.mxu0 0.0
        %2939 = vmatpush.xpose.msra.mxu0 0.0
        %2940 = vmatpush.xpose.msra.mxu0 0.0
        %2941 = vmatpush.xpose.msra.mxu0 0.0
        %2942 = vmatpush.xpose.msra.mxu0 0.0
        %2943 = vmatpush.xpose.msra.mxu0 0.0
        %2944 = vmatpush.xpose.msra.mxu0 0.0
        %2945 = vmatpush.xpose.msra.mxu0 0.0
        %2946 = vmatpush.xpose.msra.mxu0 0.0
        %2947 = vmatpush.xpose.msra.mxu0 0.0
        %2948 = vmatpush.xpose.msra.mxu0 %v570
        %2949 = vmatpush.xpose.msra.mxu0 %v378
        %2950 = vmatmul.f32.gmra.mxu0 %v835
        %v2951 = vpop.f32.mrf.mxu0
        %v2952 = vadd.f32 %v2932, %v2951
        %2953 = vdwg.mxu0
        %2954 = vmatpush.xpose.msra.mxu0 0.0
        %2955 = vmatpush.xpose.msra.mxu0 0.0
        %2956 = vmatpush.xpose.msra.mxu0 0.0
        %2957 = vmatpush.xpose.msra.mxu0 0.0
        %2958 = vmatpush.xpose.msra.mxu0 0.0
        %2959 = vmatpush.xpose.msra.mxu0 0.0
        %2960 = vmatpush.xpose.msra.mxu0 0.0
        %2961 = vmatpush.xpose.msra.mxu0 0.0
        %2962 = vmatpush.xpose.msra.mxu0 0.0
        %2963 = vmatpush.xpose.msra.mxu0 0.0
        %2964 = vmatpush.xpose.msra.mxu0 0.0
        %2965 = vmatpush.xpose.msra.mxu0 0.0
        %2966 = vmatpush.xpose.msra.mxu0 0.0
        %2967 = vmatpush.xpose.msra.mxu0 0.0
        %2968 = vmatpush.xpose.msra.mxu0 %v571
        %2969 = vmatpush.xpose.msra.mxu0 %v379
        %2970 = vmatmul.f32.gmra.mxu0 %v836
        %v2971 = vpop.f32.mrf.mxu0
        %v2972 = vadd.f32 %v2952, %v2971
        %2973 = vdwg.mxu0
        %2974 = vmatpush.xpose.msra.mxu0 0.0
        %2975 = vmatpush.xpose.msra.mxu0 0.0
        %2976 = vmatpush.xpose.msra.mxu0 0.0
        %2977 = vmatpush.xpose.msra.mxu0 0.0
        %2978 = vmatpush.xpose.msra.mxu0 0.0
        %2979 = vmatpush.xpose.msra.mxu0 0.0
        %2980 = vmatpush.xpose.msra.mxu0 0.0
        %2981 = vmatpush.xpose.msra.mxu0 0.0
        %2982 = vmatpush.xpose.msra.mxu0 0.0
        %2983 = vmatpush.xpose.msra.mxu0 0.0
        %2984 = vmatpush.xpose.msra.mxu0 0.0
        %2985 = vmatpush.xpose.msra.mxu0 0.0
        %2986 = vmatpush.xpose.msra.mxu0 0.0
        %2987 = vmatpush.xpose.msra.mxu0 0.0
        %2988 = vmatpush.xpose.msra.mxu0 %v572
        %2989 = vmatpush.xpose.msra.mxu0 %v380
        %2990 = vmatmul.f32.gmra.mxu0 %v837
        %v2991 = vpop.f32.mrf.mxu0
        %v2992 = vadd.f32 %v2972, %v2991
        %2993 = vdwg.mxu0
        %2994 = vmatpush.xpose.msra.mxu0 0.0
        %2995 = vmatpush.xpose.msra.mxu0 0.0
        %2996 = vmatpush.xpose.msra.mxu0 0.0
        %2997 = vmatpush.xpose.msra.mxu0 0.0
        %2998 = vmatpush.xpose.msra.mxu0 0.0
        %2999 = vmatpush.xpose.msra.mxu0 0.0
        %3000 = vmatpush.xpose.msra.mxu0 0.0
        %3001 = vmatpush.xpose.msra.mxu0 0.0
        %3002 = vmatpush.xpose.msra.mxu0 0.0
        %3003 = vmatpush.xpose.msra.mxu0 0.0
        %3004 = vmatpush.xpose.msra.mxu0 0.0
        %3005 = vmatpush.xpose.msra.mxu0 0.0
        %3006 = vmatpush.xpose.msra.mxu0 0.0
        %3007 = vmatpush.xpose.msra.mxu0 0.0
        %3008 = vmatpush.xpose.msra.mxu0 %v573
        %3009 = vmatpush.xpose.msra.mxu0 %v381
        %3010 = vmatmul.f32.gmra.mxu0 %v838
        %v3011 = vpop.f32.mrf.mxu0
        %v3012 = vadd.f32 %v2992, %v3011
        %3013 = vdwg.mxu0
        %3014 = vmatpush.xpose.msra.mxu0 0.0
        %3015 = vmatpush.xpose.msra.mxu0 0.0
        %3016 = vmatpush.xpose.msra.mxu0 0.0
        %3017 = vmatpush.xpose.msra.mxu0 0.0
        %3018 = vmatpush.xpose.msra.mxu0 0.0
        %3019 = vmatpush.xpose.msra.mxu0 0.0
        %3020 = vmatpush.xpose.msra.mxu0 0.0
        %3021 = vmatpush.xpose.msra.mxu0 0.0
        %3022 = vmatpush.xpose.msra.mxu0 0.0
        %3023 = vmatpush.xpose.msra.mxu0 0.0
        %3024 = vmatpush.xpose.msra.mxu0 0.0
        %3025 = vmatpush.xpose.msra.mxu0 0.0
        %3026 = vmatpush.xpose.msra.mxu0 0.0
        %3027 = vmatpush.xpose.msra.mxu0 0.0
        %3028 = vmatpush.xpose.msra.mxu0 %v574
        %3029 = vmatpush.xpose.msra.mxu0 %v382
        %3030 = vmatmul.f32.gmra.mxu0 %v839
        %v3031 = vpop.f32.mrf.mxu0
        %v3032 = vadd.f32 %v3012, %v3031
        %3033 = vdwg.mxu0
        %3034 = vmatpush.xpose.msra.mxu0 0.0
        %3035 = vmatpush.xpose.msra.mxu0 0.0
        %3036 = vmatpush.xpose.msra.mxu0 0.0
        %3037 = vmatpush.xpose.msra.mxu0 0.0
        %3038 = vmatpush.xpose.msra.mxu0 0.0
        %3039 = vmatpush.xpose.msra.mxu0 0.0
        %3040 = vmatpush.xpose.msra.mxu0 0.0
        %3041 = vmatpush.xpose.msra.mxu0 0.0
        %3042 = vmatpush.xpose.msra.mxu0 0.0
        %3043 = vmatpush.xpose.msra.mxu0 0.0
        %3044 = vmatpush.xpose.msra.mxu0 0.0
        %3045 = vmatpush.xpose.msra.mxu0 0.0
        %3046 = vmatpush.xpose.msra.mxu0 0.0
        %3047 = vmatpush.xpose.msra.mxu0 0.0
        %3048 = vmatpush.xpose.msra.mxu0 %v575
        %3049 = vmatpush.xpose.msra.mxu0 %v383
        %3050 = vmatmul.f32.gmra.mxu0 %v840
        %v3051 = vpop.f32.mrf.mxu0
        %v3052 = vadd.f32 %v3032, %v3051
        %3053 = vdwg.mxu0
        %3054 = vmatpush.xpose.msra.mxu0 0.0
        %3055 = vmatpush.xpose.msra.mxu0 0.0
        %3056 = vmatpush.xpose.msra.mxu0 0.0
        %3057 = vmatpush.xpose.msra.mxu0 0.0
        %3058 = vmatpush.xpose.msra.mxu0 0.0
        %3059 = vmatpush.xpose.msra.mxu0 0.0
        %3060 = vmatpush.xpose.msra.mxu0 0.0
        %3061 = vmatpush.xpose.msra.mxu0 0.0
        %3062 = vmatpush.xpose.msra.mxu0 0.0
        %3063 = vmatpush.xpose.msra.mxu0 0.0
        %3064 = vmatpush.xpose.msra.mxu0 0.0
        %3065 = vmatpush.xpose.msra.mxu0 0.0
        %3066 = vmatpush.xpose.msra.mxu0 0.0
        %3067 = vmatpush.xpose.msra.mxu0 0.0
        %3068 = vmatpush.xpose.msra.mxu0 %v576
        %3069 = vmatpush.xpose.msra.mxu0 %v384
        %3070 = vmatmul.f32.gmra.mxu0 %v841
        %v3071 = vpop.f32.mrf.mxu0
        %v3072 = vadd.f32 %v3052, %v3071
        %3073 = vdwg.mxu0
        %3074 = vmatpush.xpose.msra.mxu0 0.0
        %3075 = vmatpush.xpose.msra.mxu0 0.0
        %3076 = vmatpush.xpose.msra.mxu0 0.0
        %3077 = vmatpush.xpose.msra.mxu0 0.0
        %3078 = vmatpush.xpose.msra.mxu0 0.0
        %3079 = vmatpush.xpose.msra.mxu0 0.0
        %3080 = vmatpush.xpose.msra.mxu0 0.0
        %3081 = vmatpush.xpose.msra.mxu0 0.0
        %3082 = vmatpush.xpose.msra.mxu0 0.0
        %3083 = vmatpush.xpose.msra.mxu0 0.0
        %3084 = vmatpush.xpose.msra.mxu0 0.0
        %3085 = vmatpush.xpose.msra.mxu0 0.0
        %3086 = vmatpush.xpose.msra.mxu0 0.0
        %3087 = vmatpush.xpose.msra.mxu0 0.0
        %3088 = vmatpush.xpose.msra.mxu0 %v577
        %3089 = vmatpush.xpose.msra.mxu0 %v385
        %3090 = vmatmul.f32.gmra.mxu0 %v844
        %v3091 = vpop.f32.mrf.mxu0
        %v3092 = vadd.f32 %v3072, %v3091
        %3093 = vdwg.mxu0
        %3094 = vmatpush.xpose.msra.mxu0 0.0
        %3095 = vmatpush.xpose.msra.mxu0 0.0
        %3096 = vmatpush.xpose.msra.mxu0 0.0
        %3097 = vmatpush.xpose.msra.mxu0 0.0
        %3098 = vmatpush.xpose.msra.mxu0 0.0
        %3099 = vmatpush.xpose.msra.mxu0 0.0
        %3100 = vmatpush.xpose.msra.mxu0 0.0
        %3101 = vmatpush.xpose.msra.mxu0 0.0
        %3102 = vmatpush.xpose.msra.mxu0 0.0
        %3103 = vmatpush.xpose.msra.mxu0 0.0
        %3104 = vmatpush.xpose.msra.mxu0 0.0
        %3105 = vmatpush.xpose.msra.mxu0 0.0
        %3106 = vmatpush.xpose.msra.mxu0 0.0
        %3107 = vmatpush.xpose.msra.mxu0 0.0
        %3108 = vmatpush.xpose.msra.mxu0 %v578
        %3109 = vmatpush.xpose.msra.mxu0 %v386
        %3110 = vmatmul.f32.gmra.mxu0 %v845
        %v3111 = vpop.f32.mrf.mxu0
        %v3112 = vadd.f32 %v3092, %v3111
        %3113 = vdwg.mxu0
        %3114 = vmatpush.xpose.msra.mxu0 0.0
        %3115 = vmatpush.xpose.msra.mxu0 0.0
        %3116 = vmatpush.xpose.msra.mxu0 0.0
        %3117 = vmatpush.xpose.msra.mxu0 0.0
        %3118 = vmatpush.xpose.msra.mxu0 0.0
        %3119 = vmatpush.xpose.msra.mxu0 0.0
        %3120 = vmatpush.xpose.msra.mxu0 0.0
        %3121 = vmatpush.xpose.msra.mxu0 0.0
        %3122 = vmatpush.xpose.msra.mxu0 0.0
        %3123 = vmatpush.xpose.msra.mxu0 0.0
        %3124 = vmatpush.xpose.msra.mxu0 0.0
        %3125 = vmatpush.xpose.msra.mxu0 0.0
        %3126 = vmatpush.xpose.msra.mxu0 0.0
        %3127 = vmatpush.xpose.msra.mxu0 0.0
        %3128 = vmatpush.xpose.msra.mxu0 %v579
        %3129 = vmatpush.xpose.msra.mxu0 %v387
        %3130 = vmatmul.f32.gmra.mxu0 %v846
        %v3131 = vpop.f32.mrf.mxu0
        %v3132 = vadd.f32 %v3112, %v3131
        %3133 = vdwg.mxu0
        %3134 = vmatpush.xpose.msra.mxu0 0.0
        %3135 = vmatpush.xpose.msra.mxu0 0.0
        %3136 = vmatpush.xpose.msra.mxu0 0.0
        %3137 = vmatpush.xpose.msra.mxu0 0.0
        %3138 = vmatpush.xpose.msra.mxu0 0.0
        %3139 = vmatpush.xpose.msra.mxu0 0.0
        %3140 = vmatpush.xpose.msra.mxu0 0.0
        %3141 = vmatpush.xpose.msra.mxu0 0.0
        %3142 = vmatpush.xpose.msra.mxu0 0.0
        %3143 = vmatpush.xpose.msra.mxu0 0.0
        %3144 = vmatpush.xpose.msra.mxu0 0.0
        %3145 = vmatpush.xpose.msra.mxu0 0.0
        %3146 = vmatpush.xpose.msra.mxu0 0.0
        %3147 = vmatpush.xpose.msra.mxu0 0.0
        %3148 = vmatpush.xpose.msra.mxu0 %v580
        %3149 = vmatpush.xpose.msra.mxu0 %v388
        %3150 = vmatmul.f32.gmra.mxu0 %v847
        %v3151 = vpop.f32.mrf.mxu0
        %v3152 = vadd.f32 %v3132, %v3151
        %3153 = vdwg.mxu0
        %3154 = vmatpush.xpose.msra.mxu0 0.0
        %3155 = vmatpush.xpose.msra.mxu0 0.0
        %3156 = vmatpush.xpose.msra.mxu0 0.0
        %3157 = vmatpush.xpose.msra.mxu0 0.0
        %3158 = vmatpush.xpose.msra.mxu0 0.0
        %3159 = vmatpush.xpose.msra.mxu0 0.0
        %3160 = vmatpush.xpose.msra.mxu0 0.0
        %3161 = vmatpush.xpose.msra.mxu0 0.0
        %3162 = vmatpush.xpose.msra.mxu0 0.0
        %3163 = vmatpush.xpose.msra.mxu0 0.0
        %3164 = vmatpush.xpose.msra.mxu0 0.0
        %3165 = vmatpush.xpose.msra.mxu0 0.0
        %3166 = vmatpush.xpose.msra.mxu0 0.0
        %3167 = vmatpush.xpose.msra.mxu0 0.0
        %3168 = vmatpush.xpose.msra.mxu0 %v581
        %3169 = vmatpush.xpose.msra.mxu0 %v389
        %3170 = vmatmul.f32.gmra.mxu0 %v848
        %v3171 = vpop.f32.mrf.mxu0
        %v3172 = vadd.f32 %v3152, %v3171
        %3173 = vdwg.mxu0
        %3174 = vmatpush.xpose.msra.mxu0 0.0
        %3175 = vmatpush.xpose.msra.mxu0 0.0
        %3176 = vmatpush.xpose.msra.mxu0 0.0
        %3177 = vmatpush.xpose.msra.mxu0 0.0
        %3178 = vmatpush.xpose.msra.mxu0 0.0
        %3179 = vmatpush.xpose.msra.mxu0 0.0
        %3180 = vmatpush.xpose.msra.mxu0 0.0
        %3181 = vmatpush.xpose.msra.mxu0 0.0
        %3182 = vmatpush.xpose.msra.mxu0 0.0
        %3183 = vmatpush.xpose.msra.mxu0 0.0
        %3184 = vmatpush.xpose.msra.mxu0 0.0
        %3185 = vmatpush.xpose.msra.mxu0 0.0
        %3186 = vmatpush.xpose.msra.mxu0 0.0
        %3187 = vmatpush.xpose.msra.mxu0 0.0
        %3188 = vmatpush.xpose.msra.mxu0 %v582
        %3189 = vmatpush.xpose.msra.mxu0 %v390
        %3190 = vmatmul.f32.gmra.mxu0 %v849
        %v3191 = vpop.f32.mrf.mxu0
        %v3192 = vadd.f32 %v3172, %v3191
        %3193 = vdwg.mxu0
        %3194 = vmatpush.xpose.msra.mxu0 0.0
        %3195 = vmatpush.xpose.msra.mxu0 0.0
        %3196 = vmatpush.xpose.msra.mxu0 0.0
        %3197 = vmatpush.xpose.msra.mxu0 0.0
        %3198 = vmatpush.xpose.msra.mxu0 0.0
        %3199 = vmatpush.xpose.msra.mxu0 0.0
        %3200 = vmatpush.xpose.msra.mxu0 0.0
        %3201 = vmatpush.xpose.msra.mxu0 0.0
        %3202 = vmatpush.xpose.msra.mxu0 0.0
        %3203 = vmatpush.xpose.msra.mxu0 0.0
        %3204 = vmatpush.xpose.msra.mxu0 0.0
        %3205 = vmatpush.xpose.msra.mxu0 0.0
        %3206 = vmatpush.xpose.msra.mxu0 0.0
        %3207 = vmatpush.xpose.msra.mxu0 0.0
        %3208 = vmatpush.xpose.msra.mxu0 %v583
        %3209 = vmatpush.xpose.msra.mxu0 %v391
        %3210 = vmatmul.f32.gmra.mxu0 %v850
        %v3211 = vpop.f32.mrf.mxu0
        %v3212 = vadd.f32 %v3192, %v3211
        %3213 = vdwg.mxu0
        %3214 = vmatpush.xpose.msra.mxu0 0.0
        %3215 = vmatpush.xpose.msra.mxu0 0.0
        %3216 = vmatpush.xpose.msra.mxu0 0.0
        %3217 = vmatpush.xpose.msra.mxu0 0.0
        %3218 = vmatpush.xpose.msra.mxu0 0.0
        %3219 = vmatpush.xpose.msra.mxu0 0.0
        %3220 = vmatpush.xpose.msra.mxu0 0.0
        %3221 = vmatpush.xpose.msra.mxu0 0.0
        %3222 = vmatpush.xpose.msra.mxu0 0.0
        %3223 = vmatpush.xpose.msra.mxu0 0.0
        %3224 = vmatpush.xpose.msra.mxu0 0.0
        %3225 = vmatpush.xpose.msra.mxu0 0.0
        %3226 = vmatpush.xpose.msra.mxu0 0.0
        %3227 = vmatpush.xpose.msra.mxu0 0.0
        %3228 = vmatpush.xpose.msra.mxu0 %v584
        %3229 = vmatpush.xpose.msra.mxu0 %v392
        %3230 = vmatmul.f32.gmra.mxu0 %v851
        %v3231 = vpop.f32.mrf.mxu0
        %v3232 = vadd.f32 %v3212, %v3231
        %3233 = vdwg.mxu0
        %3234 = vmatpush.xpose.msra.mxu0 0.0
        %3235 = vmatpush.xpose.msra.mxu0 0.0
        %3236 = vmatpush.xpose.msra.mxu0 0.0
        %3237 = vmatpush.xpose.msra.mxu0 0.0
        %3238 = vmatpush.xpose.msra.mxu0 0.0
        %3239 = vmatpush.xpose.msra.mxu0 0.0
        %3240 = vmatpush.xpose.msra.mxu0 0.0
        %3241 = vmatpush.xpose.msra.mxu0 0.0
        %3242 = vmatpush.xpose.msra.mxu0 0.0
        %3243 = vmatpush.xpose.msra.mxu0 0.0
        %3244 = vmatpush.xpose.msra.mxu0 0.0
        %3245 = vmatpush.xpose.msra.mxu0 0.0
        %3246 = vmatpush.xpose.msra.mxu0 0.0
        %3247 = vmatpush.xpose.msra.mxu0 0.0
        %3248 = vmatpush.xpose.msra.mxu0 %v585
        %3249 = vmatpush.xpose.msra.mxu0 %v393
        %3250 = vmatmul.f32.gmra.mxu0 %v854
        %v3251 = vpop.f32.mrf.mxu0
        %v3252 = vadd.f32 %v3232, %v3251
        %3253 = vdwg.mxu0
        %3254 = vmatpush.xpose.msra.mxu0 0.0
        %3255 = vmatpush.xpose.msra.mxu0 0.0
        %3256 = vmatpush.xpose.msra.mxu0 0.0
        %3257 = vmatpush.xpose.msra.mxu0 0.0
        %3258 = vmatpush.xpose.msra.mxu0 0.0
        %3259 = vmatpush.xpose.msra.mxu0 0.0
        %3260 = vmatpush.xpose.msra.mxu0 0.0
        %3261 = vmatpush.xpose.msra.mxu0 0.0
        %3262 = vmatpush.xpose.msra.mxu0 0.0
        %3263 = vmatpush.xpose.msra.mxu0 0.0
        %3264 = vmatpush.xpose.msra.mxu0 0.0
        %3265 = vmatpush.xpose.msra.mxu0 0.0
        %3266 = vmatpush.xpose.msra.mxu0 0.0
        %3267 = vmatpush.xpose.msra.mxu0 0.0
        %3268 = vmatpush.xpose.msra.mxu0 %v586
        %3269 = vmatpush.xpose.msra.mxu0 %v394
        %3270 = vmatmul.f32.gmra.mxu0 %v855
        %v3271 = vpop.f32.mrf.mxu0
        %v3272 = vadd.f32 %v3252, %v3271
        %3273 = vdwg.mxu0
        %3274 = vmatpush.xpose.msra.mxu0 0.0
        %3275 = vmatpush.xpose.msra.mxu0 0.0
        %3276 = vmatpush.xpose.msra.mxu0 0.0
        %3277 = vmatpush.xpose.msra.mxu0 0.0
        %3278 = vmatpush.xpose.msra.mxu0 0.0
        %3279 = vmatpush.xpose.msra.mxu0 0.0
        %3280 = vmatpush.xpose.msra.mxu0 0.0
        %3281 = vmatpush.xpose.msra.mxu0 0.0
        %3282 = vmatpush.xpose.msra.mxu0 0.0
        %3283 = vmatpush.xpose.msra.mxu0 0.0
        %3284 = vmatpush.xpose.msra.mxu0 0.0
        %3285 = vmatpush.xpose.msra.mxu0 0.0
        %3286 = vmatpush.xpose.msra.mxu0 0.0
        %3287 = vmatpush.xpose.msra.mxu0 0.0
        %3288 = vmatpush.xpose.msra.mxu0 %v587
        %3289 = vmatpush.xpose.msra.mxu0 %v395
        %3290 = vmatmul.f32.gmra.mxu0 %v856
        %v3291 = vpop.f32.mrf.mxu0
        %v3292 = vadd.f32 %v3272, %v3291
        %3293 = vdwg.mxu0
        %3294 = vmatpush.xpose.msra.mxu0 0.0
        %3295 = vmatpush.xpose.msra.mxu0 0.0
        %3296 = vmatpush.xpose.msra.mxu0 0.0
        %3297 = vmatpush.xpose.msra.mxu0 0.0
        %3298 = vmatpush.xpose.msra.mxu0 0.0
        %3299 = vmatpush.xpose.msra.mxu0 0.0
        %3300 = vmatpush.xpose.msra.mxu0 0.0
        %3301 = vmatpush.xpose.msra.mxu0 0.0
        %3302 = vmatpush.xpose.msra.mxu0 0.0
        %3303 = vmatpush.xpose.msra.mxu0 0.0
        %3304 = vmatpush.xpose.msra.mxu0 0.0
        %3305 = vmatpush.xpose.msra.mxu0 0.0
        %3306 = vmatpush.xpose.msra.mxu0 0.0
        %3307 = vmatpush.xpose.msra.mxu0 0.0
        %3308 = vmatpush.xpose.msra.mxu0 %v588
        %3309 = vmatpush.xpose.msra.mxu0 %v396
        %3310 = vmatmul.f32.gmra.mxu0 %v857
        %v3311 = vpop.f32.mrf.mxu0
        %v3312 = vadd.f32 %v3292, %v3311
        %3313 = vdwg.mxu0
        %3314 = vmatpush.xpose.msra.mxu0 0.0
        %3315 = vmatpush.xpose.msra.mxu0 0.0
        %3316 = vmatpush.xpose.msra.mxu0 0.0
        %3317 = vmatpush.xpose.msra.mxu0 0.0
        %3318 = vmatpush.xpose.msra.mxu0 0.0
        %3319 = vmatpush.xpose.msra.mxu0 0.0
        %3320 = vmatpush.xpose.msra.mxu0 0.0
        %3321 = vmatpush.xpose.msra.mxu0 0.0
        %3322 = vmatpush.xpose.msra.mxu0 0.0
        %3323 = vmatpush.xpose.msra.mxu0 0.0
        %3324 = vmatpush.xpose.msra.mxu0 0.0
        %3325 = vmatpush.xpose.msra.mxu0 0.0
        %3326 = vmatpush.xpose.msra.mxu0 0.0
        %3327 = vmatpush.xpose.msra.mxu0 0.0
        %3328 = vmatpush.xpose.msra.mxu0 %v589
        %3329 = vmatpush.xpose.msra.mxu0 %v397
        %3330 = vmatmul.f32.gmra.mxu0 %v858
        %v3331 = vpop.f32.mrf.mxu0
        %v3332 = vadd.f32 %v3312, %v3331
        %3333 = vdwg.mxu0
        %3334 = vmatpush.xpose.msra.mxu0 0.0
        %3335 = vmatpush.xpose.msra.mxu0 0.0
        %3336 = vmatpush.xpose.msra.mxu0 0.0
        %3337 = vmatpush.xpose.msra.mxu0 0.0
        %3338 = vmatpush.xpose.msra.mxu0 0.0
        %3339 = vmatpush.xpose.msra.mxu0 0.0
        %3340 = vmatpush.xpose.msra.mxu0 0.0
        %3341 = vmatpush.xpose.msra.mxu0 0.0
        %3342 = vmatpush.xpose.msra.mxu0 0.0
        %3343 = vmatpush.xpose.msra.mxu0 0.0
        %3344 = vmatpush.xpose.msra.mxu0 0.0
        %3345 = vmatpush.xpose.msra.mxu0 0.0
        %3346 = vmatpush.xpose.msra.mxu0 0.0
        %3347 = vmatpush.xpose.msra.mxu0 0.0
        %3348 = vmatpush.xpose.msra.mxu0 %v590
        %3349 = vmatpush.xpose.msra.mxu0 %v398
        %3350 = vmatmul.f32.gmra.mxu0 %v859
        %v3351 = vpop.f32.mrf.mxu0
        %v3352 = vadd.f32 %v3332, %v3351
        %3353 = vdwg.mxu0
        %3354 = vmatpush.xpose.msra.mxu0 0.0
        %3355 = vmatpush.xpose.msra.mxu0 0.0
        %3356 = vmatpush.xpose.msra.mxu0 0.0
        %3357 = vmatpush.xpose.msra.mxu0 0.0
        %3358 = vmatpush.xpose.msra.mxu0 0.0
        %3359 = vmatpush.xpose.msra.mxu0 0.0
        %3360 = vmatpush.xpose.msra.mxu0 0.0
        %3361 = vmatpush.xpose.msra.mxu0 0.0
        %3362 = vmatpush.xpose.msra.mxu0 0.0
        %3363 = vmatpush.xpose.msra.mxu0 0.0
        %3364 = vmatpush.xpose.msra.mxu0 0.0
        %3365 = vmatpush.xpose.msra.mxu0 0.0
        %3366 = vmatpush.xpose.msra.mxu0 0.0
        %3367 = vmatpush.xpose.msra.mxu0 0.0
        %3368 = vmatpush.xpose.msra.mxu0 %v591
        %3369 = vmatpush.xpose.msra.mxu0 %v399
        %3370 = vmatmul.f32.gmra.mxu0 %v860
        %v3371 = vpop.f32.mrf.mxu0
        %v3372 = vadd.f32 %v3352, %v3371
        %3373 = vdwg.mxu0
        %3374 = vmatpush.xpose.msra.mxu0 0.0
        %3375 = vmatpush.xpose.msra.mxu0 0.0
        %3376 = vmatpush.xpose.msra.mxu0 0.0
        %3377 = vmatpush.xpose.msra.mxu0 0.0
        %3378 = vmatpush.xpose.msra.mxu0 0.0
        %3379 = vmatpush.xpose.msra.mxu0 0.0
        %3380 = vmatpush.xpose.msra.mxu0 0.0
        %3381 = vmatpush.xpose.msra.mxu0 0.0
        %3382 = vmatpush.xpose.msra.mxu0 0.0
        %3383 = vmatpush.xpose.msra.mxu0 0.0
        %3384 = vmatpush.xpose.msra.mxu0 0.0
        %3385 = vmatpush.xpose.msra.mxu0 0.0
        %3386 = vmatpush.xpose.msra.mxu0 0.0
        %3387 = vmatpush.xpose.msra.mxu0 0.0
        %3388 = vmatpush.xpose.msra.mxu0 %v592
        %3389 = vmatpush.xpose.msra.mxu0 %v400
        %3390 = vmatmul.f32.gmra.mxu0 %v861
        %v3391 = vpop.f32.mrf.mxu0
        %v3392 = vadd.f32 %v3372, %v3391
        %3393 = vdwg.mxu0
        %3394 = vmatpush.xpose.msra.mxu0 0.0
        %3395 = vmatpush.xpose.msra.mxu0 0.0
        %3396 = vmatpush.xpose.msra.mxu0 0.0
        %3397 = vmatpush.xpose.msra.mxu0 0.0
        %3398 = vmatpush.xpose.msra.mxu0 0.0
        %3399 = vmatpush.xpose.msra.mxu0 0.0
        %3400 = vmatpush.xpose.msra.mxu0 0.0
        %3401 = vmatpush.xpose.msra.mxu0 0.0
        %3402 = vmatpush.xpose.msra.mxu0 0.0
        %3403 = vmatpush.xpose.msra.mxu0 0.0
        %3404 = vmatpush.xpose.msra.mxu0 0.0
        %3405 = vmatpush.xpose.msra.mxu0 0.0
        %3406 = vmatpush.xpose.msra.mxu0 0.0
        %3407 = vmatpush.xpose.msra.mxu0 0.0
        %3408 = vmatpush.xpose.msra.mxu0 %v593
        %3409 = vmatpush.xpose.msra.mxu0 %v401
        %3410 = vmatmul.f32.gmra.mxu0 %v864
        %v3411 = vpop.f32.mrf.mxu0
        %v3412 = vadd.f32 %v3392, %v3411
        %3413 = vdwg.mxu0
        %3414 = vmatpush.xpose.msra.mxu0 0.0
        %3415 = vmatpush.xpose.msra.mxu0 0.0
        %3416 = vmatpush.xpose.msra.mxu0 0.0
        %3417 = vmatpush.xpose.msra.mxu0 0.0
        %3418 = vmatpush.xpose.msra.mxu0 0.0
        %3419 = vmatpush.xpose.msra.mxu0 0.0
        %3420 = vmatpush.xpose.msra.mxu0 0.0
        %3421 = vmatpush.xpose.msra.mxu0 0.0
        %3422 = vmatpush.xpose.msra.mxu0 0.0
        %3423 = vmatpush.xpose.msra.mxu0 0.0
        %3424 = vmatpush.xpose.msra.mxu0 0.0
        %3425 = vmatpush.xpose.msra.mxu0 0.0
        %3426 = vmatpush.xpose.msra.mxu0 0.0
        %3427 = vmatpush.xpose.msra.mxu0 0.0
        %3428 = vmatpush.xpose.msra.mxu0 %v594
        %3429 = vmatpush.xpose.msra.mxu0 %v402
        %3430 = vmatmul.f32.gmra.mxu0 %v865
        %v3431 = vpop.f32.mrf.mxu0
        %v3432 = vadd.f32 %v3412, %v3431
        %3433 = vdwg.mxu0
        %3434 = vmatpush.xpose.msra.mxu0 0.0
        %3435 = vmatpush.xpose.msra.mxu0 0.0
        %3436 = vmatpush.xpose.msra.mxu0 0.0
        %3437 = vmatpush.xpose.msra.mxu0 0.0
        %3438 = vmatpush.xpose.msra.mxu0 0.0
        %3439 = vmatpush.xpose.msra.mxu0 0.0
        %3440 = vmatpush.xpose.msra.mxu0 0.0
        %3441 = vmatpush.xpose.msra.mxu0 0.0
        %3442 = vmatpush.xpose.msra.mxu0 0.0
        %3443 = vmatpush.xpose.msra.mxu0 0.0
        %3444 = vmatpush.xpose.msra.mxu0 0.0
        %3445 = vmatpush.xpose.msra.mxu0 0.0
        %3446 = vmatpush.xpose.msra.mxu0 0.0
        %3447 = vmatpush.xpose.msra.mxu0 0.0
        %3448 = vmatpush.xpose.msra.mxu0 %v595
        %3449 = vmatpush.xpose.msra.mxu0 %v403
        %3450 = vmatmul.f32.gmra.mxu0 %v866
        %v3451 = vpop.f32.mrf.mxu0
        %v3452 = vadd.f32 %v3432, %v3451
        %3453 = vdwg.mxu0
        %3454 = vmatpush.xpose.msra.mxu0 0.0
        %3455 = vmatpush.xpose.msra.mxu0 0.0
        %3456 = vmatpush.xpose.msra.mxu0 0.0
        %3457 = vmatpush.xpose.msra.mxu0 0.0
        %3458 = vmatpush.xpose.msra.mxu0 0.0
        %3459 = vmatpush.xpose.msra.mxu0 0.0
        %3460 = vmatpush.xpose.msra.mxu0 0.0
        %3461 = vmatpush.xpose.msra.mxu0 0.0
        %3462 = vmatpush.xpose.msra.mxu0 0.0
        %3463 = vmatpush.xpose.msra.mxu0 0.0
        %3464 = vmatpush.xpose.msra.mxu0 0.0
        %3465 = vmatpush.xpose.msra.mxu0 0.0
        %3466 = vmatpush.xpose.msra.mxu0 0.0
        %3467 = vmatpush.xpose.msra.mxu0 0.0
        %3468 = vmatpush.xpose.msra.mxu0 %v596
        %3469 = vmatpush.xpose.msra.mxu0 %v404
        %3470 = vmatmul.f32.gmra.mxu0 %v867
        %v3471 = vpop.f32.mrf.mxu0
        %v3472 = vadd.f32 %v3452, %v3471
        %3473 = vdwg.mxu0
        %3474 = vmatpush.xpose.msra.mxu0 0.0
        %3475 = vmatpush.xpose.msra.mxu0 0.0
        %3476 = vmatpush.xpose.msra.mxu0 0.0
        %3477 = vmatpush.xpose.msra.mxu0 0.0
        %3478 = vmatpush.xpose.msra.mxu0 0.0
        %3479 = vmatpush.xpose.msra.mxu0 0.0
        %3480 = vmatpush.xpose.msra.mxu0 0.0
        %3481 = vmatpush.xpose.msra.mxu0 0.0
        %3482 = vmatpush.xpose.msra.mxu0 0.0
        %3483 = vmatpush.xpose.msra.mxu0 0.0
        %3484 = vmatpush.xpose.msra.mxu0 0.0
        %3485 = vmatpush.xpose.msra.mxu0 0.0
        %3486 = vmatpush.xpose.msra.mxu0 0.0
        %3487 = vmatpush.xpose.msra.mxu0 0.0
        %3488 = vmatpush.xpose.msra.mxu0 %v597
        %3489 = vmatpush.xpose.msra.mxu0 %v405
        %3490 = vmatmul.f32.gmra.mxu0 %v868
        %v3491 = vpop.f32.mrf.mxu0
        %v3492 = vadd.f32 %v3472, %v3491
        %3493 = vdwg.mxu0
        %3494 = vmatpush.xpose.msra.mxu0 0.0
        %3495 = vmatpush.xpose.msra.mxu0 0.0
        %3496 = vmatpush.xpose.msra.mxu0 0.0
        %3497 = vmatpush.xpose.msra.mxu0 0.0
        %3498 = vmatpush.xpose.msra.mxu0 0.0
        %3499 = vmatpush.xpose.msra.mxu0 0.0
        %3500 = vmatpush.xpose.msra.mxu0 0.0
        %3501 = vmatpush.xpose.msra.mxu0 0.0
        %3502 = vmatpush.xpose.msra.mxu0 0.0
        %3503 = vmatpush.xpose.msra.mxu0 0.0
        %3504 = vmatpush.xpose.msra.mxu0 0.0
        %3505 = vmatpush.xpose.msra.mxu0 0.0
        %3506 = vmatpush.xpose.msra.mxu0 0.0
        %3507 = vmatpush.xpose.msra.mxu0 0.0
        %3508 = vmatpush.xpose.msra.mxu0 %v598
        %3509 = vmatpush.xpose.msra.mxu0 %v406
        %3510 = vmatmul.f32.gmra.mxu0 %v869
        %v3511 = vpop.f32.mrf.mxu0
        %v3512 = vadd.f32 %v3492, %v3511
        %3513 = vdwg.mxu0
        %3514 = vmatpush.xpose.msra.mxu0 0.0
        %3515 = vmatpush.xpose.msra.mxu0 0.0
        %3516 = vmatpush.xpose.msra.mxu0 0.0
        %3517 = vmatpush.xpose.msra.mxu0 0.0
        %3518 = vmatpush.xpose.msra.mxu0 0.0
        %3519 = vmatpush.xpose.msra.mxu0 0.0
        %3520 = vmatpush.xpose.msra.mxu0 0.0
        %3521 = vmatpush.xpose.msra.mxu0 0.0
        %3522 = vmatpush.xpose.msra.mxu0 0.0
        %3523 = vmatpush.xpose.msra.mxu0 0.0
        %3524 = vmatpush.xpose.msra.mxu0 0.0
        %3525 = vmatpush.xpose.msra.mxu0 0.0
        %3526 = vmatpush.xpose.msra.mxu0 0.0
        %3527 = vmatpush.xpose.msra.mxu0 0.0
        %3528 = vmatpush.xpose.msra.mxu0 %v599
        %3529 = vmatpush.xpose.msra.mxu0 %v407
        %3530 = vmatmul.f32.gmra.mxu0 %v870
        %v3531 = vpop.f32.mrf.mxu0
        %v3532 = vadd.f32 %v3512, %v3531
        %3533 = vdwg.mxu0
        %3534 = vmatpush.xpose.msra.mxu0 0.0
        %3535 = vmatpush.xpose.msra.mxu0 0.0
        %3536 = vmatpush.xpose.msra.mxu0 0.0
        %3537 = vmatpush.xpose.msra.mxu0 0.0
        %3538 = vmatpush.xpose.msra.mxu0 0.0
        %3539 = vmatpush.xpose.msra.mxu0 0.0
        %3540 = vmatpush.xpose.msra.mxu0 0.0
        %3541 = vmatpush.xpose.msra.mxu0 0.0
        %3542 = vmatpush.xpose.msra.mxu0 0.0
        %3543 = vmatpush.xpose.msra.mxu0 0.0
        %3544 = vmatpush.xpose.msra.mxu0 0.0
        %3545 = vmatpush.xpose.msra.mxu0 0.0
        %3546 = vmatpush.xpose.msra.mxu0 0.0
        %3547 = vmatpush.xpose.msra.mxu0 0.0
        %3548 = vmatpush.xpose.msra.mxu0 %v600
        %3549 = vmatpush.xpose.msra.mxu0 %v408
        %3550 = vmatmul.f32.gmra.mxu0 %v871
        %v3551 = vpop.f32.mrf.mxu0
        %v3552 = vadd.f32 %v3532, %v3551
        %3553 = vdwg.mxu0
        %3554 = vmatpush.xpose.msra.mxu0 0.0
        %3555 = vmatpush.xpose.msra.mxu0 0.0
        %3556 = vmatpush.xpose.msra.mxu0 0.0
        %3557 = vmatpush.xpose.msra.mxu0 0.0
        %3558 = vmatpush.xpose.msra.mxu0 0.0
        %3559 = vmatpush.xpose.msra.mxu0 0.0
        %3560 = vmatpush.xpose.msra.mxu0 0.0
        %3561 = vmatpush.xpose.msra.mxu0 0.0
        %3562 = vmatpush.xpose.msra.mxu0 0.0
        %3563 = vmatpush.xpose.msra.mxu0 0.0
        %3564 = vmatpush.xpose.msra.mxu0 0.0
        %3565 = vmatpush.xpose.msra.mxu0 0.0
        %3566 = vmatpush.xpose.msra.mxu0 0.0
        %3567 = vmatpush.xpose.msra.mxu0 0.0
        %3568 = vmatpush.xpose.msra.mxu0 %v601
        %3569 = vmatpush.xpose.msra.mxu0 %v409
        %3570 = vmatmul.f32.gmra.mxu0 %v874
        %v3571 = vpop.f32.mrf.mxu0
        %v3572 = vadd.f32 %v3552, %v3571
        %3573 = vdwg.mxu0
        %3574 = vmatpush.xpose.msra.mxu0 0.0
        %3575 = vmatpush.xpose.msra.mxu0 0.0
        %3576 = vmatpush.xpose.msra.mxu0 0.0
        %3577 = vmatpush.xpose.msra.mxu0 0.0
        %3578 = vmatpush.xpose.msra.mxu0 0.0
        %3579 = vmatpush.xpose.msra.mxu0 0.0
        %3580 = vmatpush.xpose.msra.mxu0 0.0
        %3581 = vmatpush.xpose.msra.mxu0 0.0
        %3582 = vmatpush.xpose.msra.mxu0 0.0
        %3583 = vmatpush.xpose.msra.mxu0 0.0
        %3584 = vmatpush.xpose.msra.mxu0 0.0
        %3585 = vmatpush.xpose.msra.mxu0 0.0
        %3586 = vmatpush.xpose.msra.mxu0 0.0
        %3587 = vmatpush.xpose.msra.mxu0 0.0
        %3588 = vmatpush.xpose.msra.mxu0 %v602
        %3589 = vmatpush.xpose.msra.mxu0 %v410
        %3590 = vmatmul.f32.gmra.mxu0 %v875
        %v3591 = vpop.f32.mrf.mxu0
        %v3592 = vadd.f32 %v3572, %v3591
        %3593 = vdwg.mxu0
        %3594 = vmatpush.xpose.msra.mxu0 0.0
        %3595 = vmatpush.xpose.msra.mxu0 0.0
        %3596 = vmatpush.xpose.msra.mxu0 0.0
        %3597 = vmatpush.xpose.msra.mxu0 0.0
        %3598 = vmatpush.xpose.msra.mxu0 0.0
        %3599 = vmatpush.xpose.msra.mxu0 0.0
        %3600 = vmatpush.xpose.msra.mxu0 0.0
        %3601 = vmatpush.xpose.msra.mxu0 0.0
        %3602 = vmatpush.xpose.msra.mxu0 0.0
        %3603 = vmatpush.xpose.msra.mxu0 0.0
        %3604 = vmatpush.xpose.msra.mxu0 0.0
        %3605 = vmatpush.xpose.msra.mxu0 0.0
        %3606 = vmatpush.xpose.msra.mxu0 0.0
        %3607 = vmatpush.xpose.msra.mxu0 0.0
        %3608 = vmatpush.xpose.msra.mxu0 %v603
        %3609 = vmatpush.xpose.msra.mxu0 %v411
        %3610 = vmatmul.f32.gmra.mxu0 %v876
        %v3611 = vpop.f32.mrf.mxu0
        %v3612 = vadd.f32 %v3592, %v3611
        %3613 = vdwg.mxu0
        %3614 = vmatpush.xpose.msra.mxu0 0.0
        %3615 = vmatpush.xpose.msra.mxu0 0.0
        %3616 = vmatpush.xpose.msra.mxu0 0.0
        %3617 = vmatpush.xpose.msra.mxu0 0.0
        %3618 = vmatpush.xpose.msra.mxu0 0.0
        %3619 = vmatpush.xpose.msra.mxu0 0.0
        %3620 = vmatpush.xpose.msra.mxu0 0.0
        %3621 = vmatpush.xpose.msra.mxu0 0.0
        %3622 = vmatpush.xpose.msra.mxu0 0.0
        %3623 = vmatpush.xpose.msra.mxu0 0.0
        %3624 = vmatpush.xpose.msra.mxu0 0.0
        %3625 = vmatpush.xpose.msra.mxu0 0.0
        %3626 = vmatpush.xpose.msra.mxu0 0.0
        %3627 = vmatpush.xpose.msra.mxu0 0.0
        %3628 = vmatpush.xpose.msra.mxu0 %v604
        %3629 = vmatpush.xpose.msra.mxu0 %v412
        %3630 = vmatmul.f32.gmra.mxu0 %v877
        %v3631 = vpop.f32.mrf.mxu0
        %v3632 = vadd.f32 %v3612, %v3631
        %3633 = vdwg.mxu0
        %3634 = vmatpush.xpose.msra.mxu0 0.0
        %3635 = vmatpush.xpose.msra.mxu0 0.0
        %3636 = vmatpush.xpose.msra.mxu0 0.0
        %3637 = vmatpush.xpose.msra.mxu0 0.0
        %3638 = vmatpush.xpose.msra.mxu0 0.0
        %3639 = vmatpush.xpose.msra.mxu0 0.0
        %3640 = vmatpush.xpose.msra.mxu0 0.0
        %3641 = vmatpush.xpose.msra.mxu0 0.0
        %3642 = vmatpush.xpose.msra.mxu0 0.0
        %3643 = vmatpush.xpose.msra.mxu0 0.0
        %3644 = vmatpush.xpose.msra.mxu0 0.0
        %3645 = vmatpush.xpose.msra.mxu0 0.0
        %3646 = vmatpush.xpose.msra.mxu0 0.0
        %3647 = vmatpush.xpose.msra.mxu0 0.0
        %3648 = vmatpush.xpose.msra.mxu0 %v605
        %3649 = vmatpush.xpose.msra.mxu0 %v413
        %3650 = vmatmul.f32.gmra.mxu0 %v878
        %v3651 = vpop.f32.mrf.mxu0
        %v3652 = vadd.f32 %v3632, %v3651
        %3653 = vdwg.mxu0
        %3654 = vmatpush.xpose.msra.mxu0 0.0
        %3655 = vmatpush.xpose.msra.mxu0 0.0
        %3656 = vmatpush.xpose.msra.mxu0 0.0
        %3657 = vmatpush.xpose.msra.mxu0 0.0
        %3658 = vmatpush.xpose.msra.mxu0 0.0
        %3659 = vmatpush.xpose.msra.mxu0 0.0
        %3660 = vmatpush.xpose.msra.mxu0 0.0
        %3661 = vmatpush.xpose.msra.mxu0 0.0
        %3662 = vmatpush.xpose.msra.mxu0 0.0
        %3663 = vmatpush.xpose.msra.mxu0 0.0
        %3664 = vmatpush.xpose.msra.mxu0 0.0
        %3665 = vmatpush.xpose.msra.mxu0 0.0
        %3666 = vmatpush.xpose.msra.mxu0 0.0
        %3667 = vmatpush.xpose.msra.mxu0 0.0
        %3668 = vmatpush.xpose.msra.mxu0 %v606
        %3669 = vmatpush.xpose.msra.mxu0 %v414
        %3670 = vmatmul.f32.gmra.mxu0 %v879
        %v3671 = vpop.f32.mrf.mxu0
        %v3672 = vadd.f32 %v3652, %v3671
        %3673 = vdwg.mxu0
        %3674 = vmatpush.xpose.msra.mxu0 0.0
        %3675 = vmatpush.xpose.msra.mxu0 0.0
        %3676 = vmatpush.xpose.msra.mxu0 0.0
        %3677 = vmatpush.xpose.msra.mxu0 0.0
        %3678 = vmatpush.xpose.msra.mxu0 0.0
        %3679 = vmatpush.xpose.msra.mxu0 0.0
        %3680 = vmatpush.xpose.msra.mxu0 0.0
        %3681 = vmatpush.xpose.msra.mxu0 0.0
        %3682 = vmatpush.xpose.msra.mxu0 0.0
        %3683 = vmatpush.xpose.msra.mxu0 0.0
        %3684 = vmatpush.xpose.msra.mxu0 0.0
        %3685 = vmatpush.xpose.msra.mxu0 0.0
        %3686 = vmatpush.xpose.msra.mxu0 0.0
        %3687 = vmatpush.xpose.msra.mxu0 0.0
        %3688 = vmatpush.xpose.msra.mxu0 %v607
        %3689 = vmatpush.xpose.msra.mxu0 %v415
        %3690 = vmatmul.f32.gmra.mxu0 %v880
        %v3691 = vpop.f32.mrf.mxu0
        %v3692 = vadd.f32 %v3672, %v3691
        %3693 = vdwg.mxu0
        %3694 = vmatpush.xpose.msra.mxu0 0.0
        %3695 = vmatpush.xpose.msra.mxu0 0.0
        %3696 = vmatpush.xpose.msra.mxu0 0.0
        %3697 = vmatpush.xpose.msra.mxu0 0.0
        %3698 = vmatpush.xpose.msra.mxu0 0.0
        %3699 = vmatpush.xpose.msra.mxu0 0.0
        %3700 = vmatpush.xpose.msra.mxu0 0.0
        %3701 = vmatpush.xpose.msra.mxu0 0.0
        %3702 = vmatpush.xpose.msra.mxu0 0.0
        %3703 = vmatpush.xpose.msra.mxu0 0.0
        %3704 = vmatpush.xpose.msra.mxu0 0.0
        %3705 = vmatpush.xpose.msra.mxu0 0.0
        %3706 = vmatpush.xpose.msra.mxu0 0.0
        %3707 = vmatpush.xpose.msra.mxu0 0.0
        %3708 = vmatpush.xpose.msra.mxu0 %v608
        %3709 = vmatpush.xpose.msra.mxu0 %v416
        %3710 = vmatmul.f32.gmra.mxu0 %v881
        %v3711 = vpop.f32.mrf.mxu0
        %v3712 = vadd.f32 %v3692, %v3711
        %3713 = vdwg.mxu0
        %3714 = vmatpush.xpose.msra.mxu0 0.0
        %3715 = vmatpush.xpose.msra.mxu0 0.0
        %3716 = vmatpush.xpose.msra.mxu0 0.0
        %3717 = vmatpush.xpose.msra.mxu0 0.0
        %3718 = vmatpush.xpose.msra.mxu0 0.0
        %3719 = vmatpush.xpose.msra.mxu0 0.0
        %3720 = vmatpush.xpose.msra.mxu0 0.0
        %3721 = vmatpush.xpose.msra.mxu0 0.0
        %3722 = vmatpush.xpose.msra.mxu0 0.0
        %3723 = vmatpush.xpose.msra.mxu0 0.0
        %3724 = vmatpush.xpose.msra.mxu0 0.0
        %3725 = vmatpush.xpose.msra.mxu0 0.0
        %3726 = vmatpush.xpose.msra.mxu0 0.0
        %3727 = vmatpush.xpose.msra.mxu0 0.0
        %3728 = vmatpush.xpose.msra.mxu0 %v609
        %3729 = vmatpush.xpose.msra.mxu0 %v417
        %3730 = vmatmul.f32.gmra.mxu0 %v884
        %v3731 = vpop.f32.mrf.mxu0
        %v3732 = vadd.f32 %v3712, %v3731
        %3733 = vdwg.mxu0
        %3734 = vmatpush.xpose.msra.mxu0 0.0
        %3735 = vmatpush.xpose.msra.mxu0 0.0
        %3736 = vmatpush.xpose.msra.mxu0 0.0
        %3737 = vmatpush.xpose.msra.mxu0 0.0
        %3738 = vmatpush.xpose.msra.mxu0 0.0
        %3739 = vmatpush.xpose.msra.mxu0 0.0
        %3740 = vmatpush.xpose.msra.mxu0 0.0
        %3741 = vmatpush.xpose.msra.mxu0 0.0
        %3742 = vmatpush.xpose.msra.mxu0 0.0
        %3743 = vmatpush.xpose.msra.mxu0 0.0
        %3744 = vmatpush.xpose.msra.mxu0 0.0
        %3745 = vmatpush.xpose.msra.mxu0 0.0
        %3746 = vmatpush.xpose.msra.mxu0 0.0
        %3747 = vmatpush.xpose.msra.mxu0 0.0
        %3748 = vmatpush.xpose.msra.mxu0 %v610
        %3749 = vmatpush.xpose.msra.mxu0 %v418
        %3750 = vmatmul.f32.gmra.mxu0 %v885
        %v3751 = vpop.f32.mrf.mxu0
        %v3752 = vadd.f32 %v3732, %v3751
        %3753 = vdwg.mxu0
        %3754 = vmatpush.xpose.msra.mxu0 0.0
        %3755 = vmatpush.xpose.msra.mxu0 0.0
        %3756 = vmatpush.xpose.msra.mxu0 0.0
        %3757 = vmatpush.xpose.msra.mxu0 0.0
        %3758 = vmatpush.xpose.msra.mxu0 0.0
        %3759 = vmatpush.xpose.msra.mxu0 0.0
        %3760 = vmatpush.xpose.msra.mxu0 0.0
        %3761 = vmatpush.xpose.msra.mxu0 0.0
        %3762 = vmatpush.xpose.msra.mxu0 0.0
        %3763 = vmatpush.xpose.msra.mxu0 0.0
        %3764 = vmatpush.xpose.msra.mxu0 0.0
        %3765 = vmatpush.xpose.msra.mxu0 0.0
        %3766 = vmatpush.xpose.msra.mxu0 0.0
        %3767 = vmatpush.xpose.msra.mxu0 0.0
        %3768 = vmatpush.xpose.msra.mxu0 %v611
        %3769 = vmatpush.xpose.msra.mxu0 %v419
        %3770 = vmatmul.f32.gmra.mxu0 %v886
        %v3771 = vpop.f32.mrf.mxu0
        %v3772 = vadd.f32 %v3752, %v3771
        %3773 = vdwg.mxu0
        %3774 = vmatpush.xpose.msra.mxu0 0.0
        %3775 = vmatpush.xpose.msra.mxu0 0.0
        %3776 = vmatpush.xpose.msra.mxu0 0.0
        %3777 = vmatpush.xpose.msra.mxu0 0.0
        %3778 = vmatpush.xpose.msra.mxu0 0.0
        %3779 = vmatpush.xpose.msra.mxu0 0.0
        %3780 = vmatpush.xpose.msra.mxu0 0.0
        %3781 = vmatpush.xpose.msra.mxu0 0.0
        %3782 = vmatpush.xpose.msra.mxu0 0.0
        %3783 = vmatpush.xpose.msra.mxu0 0.0
        %3784 = vmatpush.xpose.msra.mxu0 0.0
        %3785 = vmatpush.xpose.msra.mxu0 0.0
        %3786 = vmatpush.xpose.msra.mxu0 0.0
        %3787 = vmatpush.xpose.msra.mxu0 0.0
        %3788 = vmatpush.xpose.msra.mxu0 %v612
        %3789 = vmatpush.xpose.msra.mxu0 %v420
        %3790 = vmatmul.f32.gmra.mxu0 %v887
        %v3791 = vpop.f32.mrf.mxu0
        %v3792 = vadd.f32 %v3772, %v3791
        %3793 = vdwg.mxu0
        %3794 = vmatpush.xpose.msra.mxu0 0.0
        %3795 = vmatpush.xpose.msra.mxu0 0.0
        %3796 = vmatpush.xpose.msra.mxu0 0.0
        %3797 = vmatpush.xpose.msra.mxu0 0.0
        %3798 = vmatpush.xpose.msra.mxu0 0.0
        %3799 = vmatpush.xpose.msra.mxu0 0.0
        %3800 = vmatpush.xpose.msra.mxu0 0.0
        %3801 = vmatpush.xpose.msra.mxu0 0.0
        %3802 = vmatpush.xpose.msra.mxu0 0.0
        %3803 = vmatpush.xpose.msra.mxu0 0.0
        %3804 = vmatpush.xpose.msra.mxu0 0.0
        %3805 = vmatpush.xpose.msra.mxu0 0.0
        %3806 = vmatpush.xpose.msra.mxu0 0.0
        %3807 = vmatpush.xpose.msra.mxu0 0.0
        %3808 = vmatpush.xpose.msra.mxu0 %v613
        %3809 = vmatpush.xpose.msra.mxu0 %v421
        %3810 = vmatmul.f32.gmra.mxu0 %v888
        %v3811 = vpop.f32.mrf.mxu0
        %v3812 = vadd.f32 %v3792, %v3811
        %3813 = vdwg.mxu0
        %3814 = vmatpush.xpose.msra.mxu0 0.0
        %3815 = vmatpush.xpose.msra.mxu0 0.0
        %3816 = vmatpush.xpose.msra.mxu0 0.0
        %3817 = vmatpush.xpose.msra.mxu0 0.0
        %3818 = vmatpush.xpose.msra.mxu0 0.0
        %3819 = vmatpush.xpose.msra.mxu0 0.0
        %3820 = vmatpush.xpose.msra.mxu0 0.0
        %3821 = vmatpush.xpose.msra.mxu0 0.0
        %3822 = vmatpush.xpose.msra.mxu0 0.0
        %3823 = vmatpush.xpose.msra.mxu0 0.0
        %3824 = vmatpush.xpose.msra.mxu0 0.0
        %3825 = vmatpush.xpose.msra.mxu0 0.0
        %3826 = vmatpush.xpose.msra.mxu0 0.0
        %3827 = vmatpush.xpose.msra.mxu0 0.0
        %3828 = vmatpush.xpose.msra.mxu0 %v614
        %3829 = vmatpush.xpose.msra.mxu0 %v422
        %3830 = vmatmul.f32.gmra.mxu0 %v889
        %v3831 = vpop.f32.mrf.mxu0
        %v3832 = vadd.f32 %v3812, %v3831
        %3833 = vdwg.mxu0
        %3834 = vmatpush.xpose.msra.mxu0 0.0
        %3835 = vmatpush.xpose.msra.mxu0 0.0
        %3836 = vmatpush.xpose.msra.mxu0 0.0
        %3837 = vmatpush.xpose.msra.mxu0 0.0
        %3838 = vmatpush.xpose.msra.mxu0 0.0
        %3839 = vmatpush.xpose.msra.mxu0 0.0
        %3840 = vmatpush.xpose.msra.mxu0 0.0
        %3841 = vmatpush.xpose.msra.mxu0 0.0
        %3842 = vmatpush.xpose.msra.mxu0 0.0
        %3843 = vmatpush.xpose.msra.mxu0 0.0
        %3844 = vmatpush.xpose.msra.mxu0 0.0
        %3845 = vmatpush.xpose.msra.mxu0 0.0
        %3846 = vmatpush.xpose.msra.mxu0 0.0
        %3847 = vmatpush.xpose.msra.mxu0 0.0
        %3848 = vmatpush.xpose.msra.mxu0 %v615
        %3849 = vmatpush.xpose.msra.mxu0 %v423
        %3850 = vmatmul.f32.gmra.mxu0 %v890
        %v3851 = vpop.f32.mrf.mxu0
        %v3852 = vadd.f32 %v3832, %v3851
        %3853 = vdwg.mxu0
        %3854 = vmatpush.xpose.msra.mxu0 0.0
        %3855 = vmatpush.xpose.msra.mxu0 0.0
        %3856 = vmatpush.xpose.msra.mxu0 0.0
        %3857 = vmatpush.xpose.msra.mxu0 0.0
        %3858 = vmatpush.xpose.msra.mxu0 0.0
        %3859 = vmatpush.xpose.msra.mxu0 0.0
        %3860 = vmatpush.xpose.msra.mxu0 0.0
        %3861 = vmatpush.xpose.msra.mxu0 0.0
        %3862 = vmatpush.xpose.msra.mxu0 0.0
        %3863 = vmatpush.xpose.msra.mxu0 0.0
        %3864 = vmatpush.xpose.msra.mxu0 0.0
        %3865 = vmatpush.xpose.msra.mxu0 0.0
        %3866 = vmatpush.xpose.msra.mxu0 0.0
        %3867 = vmatpush.xpose.msra.mxu0 0.0
        %3868 = vmatpush.xpose.msra.mxu0 %v616
        %3869 = vmatpush.xpose.msra.mxu0 %v424
        %3870 = vmatmul.f32.gmra.mxu0 %v891
        %v3871 = vpop.f32.mrf.mxu0
        %v3872 = vadd.f32 %v3852, %v3871
        %3873 = vdwg.mxu0
        %3874 = vmatpush.xpose.msra.mxu0 0.0
        %3875 = vmatpush.xpose.msra.mxu0 0.0
        %3876 = vmatpush.xpose.msra.mxu0 0.0
        %3877 = vmatpush.xpose.msra.mxu0 0.0
        %3878 = vmatpush.xpose.msra.mxu0 0.0
        %3879 = vmatpush.xpose.msra.mxu0 0.0
        %3880 = vmatpush.xpose.msra.mxu0 0.0
        %3881 = vmatpush.xpose.msra.mxu0 0.0
        %3882 = vmatpush.xpose.msra.mxu0 0.0
        %3883 = vmatpush.xpose.msra.mxu0 0.0
        %3884 = vmatpush.xpose.msra.mxu0 0.0
        %3885 = vmatpush.xpose.msra.mxu0 0.0
        %3886 = vmatpush.xpose.msra.mxu0 0.0
        %3887 = vmatpush.xpose.msra.mxu0 0.0
        %3888 = vmatpush.xpose.msra.mxu0 %v617
        %3889 = vmatpush.xpose.msra.mxu0 %v425
        %3890 = vmatmul.f32.gmra.mxu0 %v894
        %v3891 = vpop.f32.mrf.mxu0
        %v3892 = vadd.f32 %v3872, %v3891
        %3893 = vdwg.mxu0
        %3894 = vmatpush.xpose.msra.mxu0 0.0
        %3895 = vmatpush.xpose.msra.mxu0 0.0
        %3896 = vmatpush.xpose.msra.mxu0 0.0
        %3897 = vmatpush.xpose.msra.mxu0 0.0
        %3898 = vmatpush.xpose.msra.mxu0 0.0
        %3899 = vmatpush.xpose.msra.mxu0 0.0
        %3900 = vmatpush.xpose.msra.mxu0 0.0
        %3901 = vmatpush.xpose.msra.mxu0 0.0
        %3902 = vmatpush.xpose.msra.mxu0 0.0
        %3903 = vmatpush.xpose.msra.mxu0 0.0
        %3904 = vmatpush.xpose.msra.mxu0 0.0
        %3905 = vmatpush.xpose.msra.mxu0 0.0
        %3906 = vmatpush.xpose.msra.mxu0 0.0
        %3907 = vmatpush.xpose.msra.mxu0 0.0
        %3908 = vmatpush.xpose.msra.mxu0 %v618
        %3909 = vmatpush.xpose.msra.mxu0 %v426
        %3910 = vmatmul.f32.gmra.mxu0 %v895
        %v3911 = vpop.f32.mrf.mxu0
        %v3912 = vadd.f32 %v3892, %v3911
        %3913 = vdwg.mxu0
        %3914 = vmatpush.xpose.msra.mxu0 0.0
        %3915 = vmatpush.xpose.msra.mxu0 0.0
        %3916 = vmatpush.xpose.msra.mxu0 0.0
        %3917 = vmatpush.xpose.msra.mxu0 0.0
        %3918 = vmatpush.xpose.msra.mxu0 0.0
        %3919 = vmatpush.xpose.msra.mxu0 0.0
        %3920 = vmatpush.xpose.msra.mxu0 0.0
        %3921 = vmatpush.xpose.msra.mxu0 0.0
        %3922 = vmatpush.xpose.msra.mxu0 0.0
        %3923 = vmatpush.xpose.msra.mxu0 0.0
        %3924 = vmatpush.xpose.msra.mxu0 0.0
        %3925 = vmatpush.xpose.msra.mxu0 0.0
        %3926 = vmatpush.xpose.msra.mxu0 0.0
        %3927 = vmatpush.xpose.msra.mxu0 0.0
        %3928 = vmatpush.xpose.msra.mxu0 %v619
        %3929 = vmatpush.xpose.msra.mxu0 %v427
        %3930 = vmatmul.f32.gmra.mxu0 %v896
        %v3931 = vpop.f32.mrf.mxu0
        %v3932 = vadd.f32 %v3912, %v3931
        %3933 = vdwg.mxu0
        %3934 = vmatpush.xpose.msra.mxu0 0.0
        %3935 = vmatpush.xpose.msra.mxu0 0.0
        %3936 = vmatpush.xpose.msra.mxu0 0.0
        %3937 = vmatpush.xpose.msra.mxu0 0.0
        %3938 = vmatpush.xpose.msra.mxu0 0.0
        %3939 = vmatpush.xpose.msra.mxu0 0.0
        %3940 = vmatpush.xpose.msra.mxu0 0.0
        %3941 = vmatpush.xpose.msra.mxu0 0.0
        %3942 = vmatpush.xpose.msra.mxu0 0.0
        %3943 = vmatpush.xpose.msra.mxu0 0.0
        %3944 = vmatpush.xpose.msra.mxu0 0.0
        %3945 = vmatpush.xpose.msra.mxu0 0.0
        %3946 = vmatpush.xpose.msra.mxu0 0.0
        %3947 = vmatpush.xpose.msra.mxu0 0.0
        %3948 = vmatpush.xpose.msra.mxu0 %v620
        %3949 = vmatpush.xpose.msra.mxu0 %v428
        %3950 = vmatmul.f32.gmra.mxu0 %v897
        %v3951 = vpop.f32.mrf.mxu0
        %v3952 = vadd.f32 %v3932, %v3951
        %3953 = vdwg.mxu0
        %3954 = vmatpush.xpose.msra.mxu0 0.0
        %3955 = vmatpush.xpose.msra.mxu0 0.0
        %3956 = vmatpush.xpose.msra.mxu0 0.0
        %3957 = vmatpush.xpose.msra.mxu0 0.0
        %3958 = vmatpush.xpose.msra.mxu0 0.0
        %3959 = vmatpush.xpose.msra.mxu0 0.0
        %3960 = vmatpush.xpose.msra.mxu0 0.0
        %3961 = vmatpush.xpose.msra.mxu0 0.0
        %3962 = vmatpush.xpose.msra.mxu0 0.0
        %3963 = vmatpush.xpose.msra.mxu0 0.0
        %3964 = vmatpush.xpose.msra.mxu0 0.0
        %3965 = vmatpush.xpose.msra.mxu0 0.0
        %3966 = vmatpush.xpose.msra.mxu0 0.0
        %3967 = vmatpush.xpose.msra.mxu0 0.0
        %3968 = vmatpush.xpose.msra.mxu0 %v621
        %3969 = vmatpush.xpose.msra.mxu0 %v429
        %3970 = vmatmul.f32.gmra.mxu0 %v898
        %v3971 = vpop.f32.mrf.mxu0
        %v3972 = vadd.f32 %v3952, %v3971
        %3973 = vdwg.mxu0
        %3974 = vmatpush.xpose.msra.mxu0 0.0
        %3975 = vmatpush.xpose.msra.mxu0 0.0
        %3976 = vmatpush.xpose.msra.mxu0 0.0
        %3977 = vmatpush.xpose.msra.mxu0 0.0
        %3978 = vmatpush.xpose.msra.mxu0 0.0
        %3979 = vmatpush.xpose.msra.mxu0 0.0
        %3980 = vmatpush.xpose.msra.mxu0 0.0
        %3981 = vmatpush.xpose.msra.mxu0 0.0
        %3982 = vmatpush.xpose.msra.mxu0 0.0
        %3983 = vmatpush.xpose.msra.mxu0 0.0
        %3984 = vmatpush.xpose.msra.mxu0 0.0
        %3985 = vmatpush.xpose.msra.mxu0 0.0
        %3986 = vmatpush.xpose.msra.mxu0 0.0
        %3987 = vmatpush.xpose.msra.mxu0 0.0
        %3988 = vmatpush.xpose.msra.mxu0 %v622
        %3989 = vmatpush.xpose.msra.mxu0 %v430
        %3990 = vmatmul.f32.gmra.mxu0 %v899
        %v3991 = vpop.f32.mrf.mxu0
        %v3992 = vadd.f32 %v3972, %v3991
        %3993 = vdwg.mxu0
        %3994 = vmatpush.xpose.msra.mxu0 0.0
        %3995 = vmatpush.xpose.msra.mxu0 0.0
        %3996 = vmatpush.xpose.msra.mxu0 0.0
        %3997 = vmatpush.xpose.msra.mxu0 0.0
        %3998 = vmatpush.xpose.msra.mxu0 0.0
        %3999 = vmatpush.xpose.msra.mxu0 0.0
        %4000 = vmatpush.xpose.msra.mxu0 0.0
        %4001 = vmatpush.xpose.msra.mxu0 0.0
        %4002 = vmatpush.xpose.msra.mxu0 0.0
        %4003 = vmatpush.xpose.msra.mxu0 0.0
        %4004 = vmatpush.xpose.msra.mxu0 0.0
        %4005 = vmatpush.xpose.msra.mxu0 0.0
        %4006 = vmatpush.xpose.msra.mxu0 0.0
        %4007 = vmatpush.xpose.msra.mxu0 0.0
        %4008 = vmatpush.xpose.msra.mxu0 %v623
        %4009 = vmatpush.xpose.msra.mxu0 %v431
        %4010 = vmatmul.f32.gmra.mxu0 %v900
        %v4011 = vpop.f32.mrf.mxu0
        %v4012 = vadd.f32 %v3992, %v4011
        %4013 = vdwg.mxu0
        %4014 = vmatpush.xpose.msra.mxu0 0.0
        %4015 = vmatpush.xpose.msra.mxu0 0.0
        %4016 = vmatpush.xpose.msra.mxu0 0.0
        %4017 = vmatpush.xpose.msra.mxu0 0.0
        %4018 = vmatpush.xpose.msra.mxu0 0.0
        %4019 = vmatpush.xpose.msra.mxu0 0.0
        %4020 = vmatpush.xpose.msra.mxu0 0.0
        %4021 = vmatpush.xpose.msra.mxu0 0.0
        %4022 = vmatpush.xpose.msra.mxu0 0.0
        %4023 = vmatpush.xpose.msra.mxu0 0.0
        %4024 = vmatpush.xpose.msra.mxu0 0.0
        %4025 = vmatpush.xpose.msra.mxu0 0.0
        %4026 = vmatpush.xpose.msra.mxu0 0.0
        %4027 = vmatpush.xpose.msra.mxu0 0.0
        %4028 = vmatpush.xpose.msra.mxu0 %v624
        %4029 = vmatpush.xpose.msra.mxu0 %v432
        %4030 = vmatmul.f32.gmra.mxu0 %v901
        %v4031 = vpop.f32.mrf.mxu0
        %v4032 = vadd.f32 %v4012, %v4031
        %4033 = vdwg.mxu0
        %4034 = vmatpush.xpose.msra.mxu0 0.0
        %4035 = vmatpush.xpose.msra.mxu0 0.0
        %4036 = vmatpush.xpose.msra.mxu0 0.0
        %4037 = vmatpush.xpose.msra.mxu0 0.0
        %4038 = vmatpush.xpose.msra.mxu0 0.0
        %4039 = vmatpush.xpose.msra.mxu0 0.0
        %4040 = vmatpush.xpose.msra.mxu0 0.0
        %4041 = vmatpush.xpose.msra.mxu0 0.0
        %4042 = vmatpush.xpose.msra.mxu0 0.0
        %4043 = vmatpush.xpose.msra.mxu0 0.0
        %4044 = vmatpush.xpose.msra.mxu0 0.0
        %4045 = vmatpush.xpose.msra.mxu0 0.0
        %4046 = vmatpush.xpose.msra.mxu0 0.0
        %4047 = vmatpush.xpose.msra.mxu0 0.0
        %4048 = vmatpush.xpose.msra.mxu0 %v625
        %4049 = vmatpush.xpose.msra.mxu0 %v433
        %4050 = vmatmul.f32.gmra.mxu0 %v904
        %v4051 = vpop.f32.mrf.mxu0
        %v4052 = vadd.f32 %v4032, %v4051
        %4053 = vdwg.mxu0
        %4054 = vmatpush.xpose.msra.mxu0 0.0
        %4055 = vmatpush.xpose.msra.mxu0 0.0
        %4056 = vmatpush.xpose.msra.mxu0 0.0
        %4057 = vmatpush.xpose.msra.mxu0 0.0
        %4058 = vmatpush.xpose.msra.mxu0 0.0
        %4059 = vmatpush.xpose.msra.mxu0 0.0
        %4060 = vmatpush.xpose.msra.mxu0 0.0
        %4061 = vmatpush.xpose.msra.mxu0 0.0
        %4062 = vmatpush.xpose.msra.mxu0 0.0
        %4063 = vmatpush.xpose.msra.mxu0 0.0
        %4064 = vmatpush.xpose.msra.mxu0 0.0
        %4065 = vmatpush.xpose.msra.mxu0 0.0
        %4066 = vmatpush.xpose.msra.mxu0 0.0
        %4067 = vmatpush.xpose.msra.mxu0 0.0
        %4068 = vmatpush.xpose.msra.mxu0 %v626
        %4069 = vmatpush.xpose.msra.mxu0 %v434
        %4070 = vmatmul.f32.gmra.mxu0 %v905
        %v4071 = vpop.f32.mrf.mxu0
        %v4072 = vadd.f32 %v4052, %v4071
        %4073 = vdwg.mxu0
        %4074 = vmatpush.xpose.msra.mxu0 0.0
        %4075 = vmatpush.xpose.msra.mxu0 0.0
        %4076 = vmatpush.xpose.msra.mxu0 0.0
        %4077 = vmatpush.xpose.msra.mxu0 0.0
        %4078 = vmatpush.xpose.msra.mxu0 0.0
        %4079 = vmatpush.xpose.msra.mxu0 0.0
        %4080 = vmatpush.xpose.msra.mxu0 0.0
        %4081 = vmatpush.xpose.msra.mxu0 0.0
        %4082 = vmatpush.xpose.msra.mxu0 0.0
        %4083 = vmatpush.xpose.msra.mxu0 0.0
        %4084 = vmatpush.xpose.msra.mxu0 0.0
        %4085 = vmatpush.xpose.msra.mxu0 0.0
        %4086 = vmatpush.xpose.msra.mxu0 0.0
        %4087 = vmatpush.xpose.msra.mxu0 0.0
        %4088 = vmatpush.xpose.msra.mxu0 %v627
        %4089 = vmatpush.xpose.msra.mxu0 %v435
        %4090 = vmatmul.f32.gmra.mxu0 %v906
        %v4091 = vpop.f32.mrf.mxu0
        %v4092 = vadd.f32 %v4072, %v4091
        %4093 = vdwg.mxu0
        %4094 = vmatpush.xpose.msra.mxu0 0.0
        %4095 = vmatpush.xpose.msra.mxu0 0.0
        %4096 = vmatpush.xpose.msra.mxu0 0.0
        %4097 = vmatpush.xpose.msra.mxu0 0.0
        %4098 = vmatpush.xpose.msra.mxu0 0.0
        %4099 = vmatpush.xpose.msra.mxu0 0.0
        %4100 = vmatpush.xpose.msra.mxu0 0.0
        %4101 = vmatpush.xpose.msra.mxu0 0.0
        %4102 = vmatpush.xpose.msra.mxu0 0.0
        %4103 = vmatpush.xpose.msra.mxu0 0.0
        %4104 = vmatpush.xpose.msra.mxu0 0.0
        %4105 = vmatpush.xpose.msra.mxu0 0.0
        %4106 = vmatpush.xpose.msra.mxu0 0.0
        %4107 = vmatpush.xpose.msra.mxu0 0.0
        %4108 = vmatpush.xpose.msra.mxu0 %v628
        %4109 = vmatpush.xpose.msra.mxu0 %v436
        %4110 = vmatmul.f32.gmra.mxu0 %v907
        %v4111 = vpop.f32.mrf.mxu0
        %v4112 = vadd.f32 %v4092, %v4111
        %4113 = vdwg.mxu0
        %4114 = vmatpush.xpose.msra.mxu0 0.0
        %4115 = vmatpush.xpose.msra.mxu0 0.0
        %4116 = vmatpush.xpose.msra.mxu0 0.0
        %4117 = vmatpush.xpose.msra.mxu0 0.0
        %4118 = vmatpush.xpose.msra.mxu0 0.0
        %4119 = vmatpush.xpose.msra.mxu0 0.0
        %4120 = vmatpush.xpose.msra.mxu0 0.0
        %4121 = vmatpush.xpose.msra.mxu0 0.0
        %4122 = vmatpush.xpose.msra.mxu0 0.0
        %4123 = vmatpush.xpose.msra.mxu0 0.0
        %4124 = vmatpush.xpose.msra.mxu0 0.0
        %4125 = vmatpush.xpose.msra.mxu0 0.0
        %4126 = vmatpush.xpose.msra.mxu0 0.0
        %4127 = vmatpush.xpose.msra.mxu0 0.0
        %4128 = vmatpush.xpose.msra.mxu0 %v629
        %4129 = vmatpush.xpose.msra.mxu0 %v437
        %4130 = vmatmul.f32.gmra.mxu0 %v908
        %v4131 = vpop.f32.mrf.mxu0
        %v4132 = vadd.f32 %v4112, %v4131
        %4133 = vdwg.mxu0
        %4134 = vmatpush.xpose.msra.mxu0 0.0
        %4135 = vmatpush.xpose.msra.mxu0 0.0
        %4136 = vmatpush.xpose.msra.mxu0 0.0
        %4137 = vmatpush.xpose.msra.mxu0 0.0
        %4138 = vmatpush.xpose.msra.mxu0 0.0
        %4139 = vmatpush.xpose.msra.mxu0 0.0
        %4140 = vmatpush.xpose.msra.mxu0 0.0
        %4141 = vmatpush.xpose.msra.mxu0 0.0
        %4142 = vmatpush.xpose.msra.mxu0 0.0
        %4143 = vmatpush.xpose.msra.mxu0 0.0
        %4144 = vmatpush.xpose.msra.mxu0 0.0
        %4145 = vmatpush.xpose.msra.mxu0 0.0
        %4146 = vmatpush.xpose.msra.mxu0 0.0
        %4147 = vmatpush.xpose.msra.mxu0 0.0
        %4148 = vmatpush.xpose.msra.mxu0 %v630
        %4149 = vmatpush.xpose.msra.mxu0 %v438
        %4150 = vmatmul.f32.gmra.mxu0 %v909
        %v4151 = vpop.f32.mrf.mxu0
        %v4152 = vadd.f32 %v4132, %v4151
        %4153 = vdwg.mxu0
        %4154 = vmatpush.xpose.msra.mxu0 0.0
        %4155 = vmatpush.xpose.msra.mxu0 0.0
        %4156 = vmatpush.xpose.msra.mxu0 0.0
        %4157 = vmatpush.xpose.msra.mxu0 0.0
        %4158 = vmatpush.xpose.msra.mxu0 0.0
        %4159 = vmatpush.xpose.msra.mxu0 0.0
        %4160 = vmatpush.xpose.msra.mxu0 0.0
        %4161 = vmatpush.xpose.msra.mxu0 0.0
        %4162 = vmatpush.xpose.msra.mxu0 0.0
        %4163 = vmatpush.xpose.msra.mxu0 0.0
        %4164 = vmatpush.xpose.msra.mxu0 0.0
        %4165 = vmatpush.xpose.msra.mxu0 0.0
        %4166 = vmatpush.xpose.msra.mxu0 0.0
        %4167 = vmatpush.xpose.msra.mxu0 0.0
        %4168 = vmatpush.xpose.msra.mxu0 %v631
        %4169 = vmatpush.xpose.msra.mxu0 %v439
        %4170 = vmatmul.f32.gmra.mxu0 %v910
        %v4171 = vpop.f32.mrf.mxu0
        %v4172 = vadd.f32 %v4152, %v4171
        %4173 = vdwg.mxu0
        %4174 = vmatpush.xpose.msra.mxu0 0.0
        %4175 = vmatpush.xpose.msra.mxu0 0.0
        %4176 = vmatpush.xpose.msra.mxu0 0.0
        %4177 = vmatpush.xpose.msra.mxu0 0.0
        %4178 = vmatpush.xpose.msra.mxu0 0.0
        %4179 = vmatpush.xpose.msra.mxu0 0.0
        %4180 = vmatpush.xpose.msra.mxu0 0.0
        %4181 = vmatpush.xpose.msra.mxu0 0.0
        %4182 = vmatpush.xpose.msra.mxu0 0.0
        %4183 = vmatpush.xpose.msra.mxu0 0.0
        %4184 = vmatpush.xpose.msra.mxu0 0.0
        %4185 = vmatpush.xpose.msra.mxu0 0.0
        %4186 = vmatpush.xpose.msra.mxu0 0.0
        %4187 = vmatpush.xpose.msra.mxu0 0.0
        %4188 = vmatpush.xpose.msra.mxu0 %v632
        %4189 = vmatpush.xpose.msra.mxu0 %v440
        %4190 = vmatmul.f32.gmra.mxu0 %v911
        %v4191 = vpop.f32.mrf.mxu0
        %v4192 = vadd.f32 %v4172, %v4191
        %4193 = vdwg.mxu0
        %4194 = vmatpush.xpose.msra.mxu0 0.0
        %4195 = vmatpush.xpose.msra.mxu0 0.0
        %4196 = vmatpush.xpose.msra.mxu0 0.0
        %4197 = vmatpush.xpose.msra.mxu0 0.0
        %4198 = vmatpush.xpose.msra.mxu0 0.0
        %4199 = vmatpush.xpose.msra.mxu0 0.0
        %4200 = vmatpush.xpose.msra.mxu0 0.0
        %4201 = vmatpush.xpose.msra.mxu0 0.0
        %4202 = vmatpush.xpose.msra.mxu0 0.0
        %4203 = vmatpush.xpose.msra.mxu0 0.0
        %4204 = vmatpush.xpose.msra.mxu0 0.0
        %4205 = vmatpush.xpose.msra.mxu0 0.0
        %4206 = vmatpush.xpose.msra.mxu0 0.0
        %4207 = vmatpush.xpose.msra.mxu0 0.0
        %4208 = vmatpush.xpose.msra.mxu0 %v633
        %4209 = vmatpush.xpose.msra.mxu0 %v441
        %4210 = vmatmul.f32.gmra.mxu0 %v914
        %v4211 = vpop.f32.mrf.mxu0
        %v4212 = vadd.f32 %v4192, %v4211
        %4213 = vdwg.mxu0
        %4214 = vmatpush.xpose.msra.mxu0 0.0
        %4215 = vmatpush.xpose.msra.mxu0 0.0
        %4216 = vmatpush.xpose.msra.mxu0 0.0
        %4217 = vmatpush.xpose.msra.mxu0 0.0
        %4218 = vmatpush.xpose.msra.mxu0 0.0
        %4219 = vmatpush.xpose.msra.mxu0 0.0
        %4220 = vmatpush.xpose.msra.mxu0 0.0
        %4221 = vmatpush.xpose.msra.mxu0 0.0
        %4222 = vmatpush.xpose.msra.mxu0 0.0
        %4223 = vmatpush.xpose.msra.mxu0 0.0
        %4224 = vmatpush.xpose.msra.mxu0 0.0
        %4225 = vmatpush.xpose.msra.mxu0 0.0
        %4226 = vmatpush.xpose.msra.mxu0 0.0
        %4227 = vmatpush.xpose.msra.mxu0 0.0
        %4228 = vmatpush.xpose.msra.mxu0 %v634
        %4229 = vmatpush.xpose.msra.mxu0 %v442
        %4230 = vmatmul.f32.gmra.mxu0 %v915
        %v4231 = vpop.f32.mrf.mxu0
        %v4232 = vadd.f32 %v4212, %v4231
        %4233 = vdwg.mxu0
        %4234 = vmatpush.xpose.msra.mxu0 0.0
        %4235 = vmatpush.xpose.msra.mxu0 0.0
        %4236 = vmatpush.xpose.msra.mxu0 0.0
        %4237 = vmatpush.xpose.msra.mxu0 0.0
        %4238 = vmatpush.xpose.msra.mxu0 0.0
        %4239 = vmatpush.xpose.msra.mxu0 0.0
        %4240 = vmatpush.xpose.msra.mxu0 0.0
        %4241 = vmatpush.xpose.msra.mxu0 0.0
        %4242 = vmatpush.xpose.msra.mxu0 0.0
        %4243 = vmatpush.xpose.msra.mxu0 0.0
        %4244 = vmatpush.xpose.msra.mxu0 0.0
        %4245 = vmatpush.xpose.msra.mxu0 0.0
        %4246 = vmatpush.xpose.msra.mxu0 0.0
        %4247 = vmatpush.xpose.msra.mxu0 0.0
        %4248 = vmatpush.xpose.msra.mxu0 %v635
        %4249 = vmatpush.xpose.msra.mxu0 %v443
        %4250 = vmatmul.f32.gmra.mxu0 %v916
        %v4251 = vpop.f32.mrf.mxu0
        %v4252 = vadd.f32 %v4232, %v4251
        %4253 = vdwg.mxu0
        %4254 = vmatpush.xpose.msra.mxu0 0.0
        %4255 = vmatpush.xpose.msra.mxu0 0.0
        %4256 = vmatpush.xpose.msra.mxu0 0.0
        %4257 = vmatpush.xpose.msra.mxu0 0.0
        %4258 = vmatpush.xpose.msra.mxu0 0.0
        %4259 = vmatpush.xpose.msra.mxu0 0.0
        %4260 = vmatpush.xpose.msra.mxu0 0.0
        %4261 = vmatpush.xpose.msra.mxu0 0.0
        %4262 = vmatpush.xpose.msra.mxu0 0.0
        %4263 = vmatpush.xpose.msra.mxu0 0.0
        %4264 = vmatpush.xpose.msra.mxu0 0.0
        %4265 = vmatpush.xpose.msra.mxu0 0.0
        %4266 = vmatpush.xpose.msra.mxu0 0.0
        %4267 = vmatpush.xpose.msra.mxu0 0.0
        %4268 = vmatpush.xpose.msra.mxu0 %v636
        %4269 = vmatpush.xpose.msra.mxu0 %v444
        %4270 = vmatmul.f32.gmra.mxu0 %v917
        %v4271 = vpop.f32.mrf.mxu0
        %v4272 = vadd.f32 %v4252, %v4271
        %4273 = vdwg.mxu0
        %4274 = vmatpush.xpose.msra.mxu0 0.0
        %4275 = vmatpush.xpose.msra.mxu0 0.0
        %4276 = vmatpush.xpose.msra.mxu0 0.0
        %4277 = vmatpush.xpose.msra.mxu0 0.0
        %4278 = vmatpush.xpose.msra.mxu0 0.0
        %4279 = vmatpush.xpose.msra.mxu0 0.0
        %4280 = vmatpush.xpose.msra.mxu0 0.0
        %4281 = vmatpush.xpose.msra.mxu0 0.0
        %4282 = vmatpush.xpose.msra.mxu0 0.0
        %4283 = vmatpush.xpose.msra.mxu0 0.0
        %4284 = vmatpush.xpose.msra.mxu0 0.0
        %4285 = vmatpush.xpose.msra.mxu0 0.0
        %4286 = vmatpush.xpose.msra.mxu0 0.0
        %4287 = vmatpush.xpose.msra.mxu0 0.0
        %4288 = vmatpush.xpose.msra.mxu0 %v637
        %4289 = vmatpush.xpose.msra.mxu0 %v445
        %4290 = vmatmul.f32.gmra.mxu0 %v918
        %v4291 = vpop.f32.mrf.mxu0
        %v4292 = vadd.f32 %v4272, %v4291
        %4293 = vdwg.mxu0
        %4294 = vmatpush.xpose.msra.mxu0 0.0
        %4295 = vmatpush.xpose.msra.mxu0 0.0
        %4296 = vmatpush.xpose.msra.mxu0 0.0
        %4297 = vmatpush.xpose.msra.mxu0 0.0
        %4298 = vmatpush.xpose.msra.mxu0 0.0
        %4299 = vmatpush.xpose.msra.mxu0 0.0
        %4300 = vmatpush.xpose.msra.mxu0 0.0
        %4301 = vmatpush.xpose.msra.mxu0 0.0
        %4302 = vmatpush.xpose.msra.mxu0 0.0
        %4303 = vmatpush.xpose.msra.mxu0 0.0
        %4304 = vmatpush.xpose.msra.mxu0 0.0
        %4305 = vmatpush.xpose.msra.mxu0 0.0
        %4306 = vmatpush.xpose.msra.mxu0 0.0
        %4307 = vmatpush.xpose.msra.mxu0 0.0
        %4308 = vmatpush.xpose.msra.mxu0 %v638
        %4309 = vmatpush.xpose.msra.mxu0 %v446
        %4310 = vmatmul.f32.gmra.mxu0 %v919
        %v4311 = vpop.f32.mrf.mxu0
        %v4312 = vadd.f32 %v4292, %v4311
        %4313 = vdwg.mxu0
        %4314 = vmatpush.xpose.msra.mxu0 0.0
        %4315 = vmatpush.xpose.msra.mxu0 0.0
        %4316 = vmatpush.xpose.msra.mxu0 0.0
        %4317 = vmatpush.xpose.msra.mxu0 0.0
        %4318 = vmatpush.xpose.msra.mxu0 0.0
        %4319 = vmatpush.xpose.msra.mxu0 0.0
        %4320 = vmatpush.xpose.msra.mxu0 0.0
        %4321 = vmatpush.xpose.msra.mxu0 0.0
        %4322 = vmatpush.xpose.msra.mxu0 0.0
        %4323 = vmatpush.xpose.msra.mxu0 0.0
        %4324 = vmatpush.xpose.msra.mxu0 0.0
        %4325 = vmatpush.xpose.msra.mxu0 0.0
        %4326 = vmatpush.xpose.msra.mxu0 0.0
        %4327 = vmatpush.xpose.msra.mxu0 0.0
        %4328 = vmatpush.xpose.msra.mxu0 %v639
        %4329 = vmatpush.xpose.msra.mxu0 %v447
        %4330 = vmatmul.f32.gmra.mxu0 %v920
        %v4331 = vpop.f32.mrf.mxu0
        %v4332 = vadd.f32 %v4312, %v4331
        %4333 = vdwg.mxu0
        %4334 = vmatpush.xpose.msra.mxu0 0.0
        %4335 = vmatpush.xpose.msra.mxu0 0.0
        %4336 = vmatpush.xpose.msra.mxu0 0.0
        %4337 = vmatpush.xpose.msra.mxu0 0.0
        %4338 = vmatpush.xpose.msra.mxu0 0.0
        %4339 = vmatpush.xpose.msra.mxu0 0.0
        %4340 = vmatpush.xpose.msra.mxu0 0.0
        %4341 = vmatpush.xpose.msra.mxu0 0.0
        %4342 = vmatpush.xpose.msra.mxu0 0.0
        %4343 = vmatpush.xpose.msra.mxu0 0.0
        %4344 = vmatpush.xpose.msra.mxu0 0.0
        %4345 = vmatpush.xpose.msra.mxu0 0.0
        %4346 = vmatpush.xpose.msra.mxu0 0.0
        %4347 = vmatpush.xpose.msra.mxu0 0.0
        %4348 = vmatpush.xpose.msra.mxu0 %v640
        %4349 = vmatpush.xpose.msra.mxu0 %v448
        %4350 = vmatmul.f32.gmra.mxu0 %v921
        %v4351 = vpop.f32.mrf.mxu0
        %v4352 = vadd.f32 %v4332, %v4351
        %4353 = vdwg.mxu0
        %4354 = vmatpush.xpose.msra.mxu0 0.0
        %4355 = vmatpush.xpose.msra.mxu0 0.0
        %4356 = vmatpush.xpose.msra.mxu0 0.0
        %4357 = vmatpush.xpose.msra.mxu0 0.0
        %4358 = vmatpush.xpose.msra.mxu0 0.0
        %4359 = vmatpush.xpose.msra.mxu0 0.0
        %4360 = vmatpush.xpose.msra.mxu0 0.0
        %4361 = vmatpush.xpose.msra.mxu0 0.0
        %4362 = vmatpush.xpose.msra.mxu0 0.0
        %4363 = vmatpush.xpose.msra.mxu0 0.0
        %4364 = vmatpush.xpose.msra.mxu0 0.0
        %4365 = vmatpush.xpose.msra.mxu0 0.0
        %4366 = vmatpush.xpose.msra.mxu0 0.0
        %4367 = vmatpush.xpose.msra.mxu0 0.0
        %4368 = vmatpush.xpose.msra.mxu0 %v641
        %4369 = vmatpush.xpose.msra.mxu0 %v449
        %4370 = vmatmul.f32.gmra.mxu0 %v924
        %v4371 = vpop.f32.mrf.mxu0
        %v4372 = vadd.f32 %v4352, %v4371
        %4373 = vdwg.mxu0
        %4374 = vmatpush.xpose.msra.mxu0 0.0
        %4375 = vmatpush.xpose.msra.mxu0 0.0
        %4376 = vmatpush.xpose.msra.mxu0 0.0
        %4377 = vmatpush.xpose.msra.mxu0 0.0
        %4378 = vmatpush.xpose.msra.mxu0 0.0
        %4379 = vmatpush.xpose.msra.mxu0 0.0
        %4380 = vmatpush.xpose.msra.mxu0 0.0
        %4381 = vmatpush.xpose.msra.mxu0 0.0
        %4382 = vmatpush.xpose.msra.mxu0 0.0
        %4383 = vmatpush.xpose.msra.mxu0 0.0
        %4384 = vmatpush.xpose.msra.mxu0 0.0
        %4385 = vmatpush.xpose.msra.mxu0 0.0
        %4386 = vmatpush.xpose.msra.mxu0 0.0
        %4387 = vmatpush.xpose.msra.mxu0 0.0
        %4388 = vmatpush.xpose.msra.mxu0 %v642
        %4389 = vmatpush.xpose.msra.mxu0 %v450
        %4390 = vmatmul.f32.gmra.mxu0 %v925
        %v4391 = vpop.f32.mrf.mxu0
        %v4392 = vadd.f32 %v4372, %v4391
        %4393 = vdwg.mxu0
        %4394 = vmatpush.xpose.msra.mxu0 0.0
        %4395 = vmatpush.xpose.msra.mxu0 0.0
        %4396 = vmatpush.xpose.msra.mxu0 0.0
        %4397 = vmatpush.xpose.msra.mxu0 0.0
        %4398 = vmatpush.xpose.msra.mxu0 0.0
        %4399 = vmatpush.xpose.msra.mxu0 0.0
        %4400 = vmatpush.xpose.msra.mxu0 0.0
        %4401 = vmatpush.xpose.msra.mxu0 0.0
        %4402 = vmatpush.xpose.msra.mxu0 0.0
        %4403 = vmatpush.xpose.msra.mxu0 0.0
        %4404 = vmatpush.xpose.msra.mxu0 0.0
        %4405 = vmatpush.xpose.msra.mxu0 0.0
        %4406 = vmatpush.xpose.msra.mxu0 0.0
        %4407 = vmatpush.xpose.msra.mxu0 0.0
        %4408 = vmatpush.xpose.msra.mxu0 %v643
        %4409 = vmatpush.xpose.msra.mxu0 %v451
        %4410 = vmatmul.f32.gmra.mxu0 %v926
        %v4411 = vpop.f32.mrf.mxu0
        %v4412 = vadd.f32 %v4392, %v4411
        %4413 = vdwg.mxu0
        %4414 = vmatpush.xpose.msra.mxu0 0.0
        %4415 = vmatpush.xpose.msra.mxu0 0.0
        %4416 = vmatpush.xpose.msra.mxu0 0.0
        %4417 = vmatpush.xpose.msra.mxu0 0.0
        %4418 = vmatpush.xpose.msra.mxu0 0.0
        %4419 = vmatpush.xpose.msra.mxu0 0.0
        %4420 = vmatpush.xpose.msra.mxu0 0.0
        %4421 = vmatpush.xpose.msra.mxu0 0.0
        %4422 = vmatpush.xpose.msra.mxu0 0.0
        %4423 = vmatpush.xpose.msra.mxu0 0.0
        %4424 = vmatpush.xpose.msra.mxu0 0.0
        %4425 = vmatpush.xpose.msra.mxu0 0.0
        %4426 = vmatpush.xpose.msra.mxu0 0.0
        %4427 = vmatpush.xpose.msra.mxu0 0.0
        %4428 = vmatpush.xpose.msra.mxu0 %v644
        %4429 = vmatpush.xpose.msra.mxu0 %v452
        %4430 = vmatmul.f32.gmra.mxu0 %v927
        %v4431 = vpop.f32.mrf.mxu0
        %v4432 = vadd.f32 %v4412, %v4431
        %4433 = vdwg.mxu0
        %4434 = vmatpush.xpose.msra.mxu0 0.0
        %4435 = vmatpush.xpose.msra.mxu0 0.0
        %4436 = vmatpush.xpose.msra.mxu0 0.0
        %4437 = vmatpush.xpose.msra.mxu0 0.0
        %4438 = vmatpush.xpose.msra.mxu0 0.0
        %4439 = vmatpush.xpose.msra.mxu0 0.0
        %4440 = vmatpush.xpose.msra.mxu0 0.0
        %4441 = vmatpush.xpose.msra.mxu0 0.0
        %4442 = vmatpush.xpose.msra.mxu0 0.0
        %4443 = vmatpush.xpose.msra.mxu0 0.0
        %4444 = vmatpush.xpose.msra.mxu0 0.0
        %4445 = vmatpush.xpose.msra.mxu0 0.0
        %4446 = vmatpush.xpose.msra.mxu0 0.0
        %4447 = vmatpush.xpose.msra.mxu0 0.0
        %4448 = vmatpush.xpose.msra.mxu0 %v645
        %4449 = vmatpush.xpose.msra.mxu0 %v453
        %4450 = vmatmul.f32.gmra.mxu0 %v928
        %v4451 = vpop.f32.mrf.mxu0
        %v4452 = vadd.f32 %v4432, %v4451
        %4453 = vdwg.mxu0
        %4454 = vmatpush.xpose.msra.mxu0 0.0
        %4455 = vmatpush.xpose.msra.mxu0 0.0
        %4456 = vmatpush.xpose.msra.mxu0 0.0
        %4457 = vmatpush.xpose.msra.mxu0 0.0
        %4458 = vmatpush.xpose.msra.mxu0 0.0
        %4459 = vmatpush.xpose.msra.mxu0 0.0
        %4460 = vmatpush.xpose.msra.mxu0 0.0
        %4461 = vmatpush.xpose.msra.mxu0 0.0
        %4462 = vmatpush.xpose.msra.mxu0 0.0
        %4463 = vmatpush.xpose.msra.mxu0 0.0
        %4464 = vmatpush.xpose.msra.mxu0 0.0
        %4465 = vmatpush.xpose.msra.mxu0 0.0
        %4466 = vmatpush.xpose.msra.mxu0 0.0
        %4467 = vmatpush.xpose.msra.mxu0 0.0
        %4468 = vmatpush.xpose.msra.mxu0 %v646
        %4469 = vmatpush.xpose.msra.mxu0 %v454
        %4470 = vmatmul.f32.gmra.mxu0 %v929
        %v4471 = vpop.f32.mrf.mxu0
        %v4472 = vadd.f32 %v4452, %v4471
        %4473 = vdwg.mxu0
        %4474 = vmatpush.xpose.msra.mxu0 0.0
        %4475 = vmatpush.xpose.msra.mxu0 0.0
        %4476 = vmatpush.xpose.msra.mxu0 0.0
        %4477 = vmatpush.xpose.msra.mxu0 0.0
        %4478 = vmatpush.xpose.msra.mxu0 0.0
        %4479 = vmatpush.xpose.msra.mxu0 0.0
        %4480 = vmatpush.xpose.msra.mxu0 0.0
        %4481 = vmatpush.xpose.msra.mxu0 0.0
        %4482 = vmatpush.xpose.msra.mxu0 0.0
        %4483 = vmatpush.xpose.msra.mxu0 0.0
        %4484 = vmatpush.xpose.msra.mxu0 0.0
        %4485 = vmatpush.xpose.msra.mxu0 0.0
        %4486 = vmatpush.xpose.msra.mxu0 0.0
        %4487 = vmatpush.xpose.msra.mxu0 0.0
        %4488 = vmatpush.xpose.msra.mxu0 %v647
        %4489 = vmatpush.xpose.msra.mxu0 %v455
        %4490 = vmatmul.f32.gmra.mxu0 %v930
        %v4491 = vpop.f32.mrf.mxu0
        %v4492 = vadd.f32 %v4472, %v4491
        %4493 = vdwg.mxu0
        %4494 = vmatpush.xpose.msra.mxu0 0.0
        %4495 = vmatpush.xpose.msra.mxu0 0.0
        %4496 = vmatpush.xpose.msra.mxu0 0.0
        %4497 = vmatpush.xpose.msra.mxu0 0.0
        %4498 = vmatpush.xpose.msra.mxu0 0.0
        %4499 = vmatpush.xpose.msra.mxu0 0.0
        %4500 = vmatpush.xpose.msra.mxu0 0.0
        %4501 = vmatpush.xpose.msra.mxu0 0.0
        %4502 = vmatpush.xpose.msra.mxu0 0.0
        %4503 = vmatpush.xpose.msra.mxu0 0.0
        %4504 = vmatpush.xpose.msra.mxu0 0.0
        %4505 = vmatpush.xpose.msra.mxu0 0.0
        %4506 = vmatpush.xpose.msra.mxu0 0.0
        %4507 = vmatpush.xpose.msra.mxu0 0.0
        %4508 = vmatpush.xpose.msra.mxu0 %v648
        %4509 = vmatpush.xpose.msra.mxu0 %v456
        %4510 = vmatmul.f32.gmra.mxu0 %v931
        %v4511 = vpop.f32.mrf.mxu0
        %v4512 = vadd.f32 %v4492, %v4511
        %4513 = vdwg.mxu0
        %4514 = vmatpush.xpose.msra.mxu0 0.0
        %4515 = vmatpush.xpose.msra.mxu0 0.0
        %4516 = vmatpush.xpose.msra.mxu0 0.0
        %4517 = vmatpush.xpose.msra.mxu0 0.0
        %4518 = vmatpush.xpose.msra.mxu0 0.0
        %4519 = vmatpush.xpose.msra.mxu0 0.0
        %4520 = vmatpush.xpose.msra.mxu0 0.0
        %4521 = vmatpush.xpose.msra.mxu0 0.0
        %4522 = vmatpush.xpose.msra.mxu0 0.0
        %4523 = vmatpush.xpose.msra.mxu0 0.0
        %4524 = vmatpush.xpose.msra.mxu0 0.0
        %4525 = vmatpush.xpose.msra.mxu0 0.0
        %4526 = vmatpush.xpose.msra.mxu0 0.0
        %4527 = vmatpush.xpose.msra.mxu0 0.0
        %4528 = vmatpush.xpose.msra.mxu0 %v649
        %4529 = vmatpush.xpose.msra.mxu0 %v457
        %4530 = vmatmul.f32.gmra.mxu0 %v934
        %v4531 = vpop.f32.mrf.mxu0
        %v4532 = vadd.f32 %v4512, %v4531
        %4533 = vdwg.mxu0
        %4534 = vmatpush.xpose.msra.mxu0 0.0
        %4535 = vmatpush.xpose.msra.mxu0 0.0
        %4536 = vmatpush.xpose.msra.mxu0 0.0
        %4537 = vmatpush.xpose.msra.mxu0 0.0
        %4538 = vmatpush.xpose.msra.mxu0 0.0
        %4539 = vmatpush.xpose.msra.mxu0 0.0
        %4540 = vmatpush.xpose.msra.mxu0 0.0
        %4541 = vmatpush.xpose.msra.mxu0 0.0
        %4542 = vmatpush.xpose.msra.mxu0 0.0
        %4543 = vmatpush.xpose.msra.mxu0 0.0
        %4544 = vmatpush.xpose.msra.mxu0 0.0
        %4545 = vmatpush.xpose.msra.mxu0 0.0
        %4546 = vmatpush.xpose.msra.mxu0 0.0
        %4547 = vmatpush.xpose.msra.mxu0 0.0
        %4548 = vmatpush.xpose.msra.mxu0 %v650
        %4549 = vmatpush.xpose.msra.mxu0 %v458
        %4550 = vmatmul.f32.gmra.mxu0 %v935
        %v4551 = vpop.f32.mrf.mxu0
        %v4552 = vadd.f32 %v4532, %v4551
        %4553 = vdwg.mxu0
        %4554 = vmatpush.xpose.msra.mxu0 0.0
        %4555 = vmatpush.xpose.msra.mxu0 0.0
        %4556 = vmatpush.xpose.msra.mxu0 0.0
        %4557 = vmatpush.xpose.msra.mxu0 0.0
        %4558 = vmatpush.xpose.msra.mxu0 0.0
        %4559 = vmatpush.xpose.msra.mxu0 0.0
        %4560 = vmatpush.xpose.msra.mxu0 0.0
        %4561 = vmatpush.xpose.msra.mxu0 0.0
        %4562 = vmatpush.xpose.msra.mxu0 0.0
        %4563 = vmatpush.xpose.msra.mxu0 0.0
        %4564 = vmatpush.xpose.msra.mxu0 0.0
        %4565 = vmatpush.xpose.msra.mxu0 0.0
        %4566 = vmatpush.xpose.msra.mxu0 0.0
        %4567 = vmatpush.xpose.msra.mxu0 0.0
        %4568 = vmatpush.xpose.msra.mxu0 %v651
        %4569 = vmatpush.xpose.msra.mxu0 %v459
        %4570 = vmatmul.f32.gmra.mxu0 %v936
        %v4571 = vpop.f32.mrf.mxu0
        %v4572 = vadd.f32 %v4552, %v4571
        %4573 = vdwg.mxu0
        %4574 = vmatpush.xpose.msra.mxu0 0.0
        %4575 = vmatpush.xpose.msra.mxu0 0.0
        %4576 = vmatpush.xpose.msra.mxu0 0.0
        %4577 = vmatpush.xpose.msra.mxu0 0.0
        %4578 = vmatpush.xpose.msra.mxu0 0.0
        %4579 = vmatpush.xpose.msra.mxu0 0.0
        %4580 = vmatpush.xpose.msra.mxu0 0.0
        %4581 = vmatpush.xpose.msra.mxu0 0.0
        %4582 = vmatpush.xpose.msra.mxu0 0.0
        %4583 = vmatpush.xpose.msra.mxu0 0.0
        %4584 = vmatpush.xpose.msra.mxu0 0.0
        %4585 = vmatpush.xpose.msra.mxu0 0.0
        %4586 = vmatpush.xpose.msra.mxu0 0.0
        %4587 = vmatpush.xpose.msra.mxu0 0.0
        %4588 = vmatpush.xpose.msra.mxu0 %v652
        %4589 = vmatpush.xpose.msra.mxu0 %v460
        %4590 = vmatmul.f32.gmra.mxu0 %v937
        %v4591 = vpop.f32.mrf.mxu0
        %v4592 = vadd.f32 %v4572, %v4591
        %4593 = vdwg.mxu0
        %4594 = vmatpush.xpose.msra.mxu0 0.0
        %4595 = vmatpush.xpose.msra.mxu0 0.0
        %4596 = vmatpush.xpose.msra.mxu0 0.0
        %4597 = vmatpush.xpose.msra.mxu0 0.0
        %4598 = vmatpush.xpose.msra.mxu0 0.0
        %4599 = vmatpush.xpose.msra.mxu0 0.0
        %4600 = vmatpush.xpose.msra.mxu0 0.0
        %4601 = vmatpush.xpose.msra.mxu0 0.0
        %4602 = vmatpush.xpose.msra.mxu0 0.0
        %4603 = vmatpush.xpose.msra.mxu0 0.0
        %4604 = vmatpush.xpose.msra.mxu0 0.0
        %4605 = vmatpush.xpose.msra.mxu0 0.0
        %4606 = vmatpush.xpose.msra.mxu0 0.0
        %4607 = vmatpush.xpose.msra.mxu0 0.0
        %4608 = vmatpush.xpose.msra.mxu0 %v653
        %4609 = vmatpush.xpose.msra.mxu0 %v461
        %4610 = vmatmul.f32.gmra.mxu0 %v938
        %v4611 = vpop.f32.mrf.mxu0
        %v4612 = vadd.f32 %v4592, %v4611
        %4613 = vdwg.mxu0
        %4614 = vmatpush.xpose.msra.mxu0 0.0
        %4615 = vmatpush.xpose.msra.mxu0 0.0
        %4616 = vmatpush.xpose.msra.mxu0 0.0
        %4617 = vmatpush.xpose.msra.mxu0 0.0
        %4618 = vmatpush.xpose.msra.mxu0 0.0
        %4619 = vmatpush.xpose.msra.mxu0 0.0
        %4620 = vmatpush.xpose.msra.mxu0 0.0
        %4621 = vmatpush.xpose.msra.mxu0 0.0
        %4622 = vmatpush.xpose.msra.mxu0 0.0
        %4623 = vmatpush.xpose.msra.mxu0 0.0
        %4624 = vmatpush.xpose.msra.mxu0 0.0
        %4625 = vmatpush.xpose.msra.mxu0 0.0
        %4626 = vmatpush.xpose.msra.mxu0 0.0
        %4627 = vmatpush.xpose.msra.mxu0 0.0
        %4628 = vmatpush.xpose.msra.mxu0 %v654
        %4629 = vmatpush.xpose.msra.mxu0 %v462
        %4630 = vmatmul.f32.gmra.mxu0 %v939
        %v4631 = vpop.f32.mrf.mxu0
        %v4632 = vadd.f32 %v4612, %v4631
        %4633 = vdwg.mxu0
        %4634 = vmatpush.xpose.msra.mxu0 0.0
        %4635 = vmatpush.xpose.msra.mxu0 0.0
        %4636 = vmatpush.xpose.msra.mxu0 0.0
        %4637 = vmatpush.xpose.msra.mxu0 0.0
        %4638 = vmatpush.xpose.msra.mxu0 0.0
        %4639 = vmatpush.xpose.msra.mxu0 0.0
        %4640 = vmatpush.xpose.msra.mxu0 0.0
        %4641 = vmatpush.xpose.msra.mxu0 0.0
        %4642 = vmatpush.xpose.msra.mxu0 0.0
        %4643 = vmatpush.xpose.msra.mxu0 0.0
        %4644 = vmatpush.xpose.msra.mxu0 0.0
        %4645 = vmatpush.xpose.msra.mxu0 0.0
        %4646 = vmatpush.xpose.msra.mxu0 0.0
        %4647 = vmatpush.xpose.msra.mxu0 0.0
        %4648 = vmatpush.xpose.msra.mxu0 %v655
        %4649 = vmatpush.xpose.msra.mxu0 %v463
        %4650 = vmatmul.f32.gmra.mxu0 %v940
        %v4651 = vpop.f32.mrf.mxu0
        %v4652 = vadd.f32 %v4632, %v4651
        %4653 = vdwg.mxu0
        %4654 = vmatpush.xpose.msra.mxu0 0.0
        %4655 = vmatpush.xpose.msra.mxu0 0.0
        %4656 = vmatpush.xpose.msra.mxu0 0.0
        %4657 = vmatpush.xpose.msra.mxu0 0.0
        %4658 = vmatpush.xpose.msra.mxu0 0.0
        %4659 = vmatpush.xpose.msra.mxu0 0.0
        %4660 = vmatpush.xpose.msra.mxu0 0.0
        %4661 = vmatpush.xpose.msra.mxu0 0.0
        %4662 = vmatpush.xpose.msra.mxu0 0.0
        %4663 = vmatpush.xpose.msra.mxu0 0.0
        %4664 = vmatpush.xpose.msra.mxu0 0.0
        %4665 = vmatpush.xpose.msra.mxu0 0.0
        %4666 = vmatpush.xpose.msra.mxu0 0.0
        %4667 = vmatpush.xpose.msra.mxu0 0.0
        %4668 = vmatpush.xpose.msra.mxu0 %v656
        %4669 = vmatpush.xpose.msra.mxu0 %v464
        %4670 = vmatmul.f32.gmra.mxu0 %v941
        %v4671 = vpop.f32.mrf.mxu0
        %v4672 = vadd.f32 %v4652, %v4671
        %4673 = vdwg.mxu0
        %4674 = vmatpush.xpose.msra.mxu0 0.0
        %4675 = vmatpush.xpose.msra.mxu0 0.0
        %4676 = vmatpush.xpose.msra.mxu0 0.0
        %4677 = vmatpush.xpose.msra.mxu0 0.0
        %4678 = vmatpush.xpose.msra.mxu0 0.0
        %4679 = vmatpush.xpose.msra.mxu0 0.0
        %4680 = vmatpush.xpose.msra.mxu0 0.0
        %4681 = vmatpush.xpose.msra.mxu0 0.0
        %4682 = vmatpush.xpose.msra.mxu0 0.0
        %4683 = vmatpush.xpose.msra.mxu0 0.0
        %4684 = vmatpush.xpose.msra.mxu0 0.0
        %4685 = vmatpush.xpose.msra.mxu0 0.0
        %4686 = vmatpush.xpose.msra.mxu0 0.0
        %4687 = vmatpush.xpose.msra.mxu0 0.0
        %4688 = vmatpush.xpose.msra.mxu0 %v657
        %4689 = vmatpush.xpose.msra.mxu0 %v465
        %4690 = vmatmul.f32.gmra.mxu0 %v944
        %v4691 = vpop.f32.mrf.mxu0
        %v4692 = vadd.f32 %v4672, %v4691
        %4693 = vdwg.mxu0
        %4694 = vmatpush.xpose.msra.mxu0 0.0
        %4695 = vmatpush.xpose.msra.mxu0 0.0
        %4696 = vmatpush.xpose.msra.mxu0 0.0
        %4697 = vmatpush.xpose.msra.mxu0 0.0
        %4698 = vmatpush.xpose.msra.mxu0 0.0
        %4699 = vmatpush.xpose.msra.mxu0 0.0
        %4700 = vmatpush.xpose.msra.mxu0 0.0
        %4701 = vmatpush.xpose.msra.mxu0 0.0
        %4702 = vmatpush.xpose.msra.mxu0 0.0
        %4703 = vmatpush.xpose.msra.mxu0 0.0
        %4704 = vmatpush.xpose.msra.mxu0 0.0
        %4705 = vmatpush.xpose.msra.mxu0 0.0
        %4706 = vmatpush.xpose.msra.mxu0 0.0
        %4707 = vmatpush.xpose.msra.mxu0 0.0
        %4708 = vmatpush.xpose.msra.mxu0 %v658
        %4709 = vmatpush.xpose.msra.mxu0 %v466
        %4710 = vmatmul.f32.gmra.mxu0 %v945
        %v4711 = vpop.f32.mrf.mxu0
        %v4712 = vadd.f32 %v4692, %v4711
        %4713 = vdwg.mxu0
        %4714 = vmatpush.xpose.msra.mxu0 0.0
        %4715 = vmatpush.xpose.msra.mxu0 0.0
        %4716 = vmatpush.xpose.msra.mxu0 0.0
        %4717 = vmatpush.xpose.msra.mxu0 0.0
        %4718 = vmatpush.xpose.msra.mxu0 0.0
        %4719 = vmatpush.xpose.msra.mxu0 0.0
        %4720 = vmatpush.xpose.msra.mxu0 0.0
        %4721 = vmatpush.xpose.msra.mxu0 0.0
        %4722 = vmatpush.xpose.msra.mxu0 0.0
        %4723 = vmatpush.xpose.msra.mxu0 0.0
        %4724 = vmatpush.xpose.msra.mxu0 0.0
        %4725 = vmatpush.xpose.msra.mxu0 0.0
        %4726 = vmatpush.xpose.msra.mxu0 0.0
        %4727 = vmatpush.xpose.msra.mxu0 0.0
        %4728 = vmatpush.xpose.msra.mxu0 %v659
        %4729 = vmatpush.xpose.msra.mxu0 %v467
        %4730 = vmatmul.f32.gmra.mxu0 %v946
        %v4731 = vpop.f32.mrf.mxu0
        %v4732 = vadd.f32 %v4712, %v4731
        %4733 = vdwg.mxu0
        %4734 = vmatpush.xpose.msra.mxu0 0.0
        %4735 = vmatpush.xpose.msra.mxu0 0.0
        %4736 = vmatpush.xpose.msra.mxu0 0.0
        %4737 = vmatpush.xpose.msra.mxu0 0.0
        %4738 = vmatpush.xpose.msra.mxu0 0.0
        %4739 = vmatpush.xpose.msra.mxu0 0.0
        %4740 = vmatpush.xpose.msra.mxu0 0.0
        %4741 = vmatpush.xpose.msra.mxu0 0.0
        %4742 = vmatpush.xpose.msra.mxu0 0.0
        %4743 = vmatpush.xpose.msra.mxu0 0.0
        %4744 = vmatpush.xpose.msra.mxu0 0.0
        %4745 = vmatpush.xpose.msra.mxu0 0.0
        %4746 = vmatpush.xpose.msra.mxu0 0.0
        %4747 = vmatpush.xpose.msra.mxu0 0.0
        %4748 = vmatpush.xpose.msra.mxu0 %v660
        %4749 = vmatpush.xpose.msra.mxu0 %v468
        %4750 = vmatmul.f32.gmra.mxu0 %v947
        %v4751 = vpop.f32.mrf.mxu0
        %v4752 = vadd.f32 %v4732, %v4751
        %4753 = vdwg.mxu0
        %4754 = vmatpush.xpose.msra.mxu0 0.0
        %4755 = vmatpush.xpose.msra.mxu0 0.0
        %4756 = vmatpush.xpose.msra.mxu0 0.0
        %4757 = vmatpush.xpose.msra.mxu0 0.0
        %4758 = vmatpush.xpose.msra.mxu0 0.0
        %4759 = vmatpush.xpose.msra.mxu0 0.0
        %4760 = vmatpush.xpose.msra.mxu0 0.0
        %4761 = vmatpush.xpose.msra.mxu0 0.0
        %4762 = vmatpush.xpose.msra.mxu0 0.0
        %4763 = vmatpush.xpose.msra.mxu0 0.0
        %4764 = vmatpush.xpose.msra.mxu0 0.0
        %4765 = vmatpush.xpose.msra.mxu0 0.0
        %4766 = vmatpush.xpose.msra.mxu0 0.0
        %4767 = vmatpush.xpose.msra.mxu0 0.0
        %4768 = vmatpush.xpose.msra.mxu0 %v661
        %4769 = vmatpush.xpose.msra.mxu0 %v469
        %4770 = vmatmul.f32.gmra.mxu0 %v948
        %v4771 = vpop.f32.mrf.mxu0
        %v4772 = vadd.f32 %v4752, %v4771
        %4773 = vdwg.mxu0
        %4774 = vmatpush.xpose.msra.mxu0 0.0
        %4775 = vmatpush.xpose.msra.mxu0 0.0
        %4776 = vmatpush.xpose.msra.mxu0 0.0
        %4777 = vmatpush.xpose.msra.mxu0 0.0
        %4778 = vmatpush.xpose.msra.mxu0 0.0
        %4779 = vmatpush.xpose.msra.mxu0 0.0
        %4780 = vmatpush.xpose.msra.mxu0 0.0
        %4781 = vmatpush.xpose.msra.mxu0 0.0
        %4782 = vmatpush.xpose.msra.mxu0 0.0
        %4783 = vmatpush.xpose.msra.mxu0 0.0
        %4784 = vmatpush.xpose.msra.mxu0 0.0
        %4785 = vmatpush.xpose.msra.mxu0 0.0
        %4786 = vmatpush.xpose.msra.mxu0 0.0
        %4787 = vmatpush.xpose.msra.mxu0 0.0
        %4788 = vmatpush.xpose.msra.mxu0 %v662
        %4789 = vmatpush.xpose.msra.mxu0 %v470
        %4790 = vmatmul.f32.gmra.mxu0 %v949
        %v4791 = vpop.f32.mrf.mxu0
        %v4792 = vadd.f32 %v4772, %v4791
        %4793 = vdwg.mxu0
        %4794 = vmatpush.xpose.msra.mxu0 0.0
        %4795 = vmatpush.xpose.msra.mxu0 0.0
        %4796 = vmatpush.xpose.msra.mxu0 0.0
        %4797 = vmatpush.xpose.msra.mxu0 0.0
        %4798 = vmatpush.xpose.msra.mxu0 0.0
        %4799 = vmatpush.xpose.msra.mxu0 0.0
        %4800 = vmatpush.xpose.msra.mxu0 0.0
        %4801 = vmatpush.xpose.msra.mxu0 0.0
        %4802 = vmatpush.xpose.msra.mxu0 0.0
        %4803 = vmatpush.xpose.msra.mxu0 0.0
        %4804 = vmatpush.xpose.msra.mxu0 0.0
        %4805 = vmatpush.xpose.msra.mxu0 0.0
        %4806 = vmatpush.xpose.msra.mxu0 0.0
        %4807 = vmatpush.xpose.msra.mxu0 0.0
        %4808 = vmatpush.xpose.msra.mxu0 %v663
        %4809 = vmatpush.xpose.msra.mxu0 %v471
        %4810 = vmatmul.f32.gmra.mxu0 %v950
        %v4811 = vpop.f32.mrf.mxu0
        %v4812 = vadd.f32 %v4792, %v4811
        %4813 = vdwg.mxu0
        %4814 = vmatpush.xpose.msra.mxu0 0.0
        %4815 = vmatpush.xpose.msra.mxu0 0.0
        %4816 = vmatpush.xpose.msra.mxu0 0.0
        %4817 = vmatpush.xpose.msra.mxu0 0.0
        %4818 = vmatpush.xpose.msra.mxu0 0.0
        %4819 = vmatpush.xpose.msra.mxu0 0.0
        %4820 = vmatpush.xpose.msra.mxu0 0.0
        %4821 = vmatpush.xpose.msra.mxu0 0.0
        %4822 = vmatpush.xpose.msra.mxu0 0.0
        %4823 = vmatpush.xpose.msra.mxu0 0.0
        %4824 = vmatpush.xpose.msra.mxu0 0.0
        %4825 = vmatpush.xpose.msra.mxu0 0.0
        %4826 = vmatpush.xpose.msra.mxu0 0.0
        %4827 = vmatpush.xpose.msra.mxu0 0.0
        %4828 = vmatpush.xpose.msra.mxu0 %v664
        %4829 = vmatpush.xpose.msra.mxu0 %v472
        %4830 = vmatmul.f32.gmra.mxu0 %v951
        %v4831 = vpop.f32.mrf.mxu0
        %v4832 = vadd.f32 %v4812, %v4831
        %4833 = vdwg.mxu0
        %4834 = vmatpush.xpose.msra.mxu0 0.0
        %4835 = vmatpush.xpose.msra.mxu0 0.0
        %4836 = vmatpush.xpose.msra.mxu0 0.0
        %4837 = vmatpush.xpose.msra.mxu0 0.0
        %4838 = vmatpush.xpose.msra.mxu0 0.0
        %4839 = vmatpush.xpose.msra.mxu0 0.0
        %4840 = vmatpush.xpose.msra.mxu0 0.0
        %4841 = vmatpush.xpose.msra.mxu0 0.0
        %4842 = vmatpush.xpose.msra.mxu0 0.0
        %4843 = vmatpush.xpose.msra.mxu0 0.0
        %4844 = vmatpush.xpose.msra.mxu0 0.0
        %4845 = vmatpush.xpose.msra.mxu0 0.0
        %4846 = vmatpush.xpose.msra.mxu0 0.0
        %4847 = vmatpush.xpose.msra.mxu0 0.0
        %4848 = vmatpush.xpose.msra.mxu0 %v665
        %4849 = vmatpush.xpose.msra.mxu0 %v473
        %4850 = vmatmul.f32.gmra.mxu0 %v954
        %v4851 = vpop.f32.mrf.mxu0
        %v4852 = vadd.f32 %v4832, %v4851
        %4853 = vdwg.mxu0
        %4854 = vmatpush.xpose.msra.mxu0 0.0
        %4855 = vmatpush.xpose.msra.mxu0 0.0
        %4856 = vmatpush.xpose.msra.mxu0 0.0
        %4857 = vmatpush.xpose.msra.mxu0 0.0
        %4858 = vmatpush.xpose.msra.mxu0 0.0
        %4859 = vmatpush.xpose.msra.mxu0 0.0
        %4860 = vmatpush.xpose.msra.mxu0 0.0
        %4861 = vmatpush.xpose.msra.mxu0 0.0
        %4862 = vmatpush.xpose.msra.mxu0 0.0
        %4863 = vmatpush.xpose.msra.mxu0 0.0
        %4864 = vmatpush.xpose.msra.mxu0 0.0
        %4865 = vmatpush.xpose.msra.mxu0 0.0
        %4866 = vmatpush.xpose.msra.mxu0 0.0
        %4867 = vmatpush.xpose.msra.mxu0 0.0
        %4868 = vmatpush.xpose.msra.mxu0 %v666
        %4869 = vmatpush.xpose.msra.mxu0 %v474
        %4870 = vmatmul.f32.gmra.mxu0 %v955
        %v4871 = vpop.f32.mrf.mxu0
        %v4872 = vadd.f32 %v4852, %v4871
        %4873 = vdwg.mxu0
        %4874 = vmatpush.xpose.msra.mxu0 0.0
        %4875 = vmatpush.xpose.msra.mxu0 0.0
        %4876 = vmatpush.xpose.msra.mxu0 0.0
        %4877 = vmatpush.xpose.msra.mxu0 0.0
        %4878 = vmatpush.xpose.msra.mxu0 0.0
        %4879 = vmatpush.xpose.msra.mxu0 0.0
        %4880 = vmatpush.xpose.msra.mxu0 0.0
        %4881 = vmatpush.xpose.msra.mxu0 0.0
        %4882 = vmatpush.xpose.msra.mxu0 0.0
        %4883 = vmatpush.xpose.msra.mxu0 0.0
        %4884 = vmatpush.xpose.msra.mxu0 0.0
        %4885 = vmatpush.xpose.msra.mxu0 0.0
        %4886 = vmatpush.xpose.msra.mxu0 0.0
        %4887 = vmatpush.xpose.msra.mxu0 0.0
        %4888 = vmatpush.xpose.msra.mxu0 %v667
        %4889 = vmatpush.xpose.msra.mxu0 %v475
        %4890 = vmatmul.f32.gmra.mxu0 %v956
        %v4891 = vpop.f32.mrf.mxu0
        %v4892 = vadd.f32 %v4872, %v4891
        %4893 = vdwg.mxu0
        %4894 = vmatpush.xpose.msra.mxu0 0.0
        %4895 = vmatpush.xpose.msra.mxu0 0.0
        %4896 = vmatpush.xpose.msra.mxu0 0.0
        %4897 = vmatpush.xpose.msra.mxu0 0.0
        %4898 = vmatpush.xpose.msra.mxu0 0.0
        %4899 = vmatpush.xpose.msra.mxu0 0.0
        %4900 = vmatpush.xpose.msra.mxu0 0.0
        %4901 = vmatpush.xpose.msra.mxu0 0.0
        %4902 = vmatpush.xpose.msra.mxu0 0.0
        %4903 = vmatpush.xpose.msra.mxu0 0.0
        %4904 = vmatpush.xpose.msra.mxu0 0.0
        %4905 = vmatpush.xpose.msra.mxu0 0.0
        %4906 = vmatpush.xpose.msra.mxu0 0.0
        %4907 = vmatpush.xpose.msra.mxu0 0.0
        %4908 = vmatpush.xpose.msra.mxu0 %v668
        %4909 = vmatpush.xpose.msra.mxu0 %v476
        %4910 = vmatmul.f32.gmra.mxu0 %v957
        %v4911 = vpop.f32.mrf.mxu0
        %v4912 = vadd.f32 %v4892, %v4911
        %4913 = vdwg.mxu0
        %4914 = vmatpush.xpose.msra.mxu0 0.0
        %4915 = vmatpush.xpose.msra.mxu0 0.0
        %4916 = vmatpush.xpose.msra.mxu0 0.0
        %4917 = vmatpush.xpose.msra.mxu0 0.0
        %4918 = vmatpush.xpose.msra.mxu0 0.0
        %4919 = vmatpush.xpose.msra.mxu0 0.0
        %4920 = vmatpush.xpose.msra.mxu0 0.0
        %4921 = vmatpush.xpose.msra.mxu0 0.0
        %4922 = vmatpush.xpose.msra.mxu0 0.0
        %4923 = vmatpush.xpose.msra.mxu0 0.0
        %4924 = vmatpush.xpose.msra.mxu0 0.0
        %4925 = vmatpush.xpose.msra.mxu0 0.0
        %4926 = vmatpush.xpose.msra.mxu0 0.0
        %4927 = vmatpush.xpose.msra.mxu0 0.0
        %4928 = vmatpush.xpose.msra.mxu0 %v669
        %4929 = vmatpush.xpose.msra.mxu0 %v477
        %4930 = vmatmul.f32.gmra.mxu0 %v958
        %v4931 = vpop.f32.mrf.mxu0
        %v4932 = vadd.f32 %v4912, %v4931
        %4933 = vdwg.mxu0
        %4934 = vmatpush.xpose.msra.mxu0 0.0
        %4935 = vmatpush.xpose.msra.mxu0 0.0
        %4936 = vmatpush.xpose.msra.mxu0 0.0
        %4937 = vmatpush.xpose.msra.mxu0 0.0
        %4938 = vmatpush.xpose.msra.mxu0 0.0
        %4939 = vmatpush.xpose.msra.mxu0 0.0
        %4940 = vmatpush.xpose.msra.mxu0 0.0
        %4941 = vmatpush.xpose.msra.mxu0 0.0
        %4942 = vmatpush.xpose.msra.mxu0 0.0
        %4943 = vmatpush.xpose.msra.mxu0 0.0
        %4944 = vmatpush.xpose.msra.mxu0 0.0
        %4945 = vmatpush.xpose.msra.mxu0 0.0
        %4946 = vmatpush.xpose.msra.mxu0 0.0
        %4947 = vmatpush.xpose.msra.mxu0 0.0
        %4948 = vmatpush.xpose.msra.mxu0 %v670
        %4949 = vmatpush.xpose.msra.mxu0 %v478
        %4950 = vmatmul.f32.gmra.mxu0 %v959
        %v4951 = vpop.f32.mrf.mxu0
        %v4952 = vadd.f32 %v4932, %v4951
        %4953 = vdwg.mxu0
        %4954 = vmatpush.xpose.msra.mxu0 0.0
        %4955 = vmatpush.xpose.msra.mxu0 0.0
        %4956 = vmatpush.xpose.msra.mxu0 0.0
        %4957 = vmatpush.xpose.msra.mxu0 0.0
        %4958 = vmatpush.xpose.msra.mxu0 0.0
        %4959 = vmatpush.xpose.msra.mxu0 0.0
        %4960 = vmatpush.xpose.msra.mxu0 0.0
        %4961 = vmatpush.xpose.msra.mxu0 0.0
        %4962 = vmatpush.xpose.msra.mxu0 0.0
        %4963 = vmatpush.xpose.msra.mxu0 0.0
        %4964 = vmatpush.xpose.msra.mxu0 0.0
        %4965 = vmatpush.xpose.msra.mxu0 0.0
        %4966 = vmatpush.xpose.msra.mxu0 0.0
        %4967 = vmatpush.xpose.msra.mxu0 0.0
        %4968 = vmatpush.xpose.msra.mxu0 %v671
        %4969 = vmatpush.xpose.msra.mxu0 %v479
        %4970 = vmatmul.f32.gmra.mxu0 %v960
        %v4971 = vpop.f32.mrf.mxu0
        %v4972 = vadd.f32 %v4952, %v4971
        %4973 = vdwg.mxu0
        %4974 = vmatpush.xpose.msra.mxu0 0.0
        %4975 = vmatpush.xpose.msra.mxu0 0.0
        %4976 = vmatpush.xpose.msra.mxu0 0.0
        %4977 = vmatpush.xpose.msra.mxu0 0.0
        %4978 = vmatpush.xpose.msra.mxu0 0.0
        %4979 = vmatpush.xpose.msra.mxu0 0.0
        %4980 = vmatpush.xpose.msra.mxu0 0.0
        %4981 = vmatpush.xpose.msra.mxu0 0.0
        %4982 = vmatpush.xpose.msra.mxu0 0.0
        %4983 = vmatpush.xpose.msra.mxu0 0.0
        %4984 = vmatpush.xpose.msra.mxu0 0.0
        %4985 = vmatpush.xpose.msra.mxu0 0.0
        %4986 = vmatpush.xpose.msra.mxu0 0.0
        %4987 = vmatpush.xpose.msra.mxu0 0.0
        %4988 = vmatpush.xpose.msra.mxu0 %v672
        %4989 = vmatpush.xpose.msra.mxu0 %v480
        %4990 = vmatmul.f32.gmra.mxu0 %v961
        %v4991 = vpop.f32.mrf.mxu0
        %v4992 = vadd.f32 %v4972, %v4991
        %4993 = vdwg.mxu0
        %v4994 = vadd.f32 %v240, %v4992
        %vm4995 = vcmask 74752
        %4996 = vst.msk [vmem:[%s227] sm:$0x3] %vm4995, %v4994
        %s4997 = sand.u32 %s102, 1
        %s4998 = scalar_lea.sflag [#allocation4], %s4997
        %s4999 = sand.u32 %s102, 1
        %s5000 = smul.addr %s4999, 2
        %s5001 = scalar_lea.vmem [#allocation7], %s5000
        // Predicated region
        $region41: #{tpu_custom_call.1} parent=27 // pred_check
          %p5002 = pneg %p112
        $region42: #{tpu_custom_call.1} parent=27 // pred_check_branch
          %5004 = sbr.rel (%p5002) target = $region44
        $region43: #{tpu_custom_call.1} parent=27 // pred_region
          %5006 = vsyncadd %s4998, 0
          %s5007 = smul.addr %s26, 2
          %s5008 = scalar_lea.hbm %s2, %s5007
          %s5010 = sshll.u32 %s5001, 4
          %s5011 = int_to_ptr.vmem [resolvable:$true] %s5010
          %s5012 = sshll.u32 %s5008, 4
          %s5013 = int_to_ptr.hbm [resolvable:$true] %s5012
          %5015 = dma.vmem_to_hbm [thread:$0]  %s5011, 32, %s5013, %s4998
        $region44: #{tpu_custom_call.1} parent=27 // pred_fallthru
          _
      $region28: #{tpu_custom_call.1} parent=5 // pred_fallthru
        _
      %p5016 = scmp.le.s32.totalorder 2, %s17
      // Predicated region
      $region45: #{tpu_custom_call.1} parent=5 // pred_check
        %p5017 = pneg %p5016
      $region46: #{tpu_custom_call.1} parent=5 // pred_check_branch
        %5019 = sbr.rel (%p5017) target = $region48
      $region47: #{tpu_custom_call.1} parent=5 // pred_region
        %s5020 = ssub.s32 %s17, 2
        // Predicated region
        $region49: #{tpu_custom_call.1} parent=47 // pred_check
          %p5021 = pneg %p118
        $region50: #{tpu_custom_call.1} parent=47 // pred_check_branch
          %5023 = sbr.rel (%p5021) target = $region52
        $region51: #{tpu_custom_call.1} parent=47 // pred_region
          %s5024 = sand.u32 %s103, 1
          %s5025 = scalar_lea.sflag [#allocation4], %s5024
          %s5026 = sand.u32 %s103, 1
          %s5027 = smul.addr %s5026, 2
          %s5028 = scalar_lea.vmem [#allocation7], %s5027
          %5030 = dma.done %s5025, 32
        $region52: #{tpu_custom_call.1} parent=47 // pred_fallthru
          _
      $region48: #{tpu_custom_call.1} parent=5 // pred_fallthru
        _
    $region6: #{tpu_custom_call.1} parent=1 // loop_footer
      %s21 = sadd.s32 1, %s17
    $region7: #{tpu_custom_call.1} parent=1 // loop_footer_branch
      %16 = sbr.rel target = $region3
    $region8: #{tpu_custom_call.1} parent=1 // loop_exit
      _
    %5031 = vsyncpa [#allocation3], 1
    %s5032 = scalar_lea.sflag [#allocation3], 1
    %5033 = vsyncpa %s5032, 1
    %5034 = vsyncpa [#allocation6], 1
    %s5035 = scalar_lea.sflag [#allocation6], 1
    %5036 = vsyncpa %s5035, 1
    %5037 = vsyncpa [#allocation4], 1
    %s5038 = scalar_lea.sflag [#allocation4], 1
    %5039 = vsyncpa %s5038, 1

</llo_original>
